<compile_context>
chip_gen: v7x
topology: tpu7x:2x2x1
jax: 0.10.0
libtpu: 0.0.40
codegen_flags: <defaults>
</compile_context>

<pallas_src>
import functools

import jax
import jax.numpy as jnp
import numpy as np
from jax import lax
from jax.experimental import pallas as pl
from jax.experimental.pallas import tpu as pltpu

NUM_KP = 21
KP_PAD = 32            # keypoint rows padded to a packed-sublane multiple
CLAMP_MAX = 63.0       # the module's clamp(max=63) pins the spatial extent to 64
MOMENTUM = 0.999

# The per-map feature block is double-buffered for BOTH maps (4 resident
# copies); budget it against an explicit VMEM limit, reserving room for the
# two (KP_PAD, H*W) bf16 mask scratches, outputs and spill headroom.
_VMEM_LIMIT_BYTES = 32 * 1024 * 1024     # > v5e 16 MiB default, < v7x 64 MiB phys
_VMEM_RESERVE_BYTES = 8 * 1024 * 1024


# --------------------------------------------------------------------------
# Kernel: windowed per-channel pooling for one (batch, channel-tile) step,
#         for both feature maps, as bf16 MXU matmuls against a 0/1 mask.
# --------------------------------------------------------------------------
def _pool_kernel(b1_ref, inv1_ref, b2_ref, inv2_ref, f1_ref, f2_ref,
                 o1_ref, o2_ref, w1_ref, w2_ref, *, width, hoist_weights):
    hw = f1_ref.shape[-1]

    def build_masks():
        # Flattened spatial index: flat = h*width + w; h is sliced by
        # [left, right) and w by [down, upper), matching
        # feature[i, :, left:right, down:upper] in the reference module.
        flat = lax.broadcasted_iota(jnp.int32, (KP_PAD, hw), 1)
        if (width & (width - 1)) == 0:    # static: avoid vector int division
            w_idx = flat & (width - 1)
        else:
            w_idx = flat % width

        def mask(bnd_ref):
            bnd = bnd_ref[...]            # (KP_PAD, 4): left*W, right*W, down, upper
            lo_flat, hi_flat = bnd[:, 0:1], bnd[:, 1:2]
            down, upper = bnd[:, 2:3], bnd[:, 3:4]
            # TODO(synk): PyTorch negative-index slicing semantics (if clamping
            # ever produced right<=left or upper<=down) are not reproduced; the
            # mask simply yields 0.  Inputs are kept in-range so the two agree.
            inside = ((flat >= lo_flat) & (flat < hi_flat) &
                      (w_idx >= down) & (w_idx < upper))
            # Pure 0/1 mask: exactly representable in bf16.
            return jnp.where(inside, 1.0, 0.0).astype(w1_ref.dtype)

        w1_ref[...] = mask(b1_ref)
        w2_ref[...] = mask(b2_ref)

    if hoist_weights:
        # Channel-tile axis is innermost & "arbitrary": rebuild the masks only
        # on the first channel tile of each batch item.
        pl.when(pl.program_id(1) == 0)(build_masks)
    else:
        build_masks()

    def pooled(w_ref, inv_ref, feat_ref):
        # (KP_PAD, hw) x (ct, hw) contracted over hw -> (KP_PAD, ct) on the
        # MXU, bf16 operands, f32 accumulation; 1/denom scaling afterwards.
        acc = lax.dot_general(
            w_ref[...], feat_ref[...].astype(jnp.bfloat16),
            dimension_numbers=(((1,), (1,)), ((), ())),
            preferred_element_type=jnp.float32)
        return acc * inv_ref[...]         # (KP_PAD, 1) f32 column broadcast

    o1_ref[...] = pooled(w1_ref, inv1_ref, f1_ref)
    o2_ref[...] = pooled(w2_ref, inv2_ref, f2_ref)


# --------------------------------------------------------------------------
# Wrapper-side preprocessing & tiling plan
# --------------------------------------------------------------------------
def _window_params(pre, width):
    """clamp-then-.int() window bounds, pre-folded for the kernel.

    Returns (b, KP_PAD, 4) int32 [left*W, right*W, down, upper] and a
    (b, KP_PAD, 1) f32 1/denominator column.  Padded keypoint rows describe an
    empty window with zero 1/denominator, so they pool to exactly 0.
    """
    x = pre[..., 0]
    y = pre[..., 1]
    down = jnp.maximum(y - 6.0, 0.0).astype(jnp.int32)
    left = jnp.maximum(x - 6.0, 0.0).astype(jnp.int32)
    upper = jnp.minimum(y + 6.0, CLAMP_MAX).astype(jnp.int32)
    right = jnp.minimum(x + 6.0, CLAMP_MAX).astype(jnp.int32)
    # NOTE: intentionally reproduces the module's off-by-one denominator
    # (upper-down+1)*(right-left+1) while the slice is exclusive.  Do not "fix".
    denom = ((upper - down + 1) * (right - left + 1)).astype(jnp.float32)
    bounds = jnp.stack([left * width, right * width, down, upper], axis=-1)
    inv = (1.0 / denom)[..., None]
    pad = [(0, 0), (0, KP_PAD - NUM_KP), (0, 0)]
    return jnp.pad(bounds.astype(jnp.int32), pad), jnp.pad(inv, pad)


def _plan_channel_tiling(c, hw, elem_bytes):
    """Channel tile and padded channel count, sized against the VMEM limit.

    The feature block of each of the TWO maps is double-buffered by the
    pipeline, so resident feature VMEM ~= 4 * block_bytes.
    """
    per_block = (_VMEM_LIMIT_BYTES - _VMEM_RESERVE_BYTES) // 4
    cap = max(1, per_block // (hw * elem_bytes))
    if c <= cap:
        return c, c                       # one full-channel block per batch item
    # Tiled path: the channel tile is the output's last (lane) dim, so keep it
    # a multiple of 128 for unmasked lane-dense stores; pad C up to the tile.
    # TODO(synk): spatial extents far beyond 64x64 would additionally need an
    # hw-tiling pass; the module's clamp(..., 63) pins H=W=64 so that never
    # triggers here.
    ct = max(128, (cap // 128) * 128)
    c_pad = ((c + ct - 1) // ct) * ct
    return ct, c_pad


def _pooled_partials(f1, f2, pre1, pre2):
    b, c, h, w = f1.shape
    hw = h * w
    bounds1, inv1 = _window_params(pre1, w)
    bounds2, inv2 = _window_params(pre2, w)

    ct, c_pad = _plan_channel_tiling(c, hw, jnp.dtype(f1.dtype).itemsize)
    if c_pad != c:
        # Zero channel padding: padded channels pool to 0 and are dropped below.
        cpad = [(0, 0), (0, c_pad - c), (0, 0), (0, 0)]
        f1 = jnp.pad(f1, cpad)
        f2 = jnp.pad(f2, cpad)
    n_cb = c_pad // ct

    f1r = f1.reshape(b, c_pad, hw)        # contiguous reshape: free, no HBM copy
    f2r = f2.reshape(b, c_pad, hw)

    # Hoist the mask build across channel tiles (inner axis must then be
    # sequential).  With a single batch item and several channel tiles, trade
    # the hoist for a fully "parallel" grid so a v7x megacore isn't half idle.
    hoist = not (b == 1 and n_cb > 1)

    feat_spec = pl.BlockSpec((pl.Squeezed(), ct, hw), lambda i, cb: (i, cb, 0))
    bnd_spec = pl.BlockSpec((pl.Squeezed(), KP_PAD, 4), lambda i, cb: (i, 0, 0))
    inv_spec = pl.BlockSpec((pl.Squeezed(), KP_PAD, 1), lambda i, cb: (i, 0, 0))
    out_spec = pl.BlockSpec((pl.Squeezed(), KP_PAD, ct), lambda i, cb: (i, 0, cb))
    out_shape = jax.ShapeDtypeStruct((b, KP_PAD, c_pad), jnp.float32)

    o1, o2 = pl.pallas_call(
        functools.partial(_pool_kernel, width=w, hoist_weights=hoist),
        out_shape=(out_shape, out_shape),
        grid=(b, n_cb),
        in_specs=[bnd_spec, inv_spec, bnd_spec, inv_spec, feat_spec, feat_spec],
        out_specs=(out_spec, out_spec),
        scratch_shapes=[pltpu.VMEM((KP_PAD, hw), jnp.bfloat16),
                        pltpu.VMEM((KP_PAD, hw), jnp.bfloat16)],
        compiler_params=pltpu.CompilerParams(
            dimension_semantics=("parallel", "arbitrary" if hoist else "parallel"),
            vmem_limit_bytes=_VMEM_LIMIT_BYTES),
    )(bounds1, inv1, bounds2, inv2, f1r, f2r)

    return o1[:, :NUM_KP, :c], o2[:, :NUM_KP, :c]


# --------------------------------------------------------------------------
# Functional forward (state val1/val2 returned instead of mutated)
# --------------------------------------------------------------------------
def lossx_forward(f1, f2, pre1, pre2, val1=0.0, val2=0.0):
    b, c = f1.shape[0], f1.shape[1]
    o1, o2 = _pooled_partials(f1, f2, pre1, pre2)     # (b, 21, C) f32

    prev1 = jnp.broadcast_to(jnp.asarray(val1, jnp.float32), (NUM_KP, c))
    prev2 = jnp.broadcast_to(jnp.asarray(val2, jnp.float32), (NUM_KP, c))

    # Tiny (21, C) epilogue in plain jnp (a third pallas_call would cost more
    # in launch overhead than the compute it performs).  No transpose needed:
    # the kernel already emits (b, KP, C).
    new_val1 = MOMENTUM * (jnp.sum(o1, axis=0) / b) + (1.0 - MOMENTUM) * prev1
    new_val2 = MOMENTUM * (jnp.sum(o2, axis=0) / b) + (1.0 - MOMENTUM) * prev2

    log_p = jax.nn.log_softmax(new_val1, axis=-1)
    q = new_val2 / jnp.sum(new_val2, axis=-1, keepdims=True)
    # nn.KLDivLoss(reduction='none'): target * (log(target) - input), 0 at target==0.
    kl = jnp.where(q > 0, q * (jnp.log(q) - log_p), 0.0)
    loss = jnp.mean(jnp.sum(kl, axis=-1))
    return loss, new_val1, new_val2


# --------------------------------------------------------------------------
# Pure NumPy reference mirroring the PyTorch module (for correctness check)
# --------------------------------------------------------------------------
def _ref_forward(f1, f2, pre1, pre2, val1=0.0, val2=0.0):
    six = np.float32(6.0)
    zero = np.float32(0.0)
    cmax = np.float32(CLAMP_MAX)

    def loss1(feature, pre, fea):
        b = feature.shape[0]
        outs = []
        for i in range(b):
            rows = []
            for j in range(NUM_KP):
                xj = np.float32(pre[i, j, 0])
                yj = np.float32(pre[i, j, 1])
                down = int(max(yj - six, zero))
                left = int(max(xj - six, zero))
                upper = int(min(yj + six, cmax))
                right = int(min(xj + six, cmax))
                s1 = upper - down + 1
                s2 = right - left + 1
                win = feature[i, :, left:right, down:upper]
                rows.append(win.sum(axis=(1, 2)) / np.float32(s1 * s2))
            outs.append(np.stack(rows))
        fea_c = np.stack(outs).sum(axis=0) / np.float32(b)
        return np.float32(MOMENTUM) * fea_c + np.float32(1.0 - MOMENTUM) * fea

    c1 = loss1(f1, pre1, np.float32(val1))
    c2 = loss1(f2, pre2, np.float32(val2))
    xm = c1.max(axis=-1, keepdims=True)
    log_p = (c1 - xm) - np.log(np.exp(c1 - xm).sum(axis=-1, keepdims=True))
    q = c2 / c2.sum(axis=-1, keepdims=True)
    kl = np.where(q > 0, q * (np.log(q) - log_p), 0.0)
    return kl.sum(axis=-1).mean(), c1, c2


if __name__ == "__main__":
    key = jax.random.PRNGKey(0)
    k1, k2, k3, k4 = jax.random.split(key, 4)

    # Spatial extent 64 is implied by the module's clamp(..., max=63).
    B, C, H, W = 2, 32, 64, 64
    f1 = jax.random.uniform(k1, (B, C, H, W), jnp.float32)
    f2 = jax.random.uniform(k2, (B, C, H, W), jnp.float32)
    pre1 = jax.random.uniform(k3, (B, NUM_KP, 2), jnp.float32,
                              minval=8.0, maxval=55.0)
    pre2 = jax.random.uniform(k4, (B, NUM_KP, 2), jnp.float32,
                              minval=8.0, maxval=55.0)

    loss, new_v1, new_v2 = jax.jit(lossx_forward)(f1, f2, pre1, pre2)
    jax.block_until_ready(loss)

    # Primary check: exact module math with the kernel's one documented
    # approximation (features rounded to bf16 before the window sums, f32
    # accumulation) -- tight tolerances.
    f1_bf = np.asarray(f1.astype(jnp.bfloat16).astype(jnp.float32))
    f2_bf = np.asarray(f2.astype(jnp.bfloat16).astype(jnp.float32))
    ref_loss, ref_v1, ref_v2 = _ref_forward(f1_bf, f2_bf,
                                            np.asarray(pre1), np.asarray(pre2))
    assert np.allclose(np.asarray(new_v1), ref_v1, rtol=1e-4, atol=1e-5)
    assert np.allclose(np.asarray(new_v2), ref_v2, rtol=1e-4, atol=1e-5)
    assert np.allclose(float(loss), float(ref_loss), rtol=1e-2, atol=1e-5), \
        (float(loss), float(ref_loss))

    # Sanity check against the full-f32 reference (loose: bf16 feature cast,
    # per the perf review the tight f32 tolerances no longer apply).
    _, ref_v1_f32, ref_v2_f32 = _ref_forward(np.asarray(f1), np.asarray(f2),
                                             np.asarray(pre1), np.asarray(pre2))
    assert np.allclose(np.asarray(new_v1), ref_v1_f32, rtol=1e-2, atol=1e-3)
    assert np.allclose(np.asarray(new_v2), ref_v2_f32, rtol=1e-2, atol=1e-3)

    print("KERNEL_OK")
</pallas_src>

<mosaic_0001>
module attributes {stable_mosaic.version = 11 : i64} {
  func.func @_pool_kernel(%arg0: i32, %arg1: i32, %arg2: memref<1x32x4xi32, #tpu.memory_space<vmem>>, %arg3: memref<1x32x1xf32, #tpu.memory_space<vmem>>, %arg4: memref<1x32x4xi32, #tpu.memory_space<vmem>>, %arg5: memref<1x32x1xf32, #tpu.memory_space<vmem>>, %arg6: memref<1x32x4096xf32, #tpu.memory_space<vmem>>, %arg7: memref<1x32x4096xf32, #tpu.memory_space<vmem>>, %arg8: memref<1x32x32xf32, #tpu.memory_space<vmem>>, %arg9: memref<1x32x32xf32, #tpu.memory_space<vmem>>, %arg10: memref<32x4096xbf16, #tpu.memory_space<vmem>>, %arg11: memref<32x4096xbf16, #tpu.memory_space<vmem>>) attributes {dimension_semantics = [#tpu.dimension_semantics<parallel>, #tpu.dimension_semantics<arbitrary>], iteration_bounds = array<i64: 2, 1>, scalar_prefetch = 0 : i64, scratch_operands = 2 : i64, tpu.core_type = #tpu.core_type<tc>, window_params = [{transform_indices = @transform_0, window_bounds = array<i64: 1, 32, 4>}, {transform_indices = @transform_1, window_bounds = array<i64: 1, 32, 1>}, {transform_indices = @transform_2, window_bounds = array<i64: 1, 32, 4>}, {transform_indices = @transform_3, window_bounds = array<i64: 1, 32, 1>}, {transform_indices = @transform_4, window_bounds = array<i64: 1, 32, 4096>}, {transform_indices = @transform_5, window_bounds = array<i64: 1, 32, 4096>}, {transform_indices = @transform_6, window_bounds = array<i64: 1, 32, 32>}, {transform_indices = @transform_7, window_bounds = array<i64: 1, 32, 32>}]} {
    %c0_i32 = arith.constant 0 : i32
    %0 = arith.cmpi eq, %arg1, %c0_i32 : i32
    %1 = arith.extui %0 : i1 to i32
    %c0_i32_0 = arith.constant 0 : i32
    %2 = arith.cmpi ne, %1, %c0_i32_0 : i32
    scf.if %2 {
      %27 = tpu.iota {dimensions = array<i32: 1>} : vector<32x4096xi32>
      %c63_i32 = arith.constant 63 : i32
      %28 = vector.broadcast %c63_i32 : i32 to vector<32x4096xi32>
      %29 = arith.andi %27, %28 : vector<32x4096xi32>
      %c0_23 = arith.constant 0 : index
      %c0_24 = arith.constant 0 : index
      %c0_25 = arith.constant 0 : index
      %30 = vector.load %arg2[%c0_23, %c0_24, %c0_25] : memref<1x32x4xi32, #tpu.memory_space<vmem>>, vector<1x32x4xi32>
      %31 = vector.shape_cast %30 : vector<1x32x4xi32> to vector<32x4xi32>
      %32 = vector.extract_strided_slice %31 {offsets = [0, 0], sizes = [32, 1], strides = [1, 1]} : vector<32x4xi32> to vector<32x1xi32>
      %33 = vector.extract_strided_slice %31 {offsets = [0, 1], sizes = [32, 1], strides = [1, 1]} : vector<32x4xi32> to vector<32x1xi32>
      %34 = vector.extract_strided_slice %31 {offsets = [0, 2], sizes = [32, 1], strides = [1, 1]} : vector<32x4xi32> to vector<32x1xi32>
      %35 = vector.extract_strided_slice %31 {offsets = [0, 3], sizes = [32, 1], strides = [1, 1]} : vector<32x4xi32> to vector<32x1xi32>
      %36 = vector.broadcast %32 : vector<32x1xi32> to vector<32x4096xi32>
      %37 = arith.cmpi sge, %27, %36 : vector<32x4096xi32>
      %38 = vector.broadcast %33 : vector<32x1xi32> to vector<32x4096xi32>
      %39 = arith.cmpi slt, %27, %38 : vector<32x4096xi32>
      %40 = arith.andi %37, %39 : vector<32x4096xi1>
      %41 = vector.broadcast %34 : vector<32x1xi32> to vector<32x4096xi32>
      %42 = arith.cmpi sge, %29, %41 : vector<32x4096xi32>
      %43 = arith.andi %40, %42 : vector<32x4096xi1>
      %44 = vector.broadcast %35 : vector<32x1xi32> to vector<32x4096xi32>
      %45 = arith.cmpi slt, %29, %44 : vector<32x4096xi32>
      %46 = arith.andi %43, %45 : vector<32x4096xi1>
      %cst_26 = arith.constant 1.000000e+00 : f32
      %cst_27 = arith.constant 0.000000e+00 : f32
      %47 = vector.broadcast %cst_26 : f32 to vector<32x4096xf32>
      %48 = vector.broadcast %cst_27 : f32 to vector<32x4096xf32>
      %49 = arith.select %46, %47, %48 : vector<32x4096xi1>, vector<32x4096xf32>
      %50 = arith.truncf %49 : vector<32x4096xf32> to vector<32x4096xbf16>
      %c0_28 = arith.constant 0 : index
      %c0_29 = arith.constant 0 : index
      %51 = vector.load %arg10[%c0_28, %c0_29] : memref<32x4096xbf16, #tpu.memory_space<vmem>>, vector<32x4096xbf16>
      tpu.vector_store %arg10[%c0_28, %c0_29], %50 {strides = array<i32>} : memref<32x4096xbf16, #tpu.memory_space<vmem>>, vector<32x4096xbf16>,
      %c0_30 = arith.constant 0 : index
      %c0_31 = arith.constant 0 : index
      %c0_32 = arith.constant 0 : index
      %52 = vector.load %arg4[%c0_30, %c0_31, %c0_32] : memref<1x32x4xi32, #tpu.memory_space<vmem>>, vector<1x32x4xi32>
      %53 = vector.shape_cast %52 : vector<1x32x4xi32> to vector<32x4xi32>
      %54 = vector.extract_strided_slice %53 {offsets = [0, 0], sizes = [32, 1], strides = [1, 1]} : vector<32x4xi32> to vector<32x1xi32>
      %55 = vector.extract_strided_slice %53 {offsets = [0, 1], sizes = [32, 1], strides = [1, 1]} : vector<32x4xi32> to vector<32x1xi32>
      %56 = vector.extract_strided_slice %53 {offsets = [0, 2], sizes = [32, 1], strides = [1, 1]} : vector<32x4xi32> to vector<32x1xi32>
      %57 = vector.extract_strided_slice %53 {offsets = [0, 3], sizes = [32, 1], strides = [1, 1]} : vector<32x4xi32> to vector<32x1xi32>
      %58 = vector.broadcast %54 : vector<32x1xi32> to vector<32x4096xi32>
      %59 = arith.cmpi sge, %27, %58 : vector<32x4096xi32>
      %60 = vector.broadcast %55 : vector<32x1xi32> to vector<32x4096xi32>
      %61 = arith.cmpi slt, %27, %60 : vector<32x4096xi32>
      %62 = arith.andi %59, %61 : vector<32x4096xi1>
      %63 = vector.broadcast %56 : vector<32x1xi32> to vector<32x4096xi32>
      %64 = arith.cmpi sge, %29, %63 : vector<32x4096xi32>
      %65 = arith.andi %62, %64 : vector<32x4096xi1>
      %66 = vector.broadcast %57 : vector<32x1xi32> to vector<32x4096xi32>
      %67 = arith.cmpi slt, %29, %66 : vector<32x4096xi32>
      %68 = arith.andi %65, %67 : vector<32x4096xi1>
      %cst_33 = arith.constant 1.000000e+00 : f32
      %cst_34 = arith.constant 0.000000e+00 : f32
      %69 = vector.broadcast %cst_33 : f32 to vector<32x4096xf32>
      %70 = vector.broadcast %cst_34 : f32 to vector<32x4096xf32>
      %71 = arith.select %68, %69, %70 : vector<32x4096xi1>, vector<32x4096xf32>
      %72 = arith.truncf %71 : vector<32x4096xf32> to vector<32x4096xbf16>
      %c0_35 = arith.constant 0 : index
      %c0_36 = arith.constant 0 : index
      %73 = vector.load %arg11[%c0_35, %c0_36] : memref<32x4096xbf16, #tpu.memory_space<vmem>>, vector<32x4096xbf16>
      tpu.vector_store %arg11[%c0_35, %c0_36], %72 {strides = array<i32>} : memref<32x4096xbf16, #tpu.memory_space<vmem>>, vector<32x4096xbf16>,
    } else {
    }
    %c0 = arith.constant 0 : index
    %c0_1 = arith.constant 0 : index
    %3 = vector.load %arg10[%c0, %c0_1] : memref<32x4096xbf16, #tpu.memory_space<vmem>>, vector<32x4096xbf16>
    %c0_2 = arith.constant 0 : index
    %c0_3 = arith.constant 0 : index
    %c0_4 = arith.constant 0 : index
    %4 = vector.load %arg6[%c0_2, %c0_3, %c0_4] : memref<1x32x4096xf32, #tpu.memory_space<vmem>>, vector<1x32x4096xf32>
    %5 = vector.shape_cast %4 : vector<1x32x4096xf32> to vector<32x4096xf32>
    %6 = arith.truncf %5 : vector<32x4096xf32> to vector<32x4096xbf16>
    %cst = arith.constant dense<0.000000e+00> : vector<32x32xf32>
    %7 = tpu.matmul %3, %6, %cst {dimension_numbers = #tpu.dot_dimension_numbers<[1], [1], [0], [0], [0, 0, 1, 0], [], []>} : vector<32x4096xbf16>, vector<32x4096xbf16>, vector<32x32xf32> -> vector<32x32xf32>
    %c0_5 = arith.constant 0 : index
    %c0_6 = arith.constant 0 : index
    %c0_7 = arith.constant 0 : index
    %8 = vector.load %arg3[%c0_5, %c0_6, %c0_7] : memref<1x32x1xf32, #tpu.memory_space<vmem>>, vector<1x32x1xf32>
    %9 = vector.shape_cast %8 : vector<1x32x1xf32> to vector<32x1xf32>
    %10 = vector.broadcast %9 : vector<32x1xf32> to vector<32x32xf32>
    %11 = arith.mulf %7, %10 : vector<32x32xf32>
    %c0_8 = arith.constant 0 : index
    %c0_9 = arith.constant 0 : index
    %c0_10 = arith.constant 0 : index
    %12 = vector.load %arg8[%c0_8, %c0_9, %c0_10] : memref<1x32x32xf32, #tpu.memory_space<vmem>>, vector<1x32x32xf32>
    %13 = vector.shape_cast %12 : vector<1x32x32xf32> to vector<32x32xf32>
    %14 = vector.shape_cast %11 : vector<32x32xf32> to vector<1x32x32xf32>
    tpu.vector_store %arg8[%c0_8, %c0_9, %c0_10], %14 {strides = array<i32>} : memref<1x32x32xf32, #tpu.memory_space<vmem>>, vector<1x32x32xf32>,
    %c0_11 = arith.constant 0 : index
    %c0_12 = arith.constant 0 : index
    %15 = vector.load %arg11[%c0_11, %c0_12] : memref<32x4096xbf16, #tpu.memory_space<vmem>>, vector<32x4096xbf16>
    %c0_13 = arith.constant 0 : index
    %c0_14 = arith.constant 0 : index
    %c0_15 = arith.constant 0 : index
    %16 = vector.load %arg7[%c0_13, %c0_14, %c0_15] : memref<1x32x4096xf32, #tpu.memory_space<vmem>>, vector<1x32x4096xf32>
    %17 = vector.shape_cast %16 : vector<1x32x4096xf32> to vector<32x4096xf32>
    %18 = arith.truncf %17 : vector<32x4096xf32> to vector<32x4096xbf16>
    %cst_16 = arith.constant dense<0.000000e+00> : vector<32x32xf32>
    %19 = tpu.matmul %15, %18, %cst_16 {dimension_numbers = #tpu.dot_dimension_numbers<[1], [1], [0], [0], [0, 0, 1, 0], [], []>} : vector<32x4096xbf16>, vector<32x4096xbf16>, vector<32x32xf32> -> vector<32x32xf32>
    %c0_17 = arith.constant 0 : index
    %c0_18 = arith.constant 0 : index
    %c0_19 = arith.constant 0 : index
    %20 = vector.load %arg5[%c0_17, %c0_18, %c0_19] : memref<1x32x1xf32, #tpu.memory_space<vmem>>, vector<1x32x1xf32>
    %21 = vector.shape_cast %20 : vector<1x32x1xf32> to vector<32x1xf32>
    %22 = vector.broadcast %21 : vector<32x1xf32> to vector<32x32xf32>
    %23 = arith.mulf %19, %22 : vector<32x32xf32>
    %c0_20 = arith.constant 0 : index
    %c0_21 = arith.constant 0 : index
    %c0_22 = arith.constant 0 : index
    %24 = vector.load %arg9[%c0_20, %c0_21, %c0_22] : memref<1x32x32xf32, #tpu.memory_space<vmem>>, vector<1x32x32xf32>
    %25 = vector.shape_cast %24 : vector<1x32x32xf32> to vector<32x32xf32>
    %26 = vector.shape_cast %23 : vector<32x32xf32> to vector<1x32x32xf32>
    tpu.vector_store %arg9[%c0_20, %c0_21, %c0_22], %26 {strides = array<i32>} : memref<1x32x32xf32, #tpu.memory_space<vmem>>, vector<1x32x32xf32>,
    return
  }
  func.func @transform_0(%arg0: i32, %arg1: i32) -> (i32, i32, i32) {
    %c0_i32 = arith.constant 0 : i32
    %c0_i32_0 = arith.constant 0 : i32
    %c0_i32_1 = arith.constant 0 : i32
    return %arg0, %c0_i32, %c0_i32_0 : i32, i32, i32
  }
  func.func @transform_1(%arg0: i32, %arg1: i32) -> (i32, i32, i32) {
    %c0_i32 = arith.constant 0 : i32
    %c0_i32_0 = arith.constant 0 : i32
    %c0_i32_1 = arith.constant 0 : i32
    return %arg0, %c0_i32, %c0_i32_0 : i32, i32, i32
  }
  func.func @transform_2(%arg0: i32, %arg1: i32) -> (i32, i32, i32) {
    %c0_i32 = arith.constant 0 : i32
    %c0_i32_0 = arith.constant 0 : i32
    %c0_i32_1 = arith.constant 0 : i32
    return %arg0, %c0_i32, %c0_i32_0 : i32, i32, i32
  }
  func.func @transform_3(%arg0: i32, %arg1: i32) -> (i32, i32, i32) {
    %c0_i32 = arith.constant 0 : i32
    %c0_i32_0 = arith.constant 0 : i32
    %c0_i32_1 = arith.constant 0 : i32
    return %arg0, %c0_i32, %c0_i32_0 : i32, i32, i32
  }
  func.func @transform_4(%arg0: i32, %arg1: i32) -> (i32, i32, i32) {
    %c0_i32 = arith.constant 0 : i32
    %c0_i32_0 = arith.constant 0 : i32
    return %arg0, %arg1, %c0_i32 : i32, i32, i32
  }
  func.func @transform_5(%arg0: i32, %arg1: i32) -> (i32, i32, i32) {
    %c0_i32 = arith.constant 0 : i32
    %c0_i32_0 = arith.constant 0 : i32
    return %arg0, %arg1, %c0_i32 : i32, i32, i32
  }
  func.func @transform_6(%arg0: i32, %arg1: i32) -> (i32, i32, i32) {
    %c0_i32 = arith.constant 0 : i32
    %c0_i32_0 = arith.constant 0 : i32
    return %arg0, %c0_i32, %arg1 : i32, i32, i32
  }
  func.func @transform_7(%arg0: i32, %arg1: i32) -> (i32, i32, i32) {
    %c0_i32 = arith.constant 0 : i32
    %c0_i32_0 = arith.constant 0 : i32
    return %arg0, %c0_i32, %arg1 : i32, i32, i32
  }
}

</mosaic_0001>

<llo_original>
// kernel: lossx_forward.1
$region0: #{lossx_forward.1}
  #allocation0 [shape = 'u32[]', space=smem, size = 0x4, offset = 0x4, fixed_abs, tag = 'smem constant byte address 0x4 - core index']
  #allocation1 [shape = 'u32[144,128]{1,0:T(1,128)}', space=vmem, size = 0x12000, scoped, tag = 'internal scratch']
  #allocation2 [shape = 'bf16[32,4096]{1,0:T(16,128)(2,1)}', space=vmem, size = 0x40000, scoped, tag = 'scratch operand']
  #allocation3 [shape = 'bf16[32,4096]{1,0:T(16,128)(2,1)}', space=vmem, size = 0x40000, scoped, tag = 'scratch operand']
  %s0 = inlined_call_operand.vmem [shape: s32[2,32,4], index: 0, kind: input, shape index: {}]
  %s1 = inlined_call_operand.vmem [shape: f32[2,32,1], index: 1, kind: input, shape index: {}]
  %s2 = inlined_call_operand.vmem [shape: s32[2,32,4], index: 2, kind: input, shape index: {}]
  %s3 = inlined_call_operand.vmem [shape: f32[2,32,1], index: 3, kind: input, shape index: {}]
  %s4 = inlined_call_operand.vmem [shape: f32[2,32,4096], index: 4, kind: input, shape index: {}]
  %s5 = inlined_call_operand.vmem [shape: f32[2,32,4096], index: 5, kind: input, shape index: {}]
  %s6 = inlined_call_operand.vmem [shape: f32[2,32,32], index: 6, kind: output, shape index: {0}]
  %s7 = inlined_call_operand.vmem [shape: f32[2,32,32], index: 7, kind: output, shape index: {1}]
  %8 = xla_tuple %s6, %s7
  %s9 = sld [smem:[#allocation0]]
  $region69: #{lossx_forward.1} parent=0
    _
  %s11 = ssub.s32 1, %s9
  %s12 = scalar_select 0, %s11, %s9
  loop: start=0, step=1, limit=4
  $region2: #{lossx_forward.1} parent=0 // loop_pre_header
    _
  $region3: #{lossx_forward.1} parent=0 // loop_header
    %s14 = sphi 0, %s18
    %p15 = scmp.ge.s32.totalorder %s14, 4
    %s21 = sphi 0, %s33
    %s22 = sphi 0, %s29
    %s23 = sphi 0, %s21
    %s24 = sphi 0, %s22
    %s25 = sphi 0, %s23
    %s26 = sphi 0, %s24
    %s36 = sphi 0, %s38
    %s39 = sphi 0, %s36
    %s40 = sphi 0, %s39
    %s56 = sphi 0, %s40
    %s62 = sphi 0, %s64
    %s65 = sphi 0, %s62
    %s66 = sphi 0, %s65
    %s82 = sphi 0, %s66
    %s88 = sphi 0, %s90
    %s91 = sphi 0, %s88
    %s92 = sphi 0, %s91
    %s108 = sphi 0, %s92
    %s114 = sphi 0, %s116
    %s117 = sphi 0, %s114
    %s118 = sphi 0, %s117
    %s134 = sphi 0, %s118
    %s142 = sphi 0, %s144
    %s145 = sphi 0, %s142
    %s146 = sphi 0, %s145
    %s162 = sphi 0, %s146
    %s170 = sphi 0, %s172
    %s173 = sphi 0, %s170
    %s174 = sphi 0, %s173
    %s190 = sphi 0, %s174
    %s198 = sphi 0, %s200
    %s201 = sphi 0, %s198
    %s202 = sphi 0, %s201
    %s218 = sphi 0, %s202
    %s226 = sphi 0, %s228
    %s229 = sphi 0, %s226
    %s230 = sphi 0, %s229
    %s246 = sphi 0, %s230
  $region4: #{lossx_forward.1} parent=0 // loop_header_branch
    %17 = sbr.rel (%p15) target = $region8
  $region5: #{lossx_forward.1} parent=0 // loop_body
    %s19 = ssub.s32 %s14, 1
    %s20 = ssub.s32 %s14, 2
    %s27 = sadd.s32 1, %s22
    %p28 = scmp.ge.s32.totalorder %s27, 1
    %s29 = scalar_select %p28, 0, %s27
    %s30 = sadd.s32 1, %s21
    %s31 = scalar_select %p28, %s30, %s21
    %p32 = scmp.ge.s32.totalorder %s31, 2
    %s33 = scalar_select %p32, 0, %s31
    %s34 = ssub.s32 %s21, %s33
    %p35 = scmp.eq.s32.totalorder %s34, 0
    %s37 = sadd.s32 %s36, 1
    %s38 = scalar_select %p35, %s36, %s37
    %p41 = pneg %p35
    %p42 = scmp.eq.s32.totalorder %s14, 1
    %p43 = por %p41, %p42
    %p44 = scmp.ne.s32.totalorder %s36, %s39
    %p45 = scmp.eq.s32.totalorder %s14, 0
    %p46 = por %p44, %p45
    %p47 = scmp.ne.s32.totalorder %s36, %s39
    %p48 = scmp.eq.s32.totalorder %s19, 1
    %p49 = por %p47, %p48
    %p50 = scmp.ne.s32.totalorder %s39, %s40
    %p51 = scmp.eq.s32.totalorder %s19, 0
    %p52 = por %p50, %p51
    %p53 = scmp.ne.s32.totalorder %s39, %s40
    %p54 = scmp.eq.s32.totalorder %s20, 1
    %p55 = por %p53, %p54
    %p57 = scmp.ne.s32.totalorder %s40, %s56
    %p58 = scmp.eq.s32.totalorder %s20, 0
    %p59 = por %p57, %p58
    %s60 = ssub.s32 %s21, %s33
    %p61 = scmp.eq.s32.totalorder %s60, 0
    %s63 = sadd.s32 %s62, 1
    %s64 = scalar_select %p61, %s62, %s63
    %p67 = pneg %p61
    %p68 = scmp.eq.s32.totalorder %s14, 1
    %p69 = por %p67, %p68
    %p70 = scmp.ne.s32.totalorder %s62, %s65
    %p71 = scmp.eq.s32.totalorder %s14, 0
    %p72 = por %p70, %p71
    %p73 = scmp.ne.s32.totalorder %s62, %s65
    %p74 = scmp.eq.s32.totalorder %s19, 1
    %p75 = por %p73, %p74
    %p76 = scmp.ne.s32.totalorder %s65, %s66
    %p77 = scmp.eq.s32.totalorder %s19, 0
    %p78 = por %p76, %p77
    %p79 = scmp.ne.s32.totalorder %s65, %s66
    %p80 = scmp.eq.s32.totalorder %s20, 1
    %p81 = por %p79, %p80
    %p83 = scmp.ne.s32.totalorder %s66, %s82
    %p84 = scmp.eq.s32.totalorder %s20, 0
    %p85 = por %p83, %p84
    %s86 = ssub.s32 %s21, %s33
    %p87 = scmp.eq.s32.totalorder %s86, 0
    %s89 = sadd.s32 %s88, 1
    %s90 = scalar_select %p87, %s88, %s89
    %p93 = pneg %p87
    %p94 = scmp.eq.s32.totalorder %s14, 1
    %p95 = por %p93, %p94
    %p96 = scmp.ne.s32.totalorder %s88, %s91
    %p97 = scmp.eq.s32.totalorder %s14, 0
    %p98 = por %p96, %p97
    %p99 = scmp.ne.s32.totalorder %s88, %s91
    %p100 = scmp.eq.s32.totalorder %s19, 1
    %p101 = por %p99, %p100
    %p102 = scmp.ne.s32.totalorder %s91, %s92
    %p103 = scmp.eq.s32.totalorder %s19, 0
    %p104 = por %p102, %p103
    %p105 = scmp.ne.s32.totalorder %s91, %s92
    %p106 = scmp.eq.s32.totalorder %s20, 1
    %p107 = por %p105, %p106
    %p109 = scmp.ne.s32.totalorder %s92, %s108
    %p110 = scmp.eq.s32.totalorder %s20, 0
    %p111 = por %p109, %p110
    %s112 = ssub.s32 %s21, %s33
    %p113 = scmp.eq.s32.totalorder %s112, 0
    %s115 = sadd.s32 %s114, 1
    %s116 = scalar_select %p113, %s114, %s115
    %p119 = pneg %p113
    %p120 = scmp.eq.s32.totalorder %s14, 1
    %p121 = por %p119, %p120
    %p122 = scmp.ne.s32.totalorder %s114, %s117
    %p123 = scmp.eq.s32.totalorder %s14, 0
    %p124 = por %p122, %p123
    %p125 = scmp.ne.s32.totalorder %s114, %s117
    %p126 = scmp.eq.s32.totalorder %s19, 1
    %p127 = por %p125, %p126
    %p128 = scmp.ne.s32.totalorder %s117, %s118
    %p129 = scmp.eq.s32.totalorder %s19, 0
    %p130 = por %p128, %p129
    %p131 = scmp.ne.s32.totalorder %s117, %s118
    %p132 = scmp.eq.s32.totalorder %s20, 1
    %p133 = por %p131, %p132
    %p135 = scmp.ne.s32.totalorder %s118, %s134
    %p136 = scmp.eq.s32.totalorder %s20, 0
    %p137 = por %p135, %p136
    %s138 = ssub.s32 %s21, %s33
    %s139 = ssub.s32 %s22, %s29
    %s140 = sor.u32 %s138, %s139
    %p141 = scmp.eq.s32.totalorder %s140, 0
    %s143 = sadd.s32 %s142, 1
    %s144 = scalar_select %p141, %s142, %s143
    %p147 = pneg %p141
    %p148 = scmp.eq.s32.totalorder %s14, 1
    %p149 = por %p147, %p148
    %p150 = scmp.ne.s32.totalorder %s142, %s145
    %p151 = scmp.eq.s32.totalorder %s14, 0
    %p152 = por %p150, %p151
    %p153 = scmp.ne.s32.totalorder %s142, %s145
    %p154 = scmp.eq.s32.totalorder %s19, 1
    %p155 = por %p153, %p154
    %p156 = scmp.ne.s32.totalorder %s145, %s146
    %p157 = scmp.eq.s32.totalorder %s19, 0
    %p158 = por %p156, %p157
    %p159 = scmp.ne.s32.totalorder %s145, %s146
    %p160 = scmp.eq.s32.totalorder %s20, 1
    %p161 = por %p159, %p160
    %p163 = scmp.ne.s32.totalorder %s146, %s162
    %p164 = scmp.eq.s32.totalorder %s20, 0
    %p165 = por %p163, %p164
    %s166 = ssub.s32 %s21, %s33
    %s167 = ssub.s32 %s22, %s29
    %s168 = sor.u32 %s166, %s167
    %p169 = scmp.eq.s32.totalorder %s168, 0
    %s171 = sadd.s32 %s170, 1
    %s172 = scalar_select %p169, %s170, %s171
    %p175 = pneg %p169
    %p176 = scmp.eq.s32.totalorder %s14, 1
    %p177 = por %p175, %p176
    %p178 = scmp.ne.s32.totalorder %s170, %s173
    %p179 = scmp.eq.s32.totalorder %s14, 0
    %p180 = por %p178, %p179
    %p181 = scmp.ne.s32.totalorder %s170, %s173
    %p182 = scmp.eq.s32.totalorder %s19, 1
    %p183 = por %p181, %p182
    %p184 = scmp.ne.s32.totalorder %s173, %s174
    %p185 = scmp.eq.s32.totalorder %s19, 0
    %p186 = por %p184, %p185
    %p187 = scmp.ne.s32.totalorder %s173, %s174
    %p188 = scmp.eq.s32.totalorder %s20, 1
    %p189 = por %p187, %p188
    %p191 = scmp.ne.s32.totalorder %s174, %s190
    %p192 = scmp.eq.s32.totalorder %s20, 0
    %p193 = por %p191, %p192
    %s194 = ssub.s32 %s21, %s33
    %s195 = ssub.s32 %s22, %s29
    %s196 = sor.u32 %s194, %s195
    %p197 = scmp.eq.s32.totalorder %s196, 0
    %s199 = sadd.s32 %s198, 1
    %s200 = scalar_select %p197, %s198, %s199
    %p203 = pneg %p197
    %p204 = scmp.eq.s32.totalorder %s14, 1
    %p205 = por %p203, %p204
    %p206 = scmp.ne.s32.totalorder %s198, %s201
    %p207 = scmp.eq.s32.totalorder %s14, 0
    %p208 = por %p206, %p207
    %p209 = scmp.ne.s32.totalorder %s198, %s201
    %p210 = scmp.eq.s32.totalorder %s19, 1
    %p211 = por %p209, %p210
    %p212 = scmp.ne.s32.totalorder %s201, %s202
    %p213 = scmp.eq.s32.totalorder %s19, 0
    %p214 = por %p212, %p213
    %p215 = scmp.ne.s32.totalorder %s201, %s202
    %p216 = scmp.eq.s32.totalorder %s20, 1
    %p217 = por %p215, %p216
    %p219 = scmp.ne.s32.totalorder %s202, %s218
    %p220 = scmp.eq.s32.totalorder %s20, 0
    %p221 = por %p219, %p220
    %s222 = ssub.s32 %s21, %s33
    %s223 = ssub.s32 %s22, %s29
    %s224 = sor.u32 %s222, %s223
    %p225 = scmp.eq.s32.totalorder %s224, 0
    %s227 = sadd.s32 %s226, 1
    %s228 = scalar_select %p225, %s226, %s227
    %p231 = pneg %p225
    %p232 = scmp.eq.s32.totalorder %s14, 1
    %p233 = por %p231, %p232
    %p234 = scmp.ne.s32.totalorder %s226, %s229
    %p235 = scmp.eq.s32.totalorder %s14, 0
    %p236 = por %p234, %p235
    %p237 = scmp.ne.s32.totalorder %s226, %s229
    %p238 = scmp.eq.s32.totalorder %s19, 1
    %p239 = por %p237, %p238
    %p240 = scmp.ne.s32.totalorder %s229, %s230
    %p241 = scmp.eq.s32.totalorder %s19, 0
    %p242 = por %p240, %p241
    %p243 = scmp.ne.s32.totalorder %s229, %s230
    %p244 = scmp.eq.s32.totalorder %s20, 1
    %p245 = por %p243, %p244
    %p247 = scmp.ne.s32.totalorder %s230, %s246
    %p248 = scmp.eq.s32.totalorder %s20, 0
    %p249 = por %p247, %p248
    %p250 = scmp.le.s32.totalorder 1, %s14
    %p251 = scmp.lt.s32.totalorder %s14, 3
    %p252 = pnand %p250, %p251
    %p253 = pneg %p252
    // Predicated region
    $region9: #{lossx_forward.1} parent=5 // pred_check
      _
    $region10: #{lossx_forward.1} parent=5 // pred_check_branch
      %255 = sbr.rel (%p252) target = $region12
    $region11: #{lossx_forward.1} parent=5 // pred_region
      %s256 = ssub.s32 %s14, 1
    $region12: #{lossx_forward.1} parent=5 // pred_fallthru
      _
    %p257 = scmp.lt.s32.totalorder %s14, 2
    // Predicated region
    $region13: #{lossx_forward.1} parent=5 // pred_check
      %p258 = pneg %p257
    $region14: #{lossx_forward.1} parent=5 // pred_check_branch
      %260 = sbr.rel (%p258) target = $region16
    $region15: #{lossx_forward.1} parent=5 // pred_region
      // Predicated region
      $region17: #{lossx_forward.1} parent=15 // pred_check
        %p261 = pneg %p46
      $region18: #{lossx_forward.1} parent=15 // pred_check_branch
        %263 = sbr.rel (%p261) target = $region20
      $region19: #{lossx_forward.1} parent=15 // pred_region
        %p264 = scmp.lt.s32.totalorder %s21, 1
        %s265 = scalar_select %p264, %s21, 1
        %s266 = smul.addr %s265, 4
        %s267 = smul.addr %s266, 8
        %s268 = scalar_lea.vmem %s0, %s267
      $region20: #{lossx_forward.1} parent=15 // pred_fallthru
        _
      // Predicated region
      $region21: #{lossx_forward.1} parent=15 // pred_check
        %p269 = pneg %p72
      $region22: #{lossx_forward.1} parent=15 // pred_check_branch
        %271 = sbr.rel (%p269) target = $region24
      $region23: #{lossx_forward.1} parent=15 // pred_region
        %p272 = scmp.lt.s32.totalorder %s21, 1
        %s273 = scalar_select %p272, %s21, 1
        %s274 = smul.addr %s273, 4
        %s275 = smul.addr %s274, 8
        %s276 = scalar_lea.vmem %s1, %s275
      $region24: #{lossx_forward.1} parent=15 // pred_fallthru
        _
      // Predicated region
      $region25: #{lossx_forward.1} parent=15 // pred_check
        %p277 = pneg %p98
      $region26: #{lossx_forward.1} parent=15 // pred_check_branch
        %279 = sbr.rel (%p277) target = $region28
      $region27: #{lossx_forward.1} parent=15 // pred_region
        %p280 = scmp.lt.s32.totalorder %s21, 1
        %s281 = scalar_select %p280, %s21, 1
        %s282 = smul.addr %s281, 4
        %s283 = smul.addr %s282, 8
        %s284 = scalar_lea.vmem %s2, %s283
      $region28: #{lossx_forward.1} parent=15 // pred_fallthru
        _
      // Predicated region
      $region29: #{lossx_forward.1} parent=15 // pred_check
        %p285 = pneg %p124
      $region30: #{lossx_forward.1} parent=15 // pred_check_branch
        %287 = sbr.rel (%p285) target = $region32
      $region31: #{lossx_forward.1} parent=15 // pred_region
        %p288 = scmp.lt.s32.totalorder %s21, 1
        %s289 = scalar_select %p288, %s21, 1
        %s290 = smul.addr %s289, 4
        %s291 = smul.addr %s290, 8
        %s292 = scalar_lea.vmem %s3, %s291
      $region32: #{lossx_forward.1} parent=15 // pred_fallthru
        _
      // Predicated region
      $region33: #{lossx_forward.1} parent=15 // pred_check
        %p293 = pneg %p152
      $region34: #{lossx_forward.1} parent=15 // pred_check_branch
        %295 = sbr.rel (%p293) target = $region36
      $region35: #{lossx_forward.1} parent=15 // pred_region
        %s296 = smul.u32 4, %s22
        %p297 = scmp.lt.s32.totalorder %s21, 1
        %s298 = scalar_select %p297, %s21, 1
        %p299 = scmp.lt.s32.totalorder %s296, 3
        %s300 = scalar_select %p299, %s296, 3
        %s301 = smul.addr %s300, 32
        %s302 = smul.addr %s298, 128
        %s303 = sadd.s32 %s301, %s302
        %s304 = smul.addr %s303, 8
        %s305 = scalar_lea.vmem %s4, %s304
        %s306 = smul.u32 4, %s22
      $region36: #{lossx_forward.1} parent=15 // pred_fallthru
        _
      // Predicated region
      $region37: #{lossx_forward.1} parent=15 // pred_check
        %p307 = pneg %p180
      $region38: #{lossx_forward.1} parent=15 // pred_check_branch
        %309 = sbr.rel (%p307) target = $region40
      $region39: #{lossx_forward.1} parent=15 // pred_region
        %s310 = smul.u32 4, %s22
        %p311 = scmp.lt.s32.totalorder %s21, 1
        %s312 = scalar_select %p311, %s21, 1
        %p313 = scmp.lt.s32.totalorder %s310, 3
        %s314 = scalar_select %p313, %s310, 3
        %s315 = smul.addr %s314, 32
        %s316 = smul.addr %s312, 128
        %s317 = sadd.s32 %s315, %s316
        %s318 = smul.addr %s317, 8
        %s319 = scalar_lea.vmem %s5, %s318
        %s320 = smul.u32 4, %s22
      $region40: #{lossx_forward.1} parent=15 // pred_fallthru
        _
    $region16: #{lossx_forward.1} parent=5 // pred_fallthru
      _
    %p321 = scmp.le.s32.totalorder 1, %s14
    %p322 = scmp.lt.s32.totalorder %s14, 3
    %p323 = pnand %p321, %p322
    %p324 = pneg %p323
    // Predicated region
    $region41: #{lossx_forward.1} parent=5 // pred_check
      _
    $region42: #{lossx_forward.1} parent=5 // pred_check_branch
      %326 = sbr.rel (%p323) target = $region44
    $region43: #{lossx_forward.1} parent=5 // pred_region
      %s327 = ssub.s32 %s14, 1
      %p328 = scmp.lt.s32.totalorder %s23, 1
      %s329 = scalar_select %p328, %s23, 1
      %s330 = smul.addr %s329, 4
      %s331 = smul.addr %s330, 8
      %s332 = scalar_lea.vmem %s0, %s331
      %p333 = pneg %p52
      %p334 = pneg %p49
      %p335 = scmp.lt.s32.totalorder %s23, 1
      %s336 = scalar_select %p335, %s23, 1
      %s337 = smul.addr %s336, 4
      %s338 = smul.addr %s337, 8
      %s339 = scalar_lea.vmem %s1, %s338
      %p340 = pneg %p78
      %p341 = pneg %p75
      %p342 = scmp.lt.s32.totalorder %s23, 1
      %s343 = scalar_select %p342, %s23, 1
      %s344 = smul.addr %s343, 4
      %s345 = smul.addr %s344, 8
      %s346 = scalar_lea.vmem %s2, %s345
      %p347 = pneg %p104
      %p348 = pneg %p101
      %p349 = scmp.lt.s32.totalorder %s23, 1
      %s350 = scalar_select %p349, %s23, 1
      %s351 = smul.addr %s350, 4
      %s352 = smul.addr %s351, 8
      %s353 = scalar_lea.vmem %s3, %s352
      %p354 = pneg %p130
      %p355 = pneg %p127
      %s356 = smul.u32 4, %s24
      %p357 = scmp.lt.s32.totalorder %s23, 1
      %s358 = scalar_select %p357, %s23, 1
      %p359 = scmp.lt.s32.totalorder %s356, 3
      %s360 = scalar_select %p359, %s356, 3
      %s361 = smul.addr %s360, 32
      %s362 = smul.addr %s358, 128
      %s363 = sadd.s32 %s361, %s362
      %s364 = smul.addr %s363, 8
      %s365 = scalar_lea.vmem %s4, %s364
      %p366 = pneg %p158
      %p367 = pneg %p155
      %s368 = smul.u32 4, %s24
      %p369 = scmp.lt.s32.totalorder %s23, 1
      %s370 = scalar_select %p369, %s23, 1
      %p371 = scmp.lt.s32.totalorder %s368, 3
      %s372 = scalar_select %p371, %s368, 3
      %s373 = smul.addr %s372, 32
      %s374 = smul.addr %s370, 128
      %s375 = sadd.s32 %s373, %s374
      %s376 = smul.addr %s375, 8
      %s377 = scalar_lea.vmem %s5, %s376
      %p378 = pneg %p186
      %p379 = pneg %p183
      %p380 = pneg %p214
      %p381 = pneg %p211
      %p382 = scmp.lt.s32.totalorder %s23, 1
      %s383 = scalar_select %p382, %s23, 1
      %p384 = scmp.lt.s32.totalorder %s24, 0
      %s385 = scalar_select %p384, %s24, 0
      %s386 = smul.addr %s383, 4
      %s387 = sadd.s32 %s385, %s386
      %s388 = smul.addr %s387, 8
      %s389 = scalar_lea.vmem %s6, %s388
      %p390 = pneg %p242
      %p391 = pneg %p239
      %p392 = scmp.lt.s32.totalorder %s23, 1
      %s393 = scalar_select %p392, %s23, 1
      %p394 = scmp.lt.s32.totalorder %s24, 0
      %s395 = scalar_select %p394, %s24, 0
      %s396 = smul.addr %s393, 4
      %s397 = sadd.s32 %s395, %s396
      %s398 = smul.addr %s397, 8
      %s399 = scalar_lea.vmem %s7, %s398
      %p400 = scmp.lt.s32.totalorder %s23, 1
      %s401 = scalar_select %p400, %s23, 1
      %s402 = smul.addr %s401, 4
      %s403 = smul.addr %s402, 8
      %s404 = scalar_lea.vmem %s0, %s403
      %p405 = scmp.lt.s32.totalorder %s23, 1
      %s406 = scalar_select %p405, %s23, 1
      %s407 = smul.addr %s406, 4
      %s408 = smul.addr %s407, 8
      %s409 = scalar_lea.vmem %s1, %s408
      %p410 = scmp.lt.s32.totalorder %s23, 1
      %s411 = scalar_select %p410, %s23, 1
      %s412 = smul.addr %s411, 4
      %s413 = smul.addr %s412, 8
      %s414 = scalar_lea.vmem %s2, %s413
      %p415 = scmp.lt.s32.totalorder %s23, 1
      %s416 = scalar_select %p415, %s23, 1
      %s417 = smul.addr %s416, 4
      %s418 = smul.addr %s417, 8
      %s419 = scalar_lea.vmem %s3, %s418
      %s420 = smul.u32 4, %s24
      %p421 = scmp.lt.s32.totalorder %s23, 1
      %s422 = scalar_select %p421, %s23, 1
      %p423 = scmp.lt.s32.totalorder %s420, 3
      %s424 = scalar_select %p423, %s420, 3
      %s425 = smul.addr %s424, 32
      %s426 = smul.addr %s422, 128
      %s427 = sadd.s32 %s425, %s426
      %s428 = smul.addr %s427, 8
      %s429 = scalar_lea.vmem %s4, %s428
      %s430 = smul.u32 4, %s24
      %s431 = smul.u32 4, %s24
      %p432 = scmp.lt.s32.totalorder %s23, 1
      %s433 = scalar_select %p432, %s23, 1
      %p434 = scmp.lt.s32.totalorder %s431, 3
      %s435 = scalar_select %p434, %s431, 3
      %s436 = smul.addr %s435, 32
      %s437 = smul.addr %s433, 128
      %s438 = sadd.s32 %s436, %s437
      %s439 = smul.addr %s438, 8
      %s440 = scalar_lea.vmem %s5, %s439
      %s441 = smul.u32 4, %s24
      %p442 = scmp.lt.s32.totalorder %s23, 1
      %s443 = scalar_select %p442, %s23, 1
      %p444 = scmp.lt.s32.totalorder %s24, 0
      %s445 = scalar_select %p444, %s24, 0
      %s446 = smul.addr %s443, 4
      %s447 = sadd.s32 %s445, %s446
      %s448 = smul.addr %s447, 8
      %s449 = scalar_lea.vmem %s6, %s448
      %p450 = scmp.lt.s32.totalorder %s23, 1
      %s451 = scalar_select %p450, %s23, 1
      %p452 = scmp.lt.s32.totalorder %s24, 0
      %s453 = scalar_select %p452, %s24, 0
      %s454 = smul.addr %s451, 4
      %s455 = sadd.s32 %s453, %s454
      %s456 = smul.addr %s455, 8
      %s457 = scalar_lea.vmem %s7, %s456
      %p459 = scmp.eq.s32.totalorder %s24, 0
      // Predicated region
      $region45: #{lossx_forward.1} parent=43 // pred_check
        %p460 = pneg %p459
      $region46: #{lossx_forward.1} parent=43 // pred_check_branch
        %462 = sbr.rel (%p460) target = $region48
      $region47: #{lossx_forward.1} parent=43 // pred_region
        %v463 = vlaneseq
        %v464 = vand.u32 %v463, 127
        %v465 = vadd.s32 %v464, 128
        %v466 = vadd.s32 %v464, 256
        %v467 = vadd.s32 %v464, 384
        %v468 = vadd.s32 %v464, 512
        %v469 = vadd.s32 %v464, 640
        %v470 = vadd.s32 %v464, 768
        %v471 = vadd.s32 %v464, 896
        %v472 = vadd.s32 %v464, 1024
        %v473 = vadd.s32 %v464, 1152
        %v474 = vadd.s32 %v464, 1280
        %v475 = vadd.s32 %v464, 1408
        %v476 = vadd.s32 %v464, 1536
        %v477 = vadd.s32 %v464, 1664
        %v478 = vadd.s32 %v464, 1792
        %v479 = vadd.s32 %v464, 1920
        %v480 = vadd.s32 %v464, 2048
        %v481 = vadd.s32 %v464, 2176
        %v482 = vadd.s32 %v464, 2304
        %v483 = vadd.s32 %v464, 2432
        %v484 = vadd.s32 %v464, 2560
        %v485 = vadd.s32 %v464, 2688
        %v486 = vadd.s32 %v464, 2816
        %v487 = vadd.s32 %v464, 2944
        %v488 = vadd.s32 %v464, 3072
        %v489 = vadd.s32 %v464, 3200
        %v490 = vadd.s32 %v464, 3328
        %v491 = vadd.s32 %v464, 3456
        %v492 = vadd.s32 %v464, 3584
        %v493 = vadd.s32 %v464, 3712
        %v494 = vadd.s32 %v464, 3840
        %v495 = vadd.s32 %v464, 3968
        %v496 = vand.u32 %v464, 63
        %v497 = vand.u32 %v465, 63
        %v498 = vand.u32 %v466, 63
        %v499 = vand.u32 %v467, 63
        %v500 = vand.u32 %v468, 63
        %v501 = vand.u32 %v469, 63
        %v502 = vand.u32 %v470, 63
        %v503 = vand.u32 %v471, 63
        %v504 = vand.u32 %v472, 63
        %v505 = vand.u32 %v473, 63
        %v506 = vand.u32 %v474, 63
        %v507 = vand.u32 %v475, 63
        %v508 = vand.u32 %v476, 63
        %v509 = vand.u32 %v477, 63
        %v510 = vand.u32 %v478, 63
        %v511 = vand.u32 %v479, 63
        %v512 = vand.u32 %v480, 63
        %v513 = vand.u32 %v481, 63
        %v514 = vand.u32 %v482, 63
        %v515 = vand.u32 %v483, 63
        %v516 = vand.u32 %v484, 63
        %v517 = vand.u32 %v485, 63
        %v518 = vand.u32 %v486, 63
        %v519 = vand.u32 %v487, 63
        %v520 = vand.u32 %v488, 63
        %v521 = vand.u32 %v489, 63
        %v522 = vand.u32 %v490, 63
        %v523 = vand.u32 %v491, 63
        %v524 = vand.u32 %v492, 63
        %v525 = vand.u32 %v493, 63
        %v526 = vand.u32 %v494, 63
        %v527 = vand.u32 %v495, 63
        %v528 = vld [vmem:[%s404] sm:$0xff]
        %v529 = vld [vmem:[%s404 + $0x8] sm:$0xff]
        %v530 = vld [vmem:[%s404 + $0x10] sm:$0xff]
        %v531 = vld [vmem:[%s404 + $0x18] sm:$0xff]
        %532 = vset.pattern.permute.xlu0 0
        %533 = vperm.xlu0 %532, %v528
        %v534 = vpop.permute.xlu0 %533
        %535 = vset.pattern.permute.xlu0 0
        %536 = vperm.xlu0 %535, %v529
        %v537 = vpop.permute.xlu0 %536
        %538 = vset.pattern.permute.xlu0 0
        %539 = vperm.xlu0 %538, %v530
        %v540 = vpop.permute.xlu0 %539
        %541 = vset.pattern.permute.xlu0 0
        %542 = vperm.xlu0 %541, %v531
        %v543 = vpop.permute.xlu0 %542
        %vm544 = vcmp.ge.s32.totalorder %v464, %v534
        %vm545 = vcmp.ge.s32.totalorder %v465, %v534
        %vm546 = vcmp.ge.s32.totalorder %v466, %v534
        %vm547 = vcmp.ge.s32.totalorder %v467, %v534
        %vm548 = vcmp.ge.s32.totalorder %v468, %v534
        %vm549 = vcmp.ge.s32.totalorder %v469, %v534
        %vm550 = vcmp.ge.s32.totalorder %v470, %v534
        %vm551 = vcmp.ge.s32.totalorder %v471, %v534
        %vm552 = vcmp.ge.s32.totalorder %v472, %v534
        %vm553 = vcmp.ge.s32.totalorder %v473, %v534
        %vm554 = vcmp.ge.s32.totalorder %v474, %v534
        %vm555 = vcmp.ge.s32.totalorder %v475, %v534
        %vm556 = vcmp.ge.s32.totalorder %v476, %v534
        %vm557 = vcmp.ge.s32.totalorder %v477, %v534
        %vm558 = vcmp.ge.s32.totalorder %v478, %v534
        %vm559 = vcmp.ge.s32.totalorder %v479, %v534
        %vm560 = vcmp.ge.s32.totalorder %v480, %v534
        %vm561 = vcmp.ge.s32.totalorder %v481, %v534
        %vm562 = vcmp.ge.s32.totalorder %v482, %v534
        %vm563 = vcmp.ge.s32.totalorder %v483, %v534
        %vm564 = vcmp.ge.s32.totalorder %v484, %v534
        %vm565 = vcmp.ge.s32.totalorder %v485, %v534
        %vm566 = vcmp.ge.s32.totalorder %v486, %v534
        %vm567 = vcmp.ge.s32.totalorder %v487, %v534
        %vm568 = vcmp.ge.s32.totalorder %v488, %v534
        %vm569 = vcmp.ge.s32.totalorder %v489, %v534
        %vm570 = vcmp.ge.s32.totalorder %v490, %v534
        %vm571 = vcmp.ge.s32.totalorder %v491, %v534
        %vm572 = vcmp.ge.s32.totalorder %v492, %v534
        %vm573 = vcmp.ge.s32.totalorder %v493, %v534
        %vm574 = vcmp.ge.s32.totalorder %v494, %v534
        %vm575 = vcmp.ge.s32.totalorder %v495, %v534
        %vm576 = vcmp.ge.s32.totalorder %v464, %v537
        %vm577 = vcmp.ge.s32.totalorder %v465, %v537
        %vm578 = vcmp.ge.s32.totalorder %v466, %v537
        %vm579 = vcmp.ge.s32.totalorder %v467, %v537
        %vm580 = vcmp.ge.s32.totalorder %v468, %v537
        %vm581 = vcmp.ge.s32.totalorder %v469, %v537
        %vm582 = vcmp.ge.s32.totalorder %v470, %v537
        %vm583 = vcmp.ge.s32.totalorder %v471, %v537
        %vm584 = vcmp.ge.s32.totalorder %v472, %v537
        %vm585 = vcmp.ge.s32.totalorder %v473, %v537
        %vm586 = vcmp.ge.s32.totalorder %v474, %v537
        %vm587 = vcmp.ge.s32.totalorder %v475, %v537
        %vm588 = vcmp.ge.s32.totalorder %v476, %v537
        %vm589 = vcmp.ge.s32.totalorder %v477, %v537
        %vm590 = vcmp.ge.s32.totalorder %v478, %v537
        %vm591 = vcmp.ge.s32.totalorder %v479, %v537
        %vm592 = vcmp.ge.s32.totalorder %v480, %v537
        %vm593 = vcmp.ge.s32.totalorder %v481, %v537
        %vm594 = vcmp.ge.s32.totalorder %v482, %v537
        %vm595 = vcmp.ge.s32.totalorder %v483, %v537
        %vm596 = vcmp.ge.s32.totalorder %v484, %v537
        %vm597 = vcmp.ge.s32.totalorder %v485, %v537
        %vm598 = vcmp.ge.s32.totalorder %v486, %v537
        %vm599 = vcmp.ge.s32.totalorder %v487, %v537
        %vm600 = vcmp.ge.s32.totalorder %v488, %v537
        %vm601 = vcmp.ge.s32.totalorder %v489, %v537
        %vm602 = vcmp.ge.s32.totalorder %v490, %v537
        %vm603 = vcmp.ge.s32.totalorder %v491, %v537
        %vm604 = vcmp.ge.s32.totalorder %v492, %v537
        %vm605 = vcmp.ge.s32.totalorder %v493, %v537
        %vm606 = vcmp.ge.s32.totalorder %v494, %v537
        %vm607 = vcmp.ge.s32.totalorder %v495, %v537
        %vm608 = vcmp.ge.s32.totalorder %v464, %v540
        %vm609 = vcmp.ge.s32.totalorder %v465, %v540
        %vm610 = vcmp.ge.s32.totalorder %v466, %v540
        %vm611 = vcmp.ge.s32.totalorder %v467, %v540
        %vm612 = vcmp.ge.s32.totalorder %v468, %v540
        %vm613 = vcmp.ge.s32.totalorder %v469, %v540
        %vm614 = vcmp.ge.s32.totalorder %v470, %v540
        %vm615 = vcmp.ge.s32.totalorder %v471, %v540
        %vm616 = vcmp.ge.s32.totalorder %v472, %v540
        %vm617 = vcmp.ge.s32.totalorder %v473, %v540
        %vm618 = vcmp.ge.s32.totalorder %v474, %v540
        %vm619 = vcmp.ge.s32.totalorder %v475, %v540
        %vm620 = vcmp.ge.s32.totalorder %v476, %v540
        %vm621 = vcmp.ge.s32.totalorder %v477, %v540
        %vm622 = vcmp.ge.s32.totalorder %v478, %v540
        %vm623 = vcmp.ge.s32.totalorder %v479, %v540
        %vm624 = vcmp.ge.s32.totalorder %v480, %v540
        %vm625 = vcmp.ge.s32.totalorder %v481, %v540
        %vm626 = vcmp.ge.s32.totalorder %v482, %v540
        %vm627 = vcmp.ge.s32.totalorder %v483, %v540
        %vm628 = vcmp.ge.s32.totalorder %v484, %v540
        %vm629 = vcmp.ge.s32.totalorder %v485, %v540
        %vm630 = vcmp.ge.s32.totalorder %v486, %v540
        %vm631 = vcmp.ge.s32.totalorder %v487, %v540
        %vm632 = vcmp.ge.s32.totalorder %v488, %v540
        %vm633 = vcmp.ge.s32.totalorder %v489, %v540
        %vm634 = vcmp.ge.s32.totalorder %v490, %v540
        %vm635 = vcmp.ge.s32.totalorder %v491, %v540
        %vm636 = vcmp.ge.s32.totalorder %v492, %v540
        %vm637 = vcmp.ge.s32.totalorder %v493, %v540
        %vm638 = vcmp.ge.s32.totalorder %v494, %v540
        %vm639 = vcmp.ge.s32.totalorder %v495, %v540
        %vm640 = vcmp.ge.s32.totalorder %v464, %v543
        %vm641 = vcmp.ge.s32.totalorder %v465, %v543
        %vm642 = vcmp.ge.s32.totalorder %v466, %v543
        %vm643 = vcmp.ge.s32.totalorder %v467, %v543
        %vm644 = vcmp.ge.s32.totalorder %v468, %v543
        %vm645 = vcmp.ge.s32.totalorder %v469, %v543
        %vm646 = vcmp.ge.s32.totalorder %v470, %v543
        %vm647 = vcmp.ge.s32.totalorder %v471, %v543
        %vm648 = vcmp.ge.s32.totalorder %v472, %v543
        %vm649 = vcmp.ge.s32.totalorder %v473, %v543
        %vm650 = vcmp.ge.s32.totalorder %v474, %v543
        %vm651 = vcmp.ge.s32.totalorder %v475, %v543
        %vm652 = vcmp.ge.s32.totalorder %v476, %v543
        %vm653 = vcmp.ge.s32.totalorder %v477, %v543
        %vm654 = vcmp.ge.s32.totalorder %v478, %v543
        %vm655 = vcmp.ge.s32.totalorder %v479, %v543
        %vm656 = vcmp.ge.s32.totalorder %v480, %v543
        %vm657 = vcmp.ge.s32.totalorder %v481, %v543
        %vm658 = vcmp.ge.s32.totalorder %v482, %v543
        %vm659 = vcmp.ge.s32.totalorder %v483, %v543
        %vm660 = vcmp.ge.s32.totalorder %v484, %v543
        %vm661 = vcmp.ge.s32.totalorder %v485, %v543
        %vm662 = vcmp.ge.s32.totalorder %v486, %v543
        %vm663 = vcmp.ge.s32.totalorder %v487, %v543
        %vm664 = vcmp.ge.s32.totalorder %v488, %v543
        %vm665 = vcmp.ge.s32.totalorder %v489, %v543
        %vm666 = vcmp.ge.s32.totalorder %v490, %v543
        %vm667 = vcmp.ge.s32.totalorder %v491, %v543
        %vm668 = vcmp.ge.s32.totalorder %v492, %v543
        %vm669 = vcmp.ge.s32.totalorder %v493, %v543
        %vm670 = vcmp.ge.s32.totalorder %v494, %v543
        %vm671 = vcmp.ge.s32.totalorder %v495, %v543
        %672 = vset.pattern.permute.xlu0 1
        %673 = vperm.xlu0 %672, %v528
        %v674 = vpop.permute.xlu0 %673
        %675 = vset.pattern.permute.xlu0 1
        %676 = vperm.xlu0 %675, %v529
        %v677 = vpop.permute.xlu0 %676
        %678 = vset.pattern.permute.xlu0 1
        %679 = vperm.xlu0 %678, %v530
        %v680 = vpop.permute.xlu0 %679
        %681 = vset.pattern.permute.xlu0 1
        %682 = vperm.xlu0 %681, %v531
        %v683 = vpop.permute.xlu0 %682
        %vm684 = vcmp.lt.s32.totalorder %v464, %v674
        %vm685 = vcmp.lt.s32.totalorder %v465, %v674
        %vm686 = vcmp.lt.s32.totalorder %v466, %v674
        %vm687 = vcmp.lt.s32.totalorder %v467, %v674
        %vm688 = vcmp.lt.s32.totalorder %v468, %v674
        %vm689 = vcmp.lt.s32.totalorder %v469, %v674
        %vm690 = vcmp.lt.s32.totalorder %v470, %v674
        %vm691 = vcmp.lt.s32.totalorder %v471, %v674
        %vm692 = vcmp.lt.s32.totalorder %v472, %v674
        %vm693 = vcmp.lt.s32.totalorder %v473, %v674
        %vm694 = vcmp.lt.s32.totalorder %v474, %v674
        %vm695 = vcmp.lt.s32.totalorder %v475, %v674
        %vm696 = vcmp.lt.s32.totalorder %v476, %v674
        %vm697 = vcmp.lt.s32.totalorder %v477, %v674
        %vm698 = vcmp.lt.s32.totalorder %v478, %v674
        %vm699 = vcmp.lt.s32.totalorder %v479, %v674
        %vm700 = vcmp.lt.s32.totalorder %v480, %v674
        %vm701 = vcmp.lt.s32.totalorder %v481, %v674
        %vm702 = vcmp.lt.s32.totalorder %v482, %v674
        %vm703 = vcmp.lt.s32.totalorder %v483, %v674
        %vm704 = vcmp.lt.s32.totalorder %v484, %v674
        %vm705 = vcmp.lt.s32.totalorder %v485, %v674
        %vm706 = vcmp.lt.s32.totalorder %v486, %v674
        %vm707 = vcmp.lt.s32.totalorder %v487, %v674
        %vm708 = vcmp.lt.s32.totalorder %v488, %v674
        %vm709 = vcmp.lt.s32.totalorder %v489, %v674
        %vm710 = vcmp.lt.s32.totalorder %v490, %v674
        %vm711 = vcmp.lt.s32.totalorder %v491, %v674
        %vm712 = vcmp.lt.s32.totalorder %v492, %v674
        %vm713 = vcmp.lt.s32.totalorder %v493, %v674
        %vm714 = vcmp.lt.s32.totalorder %v494, %v674
        %vm715 = vcmp.lt.s32.totalorder %v495, %v674
        %vm716 = vcmp.lt.s32.totalorder %v464, %v677
        %vm717 = vcmp.lt.s32.totalorder %v465, %v677
        %vm718 = vcmp.lt.s32.totalorder %v466, %v677
        %vm719 = vcmp.lt.s32.totalorder %v467, %v677
        %vm720 = vcmp.lt.s32.totalorder %v468, %v677
        %vm721 = vcmp.lt.s32.totalorder %v469, %v677
        %vm722 = vcmp.lt.s32.totalorder %v470, %v677
        %vm723 = vcmp.lt.s32.totalorder %v471, %v677
        %vm724 = vcmp.lt.s32.totalorder %v472, %v677
        %vm725 = vcmp.lt.s32.totalorder %v473, %v677
        %vm726 = vcmp.lt.s32.totalorder %v474, %v677
        %vm727 = vcmp.lt.s32.totalorder %v475, %v677
        %vm728 = vcmp.lt.s32.totalorder %v476, %v677
        %vm729 = vcmp.lt.s32.totalorder %v477, %v677
        %vm730 = vcmp.lt.s32.totalorder %v478, %v677
        %vm731 = vcmp.lt.s32.totalorder %v479, %v677
        %vm732 = vcmp.lt.s32.totalorder %v480, %v677
        %vm733 = vcmp.lt.s32.totalorder %v481, %v677
        %vm734 = vcmp.lt.s32.totalorder %v482, %v677
        %vm735 = vcmp.lt.s32.totalorder %v483, %v677
        %vm736 = vcmp.lt.s32.totalorder %v484, %v677
        %vm737 = vcmp.lt.s32.totalorder %v485, %v677
        %vm738 = vcmp.lt.s32.totalorder %v486, %v677
        %vm739 = vcmp.lt.s32.totalorder %v487, %v677
        %vm740 = vcmp.lt.s32.totalorder %v488, %v677
        %vm741 = vcmp.lt.s32.totalorder %v489, %v677
        %vm742 = vcmp.lt.s32.totalorder %v490, %v677
        %vm743 = vcmp.lt.s32.totalorder %v491, %v677
        %vm744 = vcmp.lt.s32.totalorder %v492, %v677
        %vm745 = vcmp.lt.s32.totalorder %v493, %v677
        %vm746 = vcmp.lt.s32.totalorder %v494, %v677
        %vm747 = vcmp.lt.s32.totalorder %v495, %v677
        %vm748 = vcmp.lt.s32.totalorder %v464, %v680
        %vm749 = vcmp.lt.s32.totalorder %v465, %v680
        %vm750 = vcmp.lt.s32.totalorder %v466, %v680
        %vm751 = vcmp.lt.s32.totalorder %v467, %v680
        %vm752 = vcmp.lt.s32.totalorder %v468, %v680
        %vm753 = vcmp.lt.s32.totalorder %v469, %v680
        %vm754 = vcmp.lt.s32.totalorder %v470, %v680
        %vm755 = vcmp.lt.s32.totalorder %v471, %v680
        %vm756 = vcmp.lt.s32.totalorder %v472, %v680
        %vm757 = vcmp.lt.s32.totalorder %v473, %v680
        %vm758 = vcmp.lt.s32.totalorder %v474, %v680
        %vm759 = vcmp.lt.s32.totalorder %v475, %v680
        %vm760 = vcmp.lt.s32.totalorder %v476, %v680
        %vm761 = vcmp.lt.s32.totalorder %v477, %v680
        %vm762 = vcmp.lt.s32.totalorder %v478, %v680
        %vm763 = vcmp.lt.s32.totalorder %v479, %v680
        %vm764 = vcmp.lt.s32.totalorder %v480, %v680
        %vm765 = vcmp.lt.s32.totalorder %v481, %v680
        %vm766 = vcmp.lt.s32.totalorder %v482, %v680
        %vm767 = vcmp.lt.s32.totalorder %v483, %v680
        %vm768 = vcmp.lt.s32.totalorder %v484, %v680
        %vm769 = vcmp.lt.s32.totalorder %v485, %v680
        %vm770 = vcmp.lt.s32.totalorder %v486, %v680
        %vm771 = vcmp.lt.s32.totalorder %v487, %v680
        %vm772 = vcmp.lt.s32.totalorder %v488, %v680
        %vm773 = vcmp.lt.s32.totalorder %v489, %v680
        %vm774 = vcmp.lt.s32.totalorder %v490, %v680
        %vm775 = vcmp.lt.s32.totalorder %v491, %v680
        %vm776 = vcmp.lt.s32.totalorder %v492, %v680
        %vm777 = vcmp.lt.s32.totalorder %v493, %v680
        %vm778 = vcmp.lt.s32.totalorder %v494, %v680
        %vm779 = vcmp.lt.s32.totalorder %v495, %v680
        %vm780 = vcmp.lt.s32.totalorder %v464, %v683
        %vm781 = vcmp.lt.s32.totalorder %v465, %v683
        %vm782 = vcmp.lt.s32.totalorder %v466, %v683
        %vm783 = vcmp.lt.s32.totalorder %v467, %v683
        %vm784 = vcmp.lt.s32.totalorder %v468, %v683
        %vm785 = vcmp.lt.s32.totalorder %v469, %v683
        %vm786 = vcmp.lt.s32.totalorder %v470, %v683
        %vm787 = vcmp.lt.s32.totalorder %v471, %v683
        %vm788 = vcmp.lt.s32.totalorder %v472, %v683
        %vm789 = vcmp.lt.s32.totalorder %v473, %v683
        %vm790 = vcmp.lt.s32.totalorder %v474, %v683
        %vm791 = vcmp.lt.s32.totalorder %v475, %v683
        %vm792 = vcmp.lt.s32.totalorder %v476, %v683
        %vm793 = vcmp.lt.s32.totalorder %v477, %v683
        %vm794 = vcmp.lt.s32.totalorder %v478, %v683
        %vm795 = vcmp.lt.s32.totalorder %v479, %v683
        %vm796 = vcmp.lt.s32.totalorder %v480, %v683
        %vm797 = vcmp.lt.s32.totalorder %v481, %v683
        %vm798 = vcmp.lt.s32.totalorder %v482, %v683
        %vm799 = vcmp.lt.s32.totalorder %v483, %v683
        %vm800 = vcmp.lt.s32.totalorder %v484, %v683
        %vm801 = vcmp.lt.s32.totalorder %v485, %v683
        %vm802 = vcmp.lt.s32.totalorder %v486, %v683
        %vm803 = vcmp.lt.s32.totalorder %v487, %v683
        %vm804 = vcmp.lt.s32.totalorder %v488, %v683
        %vm805 = vcmp.lt.s32.totalorder %v489, %v683
        %vm806 = vcmp.lt.s32.totalorder %v490, %v683
        %vm807 = vcmp.lt.s32.totalorder %v491, %v683
        %vm808 = vcmp.lt.s32.totalorder %v492, %v683
        %vm809 = vcmp.lt.s32.totalorder %v493, %v683
        %vm810 = vcmp.lt.s32.totalorder %v494, %v683
        %vm811 = vcmp.lt.s32.totalorder %v495, %v683
        %vm812 = vmand %vm544, %vm684
        %vm813 = vmand %vm545, %vm685
        %vm814 = vmand %vm546, %vm686
        %vm815 = vmand %vm547, %vm687
        %vm816 = vmand %vm548, %vm688
        %vm817 = vmand %vm549, %vm689
        %vm818 = vmand %vm550, %vm690
        %vm819 = vmand %vm551, %vm691
        %vm820 = vmand %vm552, %vm692
        %vm821 = vmand %vm553, %vm693
        %vm822 = vmand %vm554, %vm694
        %vm823 = vmand %vm555, %vm695
        %vm824 = vmand %vm556, %vm696
        %vm825 = vmand %vm557, %vm697
        %vm826 = vmand %vm558, %vm698
        %vm827 = vmand %vm559, %vm699
        %vm828 = vmand %vm560, %vm700
        %vm829 = vmand %vm561, %vm701
        %vm830 = vmand %vm562, %vm702
        %vm831 = vmand %vm563, %vm703
        %vm832 = vmand %vm564, %vm704
        %vm833 = vmand %vm565, %vm705
        %vm834 = vmand %vm566, %vm706
        %vm835 = vmand %vm567, %vm707
        %vm836 = vmand %vm568, %vm708
        %vm837 = vmand %vm569, %vm709
        %vm838 = vmand %vm570, %vm710
        %vm839 = vmand %vm571, %vm711
        %vm840 = vmand %vm572, %vm712
        %vm841 = vmand %vm573, %vm713
        %vm842 = vmand %vm574, %vm714
        %vm843 = vmand %vm575, %vm715
        %vm844 = vmand %vm576, %vm716
        %vm845 = vmand %vm577, %vm717
        %vm846 = vmand %vm578, %vm718
        %vm847 = vmand %vm579, %vm719
        %vm848 = vmand %vm580, %vm720
        %vm849 = vmand %vm581, %vm721
        %vm850 = vmand %vm582, %vm722
        %vm851 = vmand %vm583, %vm723
        %vm852 = vmand %vm584, %vm724
        %vm853 = vmand %vm585, %vm725
        %vm854 = vmand %vm586, %vm726
        %vm855 = vmand %vm587, %vm727
        %vm856 = vmand %vm588, %vm728
        %vm857 = vmand %vm589, %vm729
        %vm858 = vmand %vm590, %vm730
        %vm859 = vmand %vm591, %vm731
        %vm860 = vmand %vm592, %vm732
        %vm861 = vmand %vm593, %vm733
        %vm862 = vmand %vm594, %vm734
        %vm863 = vmand %vm595, %vm735
        %vm864 = vmand %vm596, %vm736
        %vm865 = vmand %vm597, %vm737
        %vm866 = vmand %vm598, %vm738
        %vm867 = vmand %vm599, %vm739
        %vm868 = vmand %vm600, %vm740
        %vm869 = vmand %vm601, %vm741
        %vm870 = vmand %vm602, %vm742
        %vm871 = vmand %vm603, %vm743
        %vm872 = vmand %vm604, %vm744
        %vm873 = vmand %vm605, %vm745
        %vm874 = vmand %vm606, %vm746
        %vm875 = vmand %vm607, %vm747
        %vm876 = vmand %vm608, %vm748
        %vm877 = vmand %vm609, %vm749
        %vm878 = vmand %vm610, %vm750
        %vm879 = vmand %vm611, %vm751
        %vm880 = vmand %vm612, %vm752
        %vm881 = vmand %vm613, %vm753
        %vm882 = vmand %vm614, %vm754
        %vm883 = vmand %vm615, %vm755
        %vm884 = vmand %vm616, %vm756
        %vm885 = vmand %vm617, %vm757
        %vm886 = vmand %vm618, %vm758
        %vm887 = vmand %vm619, %vm759
        %vm888 = vmand %vm620, %vm760
        %vm889 = vmand %vm621, %vm761
        %vm890 = vmand %vm622, %vm762
        %vm891 = vmand %vm623, %vm763
        %vm892 = vmand %vm624, %vm764
        %vm893 = vmand %vm625, %vm765
        %vm894 = vmand %vm626, %vm766
        %vm895 = vmand %vm627, %vm767
        %vm896 = vmand %vm628, %vm768
        %vm897 = vmand %vm629, %vm769
        %vm898 = vmand %vm630, %vm770
        %vm899 = vmand %vm631, %vm771
        %vm900 = vmand %vm632, %vm772
        %vm901 = vmand %vm633, %vm773
        %vm902 = vmand %vm634, %vm774
        %vm903 = vmand %vm635, %vm775
        %vm904 = vmand %vm636, %vm776
        %vm905 = vmand %vm637, %vm777
        %vm906 = vmand %vm638, %vm778
        %vm907 = vmand %vm639, %vm779
        %vm908 = vmand %vm640, %vm780
        %vm909 = vmand %vm641, %vm781
        %vm910 = vmand %vm642, %vm782
        %vm911 = vmand %vm643, %vm783
        %vm912 = vmand %vm644, %vm784
        %vm913 = vmand %vm645, %vm785
        %vm914 = vmand %vm646, %vm786
        %vm915 = vmand %vm647, %vm787
        %vm916 = vmand %vm648, %vm788
        %vm917 = vmand %vm649, %vm789
        %vm918 = vmand %vm650, %vm790
        %vm919 = vmand %vm651, %vm791
        %vm920 = vmand %vm652, %vm792
        %vm921 = vmand %vm653, %vm793
        %vm922 = vmand %vm654, %vm794
        %vm923 = vmand %vm655, %vm795
        %vm924 = vmand %vm656, %vm796
        %vm925 = vmand %vm657, %vm797
        %vm926 = vmand %vm658, %vm798
        %vm927 = vmand %vm659, %vm799
        %vm928 = vmand %vm660, %vm800
        %vm929 = vmand %vm661, %vm801
        %vm930 = vmand %vm662, %vm802
        %vm931 = vmand %vm663, %vm803
        %vm932 = vmand %vm664, %vm804
        %vm933 = vmand %vm665, %vm805
        %vm934 = vmand %vm666, %vm806
        %vm935 = vmand %vm667, %vm807
        %vm936 = vmand %vm668, %vm808
        %vm937 = vmand %vm669, %vm809
        %vm938 = vmand %vm670, %vm810
        %vm939 = vmand %vm671, %vm811
        %940 = vset.pattern.permute.xlu0 2
        %941 = vperm.xlu0 %940, %v528
        %v942 = vpop.permute.xlu0 %941
        %943 = vset.pattern.permute.xlu0 2
        %944 = vperm.xlu0 %943, %v529
        %v945 = vpop.permute.xlu0 %944
        %946 = vset.pattern.permute.xlu0 2
        %947 = vperm.xlu0 %946, %v530
        %v948 = vpop.permute.xlu0 %947
        %949 = vset.pattern.permute.xlu0 2
        %950 = vperm.xlu0 %949, %v531
        %v951 = vpop.permute.xlu0 %950
        %vm952 = vcmp.ge.s32.totalorder %v496, %v942
        %vm953 = vcmp.ge.s32.totalorder %v497, %v942
        %vm954 = vcmp.ge.s32.totalorder %v498, %v942
        %vm955 = vcmp.ge.s32.totalorder %v499, %v942
        %vm956 = vcmp.ge.s32.totalorder %v500, %v942
        %vm957 = vcmp.ge.s32.totalorder %v501, %v942
        %vm958 = vcmp.ge.s32.totalorder %v502, %v942
        %vm959 = vcmp.ge.s32.totalorder %v503, %v942
        %vm960 = vcmp.ge.s32.totalorder %v504, %v942
        %vm961 = vcmp.ge.s32.totalorder %v505, %v942
        %vm962 = vcmp.ge.s32.totalorder %v506, %v942
        %vm963 = vcmp.ge.s32.totalorder %v507, %v942
        %vm964 = vcmp.ge.s32.totalorder %v508, %v942
        %vm965 = vcmp.ge.s32.totalorder %v509, %v942
        %vm966 = vcmp.ge.s32.totalorder %v510, %v942
        %vm967 = vcmp.ge.s32.totalorder %v511, %v942
        %vm968 = vcmp.ge.s32.totalorder %v512, %v942
        %vm969 = vcmp.ge.s32.totalorder %v513, %v942
        %vm970 = vcmp.ge.s32.totalorder %v514, %v942
        %vm971 = vcmp.ge.s32.totalorder %v515, %v942
        %vm972 = vcmp.ge.s32.totalorder %v516, %v942
        %vm973 = vcmp.ge.s32.totalorder %v517, %v942
        %vm974 = vcmp.ge.s32.totalorder %v518, %v942
        %vm975 = vcmp.ge.s32.totalorder %v519, %v942
        %vm976 = vcmp.ge.s32.totalorder %v520, %v942
        %vm977 = vcmp.ge.s32.totalorder %v521, %v942
        %vm978 = vcmp.ge.s32.totalorder %v522, %v942
        %vm979 = vcmp.ge.s32.totalorder %v523, %v942
        %vm980 = vcmp.ge.s32.totalorder %v524, %v942
        %vm981 = vcmp.ge.s32.totalorder %v525, %v942
        %vm982 = vcmp.ge.s32.totalorder %v526, %v942
        %vm983 = vcmp.ge.s32.totalorder %v527, %v942
        %vm984 = vcmp.ge.s32.totalorder %v496, %v945
        %vm985 = vcmp.ge.s32.totalorder %v497, %v945
        %vm986 = vcmp.ge.s32.totalorder %v498, %v945
        %vm987 = vcmp.ge.s32.totalorder %v499, %v945
        %vm988 = vcmp.ge.s32.totalorder %v500, %v945
        %vm989 = vcmp.ge.s32.totalorder %v501, %v945
        %vm990 = vcmp.ge.s32.totalorder %v502, %v945
        %vm991 = vcmp.ge.s32.totalorder %v503, %v945
        %vm992 = vcmp.ge.s32.totalorder %v504, %v945
        %vm993 = vcmp.ge.s32.totalorder %v505, %v945
        %vm994 = vcmp.ge.s32.totalorder %v506, %v945
        %vm995 = vcmp.ge.s32.totalorder %v507, %v945
        %vm996 = vcmp.ge.s32.totalorder %v508, %v945
        %vm997 = vcmp.ge.s32.totalorder %v509, %v945
        %vm998 = vcmp.ge.s32.totalorder %v510, %v945
        %vm999 = vcmp.ge.s32.totalorder %v511, %v945
        %vm1000 = vcmp.ge.s32.totalorder %v512, %v945
        %vm1001 = vcmp.ge.s32.totalorder %v513, %v945
        %vm1002 = vcmp.ge.s32.totalorder %v514, %v945
        %vm1003 = vcmp.ge.s32.totalorder %v515, %v945
        %vm1004 = vcmp.ge.s32.totalorder %v516, %v945
        %vm1005 = vcmp.ge.s32.totalorder %v517, %v945
        %vm1006 = vcmp.ge.s32.totalorder %v518, %v945
        %vm1007 = vcmp.ge.s32.totalorder %v519, %v945
        %vm1008 = vcmp.ge.s32.totalorder %v520, %v945
        %vm1009 = vcmp.ge.s32.totalorder %v521, %v945
        %vm1010 = vcmp.ge.s32.totalorder %v522, %v945
        %vm1011 = vcmp.ge.s32.totalorder %v523, %v945
        %vm1012 = vcmp.ge.s32.totalorder %v524, %v945
        %vm1013 = vcmp.ge.s32.totalorder %v525, %v945
        %vm1014 = vcmp.ge.s32.totalorder %v526, %v945
        %vm1015 = vcmp.ge.s32.totalorder %v527, %v945
        %vm1016 = vcmp.ge.s32.totalorder %v496, %v948
        %vm1017 = vcmp.ge.s32.totalorder %v497, %v948
        %vm1018 = vcmp.ge.s32.totalorder %v498, %v948
        %vm1019 = vcmp.ge.s32.totalorder %v499, %v948
        %vm1020 = vcmp.ge.s32.totalorder %v500, %v948
        %vm1021 = vcmp.ge.s32.totalorder %v501, %v948
        %vm1022 = vcmp.ge.s32.totalorder %v502, %v948
        %vm1023 = vcmp.ge.s32.totalorder %v503, %v948
        %vm1024 = vcmp.ge.s32.totalorder %v504, %v948
        %vm1025 = vcmp.ge.s32.totalorder %v505, %v948
        %vm1026 = vcmp.ge.s32.totalorder %v506, %v948
        %vm1027 = vcmp.ge.s32.totalorder %v507, %v948
        %vm1028 = vcmp.ge.s32.totalorder %v508, %v948
        %vm1029 = vcmp.ge.s32.totalorder %v509, %v948
        %vm1030 = vcmp.ge.s32.totalorder %v510, %v948
        %vm1031 = vcmp.ge.s32.totalorder %v511, %v948
        %vm1032 = vcmp.ge.s32.totalorder %v512, %v948
        %vm1033 = vcmp.ge.s32.totalorder %v513, %v948
        %vm1034 = vcmp.ge.s32.totalorder %v514, %v948
        %vm1035 = vcmp.ge.s32.totalorder %v515, %v948
        %vm1036 = vcmp.ge.s32.totalorder %v516, %v948
        %vm1037 = vcmp.ge.s32.totalorder %v517, %v948
        %vm1038 = vcmp.ge.s32.totalorder %v518, %v948
        %vm1039 = vcmp.ge.s32.totalorder %v519, %v948
        %vm1040 = vcmp.ge.s32.totalorder %v520, %v948
        %vm1041 = vcmp.ge.s32.totalorder %v521, %v948
        %vm1042 = vcmp.ge.s32.totalorder %v522, %v948
        %vm1043 = vcmp.ge.s32.totalorder %v523, %v948
        %vm1044 = vcmp.ge.s32.totalorder %v524, %v948
        %vm1045 = vcmp.ge.s32.totalorder %v525, %v948
        %vm1046 = vcmp.ge.s32.totalorder %v526, %v948
        %vm1047 = vcmp.ge.s32.totalorder %v527, %v948
        %vm1048 = vcmp.ge.s32.totalorder %v496, %v951
        %vm1049 = vcmp.ge.s32.totalorder %v497, %v951
        %vm1050 = vcmp.ge.s32.totalorder %v498, %v951
        %vm1051 = vcmp.ge.s32.totalorder %v499, %v951
        %vm1052 = vcmp.ge.s32.totalorder %v500, %v951
        %vm1053 = vcmp.ge.s32.totalorder %v501, %v951
        %vm1054 = vcmp.ge.s32.totalorder %v502, %v951
        %vm1055 = vcmp.ge.s32.totalorder %v503, %v951
        %vm1056 = vcmp.ge.s32.totalorder %v504, %v951
        %vm1057 = vcmp.ge.s32.totalorder %v505, %v951
        %vm1058 = vcmp.ge.s32.totalorder %v506, %v951
        %vm1059 = vcmp.ge.s32.totalorder %v507, %v951
        %vm1060 = vcmp.ge.s32.totalorder %v508, %v951
        %vm1061 = vcmp.ge.s32.totalorder %v509, %v951
        %vm1062 = vcmp.ge.s32.totalorder %v510, %v951
        %vm1063 = vcmp.ge.s32.totalorder %v511, %v951
        %vm1064 = vcmp.ge.s32.totalorder %v512, %v951
        %vm1065 = vcmp.ge.s32.totalorder %v513, %v951
        %vm1066 = vcmp.ge.s32.totalorder %v514, %v951
        %vm1067 = vcmp.ge.s32.totalorder %v515, %v951
        %vm1068 = vcmp.ge.s32.totalorder %v516, %v951
        %vm1069 = vcmp.ge.s32.totalorder %v517, %v951
        %vm1070 = vcmp.ge.s32.totalorder %v518, %v951
        %vm1071 = vcmp.ge.s32.totalorder %v519, %v951
        %vm1072 = vcmp.ge.s32.totalorder %v520, %v951
        %vm1073 = vcmp.ge.s32.totalorder %v521, %v951
        %vm1074 = vcmp.ge.s32.totalorder %v522, %v951
        %vm1075 = vcmp.ge.s32.totalorder %v523, %v951
        %vm1076 = vcmp.ge.s32.totalorder %v524, %v951
        %vm1077 = vcmp.ge.s32.totalorder %v525, %v951
        %vm1078 = vcmp.ge.s32.totalorder %v526, %v951
        %vm1079 = vcmp.ge.s32.totalorder %v527, %v951
        %vm1080 = vmand %vm812, %vm952
        %vm1081 = vmand %vm813, %vm953
        %vm1082 = vmand %vm814, %vm954
        %vm1083 = vmand %vm815, %vm955
        %vm1084 = vmand %vm816, %vm956
        %vm1085 = vmand %vm817, %vm957
        %vm1086 = vmand %vm818, %vm958
        %vm1087 = vmand %vm819, %vm959
        %vm1088 = vmand %vm820, %vm960
        %vm1089 = vmand %vm821, %vm961
        %vm1090 = vmand %vm822, %vm962
        %vm1091 = vmand %vm823, %vm963
        %vm1092 = vmand %vm824, %vm964
        %vm1093 = vmand %vm825, %vm965
        %vm1094 = vmand %vm826, %vm966
        %vm1095 = vmand %vm827, %vm967
        %vm1096 = vmand %vm828, %vm968
        %vm1097 = vmand %vm829, %vm969
        %vm1098 = vmand %vm830, %vm970
        %vm1099 = vmand %vm831, %vm971
        %vm1100 = vmand %vm832, %vm972
        %vm1101 = vmand %vm833, %vm973
        %vm1102 = vmand %vm834, %vm974
        %vm1103 = vmand %vm835, %vm975
        %vm1104 = vmand %vm836, %vm976
        %vm1105 = vmand %vm837, %vm977
        %vm1106 = vmand %vm838, %vm978
        %vm1107 = vmand %vm839, %vm979
        %vm1108 = vmand %vm840, %vm980
        %vm1109 = vmand %vm841, %vm981
        %vm1110 = vmand %vm842, %vm982
        %vm1111 = vmand %vm843, %vm983
        %vm1112 = vmand %vm844, %vm984
        %vm1113 = vmand %vm845, %vm985
        %vm1114 = vmand %vm846, %vm986
        %vm1115 = vmand %vm847, %vm987
        %vm1116 = vmand %vm848, %vm988
        %vm1117 = vmand %vm849, %vm989
        %vm1118 = vmand %vm850, %vm990
        %vm1119 = vmand %vm851, %vm991
        %vm1120 = vmand %vm852, %vm992
        %vm1121 = vmand %vm853, %vm993
        %vm1122 = vmand %vm854, %vm994
        %vm1123 = vmand %vm855, %vm995
        %vm1124 = vmand %vm856, %vm996
        %vm1125 = vmand %vm857, %vm997
        %vm1126 = vmand %vm858, %vm998
        %vm1127 = vmand %vm859, %vm999
        %vm1128 = vmand %vm860, %vm1000
        %vm1129 = vmand %vm861, %vm1001
        %vm1130 = vmand %vm862, %vm1002
        %vm1131 = vmand %vm863, %vm1003
        %vm1132 = vmand %vm864, %vm1004
        %vm1133 = vmand %vm865, %vm1005
        %vm1134 = vmand %vm866, %vm1006
        %vm1135 = vmand %vm867, %vm1007
        %vm1136 = vmand %vm868, %vm1008
        %vm1137 = vmand %vm869, %vm1009
        %vm1138 = vmand %vm870, %vm1010
        %vm1139 = vmand %vm871, %vm1011
        %vm1140 = vmand %vm872, %vm1012
        %vm1141 = vmand %vm873, %vm1013
        %vm1142 = vmand %vm874, %vm1014
        %vm1143 = vmand %vm875, %vm1015
        %vm1144 = vmand %vm876, %vm1016
        %vm1145 = vmand %vm877, %vm1017
        %vm1146 = vmand %vm878, %vm1018
        %vm1147 = vmand %vm879, %vm1019
        %vm1148 = vmand %vm880, %vm1020
        %vm1149 = vmand %vm881, %vm1021
        %vm1150 = vmand %vm882, %vm1022
        %vm1151 = vmand %vm883, %vm1023
        %vm1152 = vmand %vm884, %vm1024
        %vm1153 = vmand %vm885, %vm1025
        %vm1154 = vmand %vm886, %vm1026
        %vm1155 = vmand %vm887, %vm1027
        %vm1156 = vmand %vm888, %vm1028
        %vm1157 = vmand %vm889, %vm1029
        %vm1158 = vmand %vm890, %vm1030
        %vm1159 = vmand %vm891, %vm1031
        %vm1160 = vmand %vm892, %vm1032
        %vm1161 = vmand %vm893, %vm1033
        %vm1162 = vmand %vm894, %vm1034
        %vm1163 = vmand %vm895, %vm1035
        %vm1164 = vmand %vm896, %vm1036
        %vm1165 = vmand %vm897, %vm1037
        %vm1166 = vmand %vm898, %vm1038
        %vm1167 = vmand %vm899, %vm1039
        %vm1168 = vmand %vm900, %vm1040
        %vm1169 = vmand %vm901, %vm1041
        %vm1170 = vmand %vm902, %vm1042
        %vm1171 = vmand %vm903, %vm1043
        %vm1172 = vmand %vm904, %vm1044
        %vm1173 = vmand %vm905, %vm1045
        %vm1174 = vmand %vm906, %vm1046
        %vm1175 = vmand %vm907, %vm1047
        %vm1176 = vmand %vm908, %vm1048
        %vm1177 = vmand %vm909, %vm1049
        %vm1178 = vmand %vm910, %vm1050
        %vm1179 = vmand %vm911, %vm1051
        %vm1180 = vmand %vm912, %vm1052
        %vm1181 = vmand %vm913, %vm1053
        %vm1182 = vmand %vm914, %vm1054
        %vm1183 = vmand %vm915, %vm1055
        %vm1184 = vmand %vm916, %vm1056
        %vm1185 = vmand %vm917, %vm1057
        %vm1186 = vmand %vm918, %vm1058
        %vm1187 = vmand %vm919, %vm1059
        %vm1188 = vmand %vm920, %vm1060
        %vm1189 = vmand %vm921, %vm1061
        %vm1190 = vmand %vm922, %vm1062
        %vm1191 = vmand %vm923, %vm1063
        %vm1192 = vmand %vm924, %vm1064
        %vm1193 = vmand %vm925, %vm1065
        %vm1194 = vmand %vm926, %vm1066
        %vm1195 = vmand %vm927, %vm1067
        %vm1196 = vmand %vm928, %vm1068
        %vm1197 = vmand %vm929, %vm1069
        %vm1198 = vmand %vm930, %vm1070
        %vm1199 = vmand %vm931, %vm1071
        %vm1200 = vmand %vm932, %vm1072
        %vm1201 = vmand %vm933, %vm1073
        %vm1202 = vmand %vm934, %vm1074
        %vm1203 = vmand %vm935, %vm1075
        %vm1204 = vmand %vm936, %vm1076
        %vm1205 = vmand %vm937, %vm1077
        %vm1206 = vmand %vm938, %vm1078
        %vm1207 = vmand %vm939, %vm1079
        %1208 = vset.pattern.permute.xlu0 3
        %1209 = vperm.xlu0 %1208, %v528
        %v1210 = vpop.permute.xlu0 %1209
        %1211 = vset.pattern.permute.xlu0 3
        %1212 = vperm.xlu0 %1211, %v529
        %v1213 = vpop.permute.xlu0 %1212
        %1214 = vset.pattern.permute.xlu0 3
        %1215 = vperm.xlu0 %1214, %v530
        %v1216 = vpop.permute.xlu0 %1215
        %1217 = vset.pattern.permute.xlu0 3
        %1218 = vperm.xlu0 %1217, %v531
        %v1219 = vpop.permute.xlu0 %1218
        %vm1220 = vcmp.lt.s32.totalorder %v496, %v1210
        %vm1221 = vcmp.lt.s32.totalorder %v497, %v1210
        %vm1222 = vcmp.lt.s32.totalorder %v498, %v1210
        %vm1223 = vcmp.lt.s32.totalorder %v499, %v1210
        %vm1224 = vcmp.lt.s32.totalorder %v500, %v1210
        %vm1225 = vcmp.lt.s32.totalorder %v501, %v1210
        %vm1226 = vcmp.lt.s32.totalorder %v502, %v1210
        %vm1227 = vcmp.lt.s32.totalorder %v503, %v1210
        %vm1228 = vcmp.lt.s32.totalorder %v504, %v1210
        %vm1229 = vcmp.lt.s32.totalorder %v505, %v1210
        %vm1230 = vcmp.lt.s32.totalorder %v506, %v1210
        %vm1231 = vcmp.lt.s32.totalorder %v507, %v1210
        %vm1232 = vcmp.lt.s32.totalorder %v508, %v1210
        %vm1233 = vcmp.lt.s32.totalorder %v509, %v1210
        %vm1234 = vcmp.lt.s32.totalorder %v510, %v1210
        %vm1235 = vcmp.lt.s32.totalorder %v511, %v1210
        %vm1236 = vcmp.lt.s32.totalorder %v512, %v1210
        %vm1237 = vcmp.lt.s32.totalorder %v513, %v1210
        %vm1238 = vcmp.lt.s32.totalorder %v514, %v1210
        %vm1239 = vcmp.lt.s32.totalorder %v515, %v1210
        %vm1240 = vcmp.lt.s32.totalorder %v516, %v1210
        %vm1241 = vcmp.lt.s32.totalorder %v517, %v1210
        %vm1242 = vcmp.lt.s32.totalorder %v518, %v1210
        %vm1243 = vcmp.lt.s32.totalorder %v519, %v1210
        %vm1244 = vcmp.lt.s32.totalorder %v520, %v1210
        %vm1245 = vcmp.lt.s32.totalorder %v521, %v1210
        %vm1246 = vcmp.lt.s32.totalorder %v522, %v1210
        %vm1247 = vcmp.lt.s32.totalorder %v523, %v1210
        %vm1248 = vcmp.lt.s32.totalorder %v524, %v1210
        %vm1249 = vcmp.lt.s32.totalorder %v525, %v1210
        %vm1250 = vcmp.lt.s32.totalorder %v526, %v1210
        %vm1251 = vcmp.lt.s32.totalorder %v527, %v1210
        %vm1252 = vcmp.lt.s32.totalorder %v496, %v1213
        %vm1253 = vcmp.lt.s32.totalorder %v497, %v1213
        %vm1254 = vcmp.lt.s32.totalorder %v498, %v1213
        %vm1255 = vcmp.lt.s32.totalorder %v499, %v1213
        %vm1256 = vcmp.lt.s32.totalorder %v500, %v1213
        %vm1257 = vcmp.lt.s32.totalorder %v501, %v1213
        %vm1258 = vcmp.lt.s32.totalorder %v502, %v1213
        %vm1259 = vcmp.lt.s32.totalorder %v503, %v1213
        %vm1260 = vcmp.lt.s32.totalorder %v504, %v1213
        %vm1261 = vcmp.lt.s32.totalorder %v505, %v1213
        %vm1262 = vcmp.lt.s32.totalorder %v506, %v1213
        %vm1263 = vcmp.lt.s32.totalorder %v507, %v1213
        %vm1264 = vcmp.lt.s32.totalorder %v508, %v1213
        %vm1265 = vcmp.lt.s32.totalorder %v509, %v1213
        %vm1266 = vcmp.lt.s32.totalorder %v510, %v1213
        %vm1267 = vcmp.lt.s32.totalorder %v511, %v1213
        %vm1268 = vcmp.lt.s32.totalorder %v512, %v1213
        %vm1269 = vcmp.lt.s32.totalorder %v513, %v1213
        %vm1270 = vcmp.lt.s32.totalorder %v514, %v1213
        %vm1271 = vcmp.lt.s32.totalorder %v515, %v1213
        %vm1272 = vcmp.lt.s32.totalorder %v516, %v1213
        %vm1273 = vcmp.lt.s32.totalorder %v517, %v1213
        %vm1274 = vcmp.lt.s32.totalorder %v518, %v1213
        %vm1275 = vcmp.lt.s32.totalorder %v519, %v1213
        %vm1276 = vcmp.lt.s32.totalorder %v520, %v1213
        %vm1277 = vcmp.lt.s32.totalorder %v521, %v1213
        %vm1278 = vcmp.lt.s32.totalorder %v522, %v1213
        %vm1279 = vcmp.lt.s32.totalorder %v523, %v1213
        %vm1280 = vcmp.lt.s32.totalorder %v524, %v1213
        %vm1281 = vcmp.lt.s32.totalorder %v525, %v1213
        %vm1282 = vcmp.lt.s32.totalorder %v526, %v1213
        %vm1283 = vcmp.lt.s32.totalorder %v527, %v1213
        %vm1284 = vcmp.lt.s32.totalorder %v496, %v1216
        %vm1285 = vcmp.lt.s32.totalorder %v497, %v1216
        %vm1286 = vcmp.lt.s32.totalorder %v498, %v1216
        %vm1287 = vcmp.lt.s32.totalorder %v499, %v1216
        %vm1288 = vcmp.lt.s32.totalorder %v500, %v1216
        %vm1289 = vcmp.lt.s32.totalorder %v501, %v1216
        %vm1290 = vcmp.lt.s32.totalorder %v502, %v1216
        %vm1291 = vcmp.lt.s32.totalorder %v503, %v1216
        %vm1292 = vcmp.lt.s32.totalorder %v504, %v1216
        %vm1293 = vcmp.lt.s32.totalorder %v505, %v1216
        %vm1294 = vcmp.lt.s32.totalorder %v506, %v1216
        %vm1295 = vcmp.lt.s32.totalorder %v507, %v1216
        %vm1296 = vcmp.lt.s32.totalorder %v508, %v1216
        %vm1297 = vcmp.lt.s32.totalorder %v509, %v1216
        %vm1298 = vcmp.lt.s32.totalorder %v510, %v1216
        %vm1299 = vcmp.lt.s32.totalorder %v511, %v1216
        %vm1300 = vcmp.lt.s32.totalorder %v512, %v1216
        %vm1301 = vcmp.lt.s32.totalorder %v513, %v1216
        %vm1302 = vcmp.lt.s32.totalorder %v514, %v1216
        %vm1303 = vcmp.lt.s32.totalorder %v515, %v1216
        %vm1304 = vcmp.lt.s32.totalorder %v516, %v1216
        %vm1305 = vcmp.lt.s32.totalorder %v517, %v1216
        %vm1306 = vcmp.lt.s32.totalorder %v518, %v1216
        %vm1307 = vcmp.lt.s32.totalorder %v519, %v1216
        %vm1308 = vcmp.lt.s32.totalorder %v520, %v1216
        %vm1309 = vcmp.lt.s32.totalorder %v521, %v1216
        %vm1310 = vcmp.lt.s32.totalorder %v522, %v1216
        %vm1311 = vcmp.lt.s32.totalorder %v523, %v1216
        %vm1312 = vcmp.lt.s32.totalorder %v524, %v1216
        %vm1313 = vcmp.lt.s32.totalorder %v525, %v1216
        %vm1314 = vcmp.lt.s32.totalorder %v526, %v1216
        %vm1315 = vcmp.lt.s32.totalorder %v527, %v1216
        %vm1316 = vcmp.lt.s32.totalorder %v496, %v1219
        %vm1317 = vcmp.lt.s32.totalorder %v497, %v1219
        %vm1318 = vcmp.lt.s32.totalorder %v498, %v1219
        %vm1319 = vcmp.lt.s32.totalorder %v499, %v1219
        %vm1320 = vcmp.lt.s32.totalorder %v500, %v1219
        %vm1321 = vcmp.lt.s32.totalorder %v501, %v1219
        %vm1322 = vcmp.lt.s32.totalorder %v502, %v1219
        %vm1323 = vcmp.lt.s32.totalorder %v503, %v1219
        %vm1324 = vcmp.lt.s32.totalorder %v504, %v1219
        %vm1325 = vcmp.lt.s32.totalorder %v505, %v1219
        %vm1326 = vcmp.lt.s32.totalorder %v506, %v1219
        %vm1327 = vcmp.lt.s32.totalorder %v507, %v1219
        %vm1328 = vcmp.lt.s32.totalorder %v508, %v1219
        %vm1329 = vcmp.lt.s32.totalorder %v509, %v1219
        %vm1330 = vcmp.lt.s32.totalorder %v510, %v1219
        %vm1331 = vcmp.lt.s32.totalorder %v511, %v1219
        %vm1332 = vcmp.lt.s32.totalorder %v512, %v1219
        %vm1333 = vcmp.lt.s32.totalorder %v513, %v1219
        %vm1334 = vcmp.lt.s32.totalorder %v514, %v1219
        %vm1335 = vcmp.lt.s32.totalorder %v515, %v1219
        %vm1336 = vcmp.lt.s32.totalorder %v516, %v1219
        %vm1337 = vcmp.lt.s32.totalorder %v517, %v1219
        %vm1338 = vcmp.lt.s32.totalorder %v518, %v1219
        %vm1339 = vcmp.lt.s32.totalorder %v519, %v1219
        %vm1340 = vcmp.lt.s32.totalorder %v520, %v1219
        %vm1341 = vcmp.lt.s32.totalorder %v521, %v1219
        %vm1342 = vcmp.lt.s32.totalorder %v522, %v1219
        %vm1343 = vcmp.lt.s32.totalorder %v523, %v1219
        %vm1344 = vcmp.lt.s32.totalorder %v524, %v1219
        %vm1345 = vcmp.lt.s32.totalorder %v525, %v1219
        %vm1346 = vcmp.lt.s32.totalorder %v526, %v1219
        %vm1347 = vcmp.lt.s32.totalorder %v527, %v1219
        %vm1348 = vmand %vm1080, %vm1220
        %vm1349 = vmand %vm1081, %vm1221
        %vm1350 = vmand %vm1082, %vm1222
        %vm1351 = vmand %vm1083, %vm1223
        %vm1352 = vmand %vm1084, %vm1224
        %vm1353 = vmand %vm1085, %vm1225
        %vm1354 = vmand %vm1086, %vm1226
        %vm1355 = vmand %vm1087, %vm1227
        %vm1356 = vmand %vm1088, %vm1228
        %vm1357 = vmand %vm1089, %vm1229
        %vm1358 = vmand %vm1090, %vm1230
        %vm1359 = vmand %vm1091, %vm1231
        %vm1360 = vmand %vm1092, %vm1232
        %vm1361 = vmand %vm1093, %vm1233
        %vm1362 = vmand %vm1094, %vm1234
        %vm1363 = vmand %vm1095, %vm1235
        %vm1364 = vmand %vm1096, %vm1236
        %vm1365 = vmand %vm1097, %vm1237
        %vm1366 = vmand %vm1098, %vm1238
        %vm1367 = vmand %vm1099, %vm1239
        %vm1368 = vmand %vm1100, %vm1240
        %vm1369 = vmand %vm1101, %vm1241
        %vm1370 = vmand %vm1102, %vm1242
        %vm1371 = vmand %vm1103, %vm1243
        %vm1372 = vmand %vm1104, %vm1244
        %vm1373 = vmand %vm1105, %vm1245
        %vm1374 = vmand %vm1106, %vm1246
        %vm1375 = vmand %vm1107, %vm1247
        %vm1376 = vmand %vm1108, %vm1248
        %vm1377 = vmand %vm1109, %vm1249
        %vm1378 = vmand %vm1110, %vm1250
        %vm1379 = vmand %vm1111, %vm1251
        %vm1380 = vmand %vm1112, %vm1252
        %vm1381 = vmand %vm1113, %vm1253
        %vm1382 = vmand %vm1114, %vm1254
        %vm1383 = vmand %vm1115, %vm1255
        %vm1384 = vmand %vm1116, %vm1256
        %vm1385 = vmand %vm1117, %vm1257
        %vm1386 = vmand %vm1118, %vm1258
        %vm1387 = vmand %vm1119, %vm1259
        %vm1388 = vmand %vm1120, %vm1260
        %vm1389 = vmand %vm1121, %vm1261
        %vm1390 = vmand %vm1122, %vm1262
        %vm1391 = vmand %vm1123, %vm1263
        %vm1392 = vmand %vm1124, %vm1264
        %vm1393 = vmand %vm1125, %vm1265
        %vm1394 = vmand %vm1126, %vm1266
        %vm1395 = vmand %vm1127, %vm1267
        %vm1396 = vmand %vm1128, %vm1268
        %vm1397 = vmand %vm1129, %vm1269
        %vm1398 = vmand %vm1130, %vm1270
        %vm1399 = vmand %vm1131, %vm1271
        %vm1400 = vmand %vm1132, %vm1272
        %vm1401 = vmand %vm1133, %vm1273
        %vm1402 = vmand %vm1134, %vm1274
        %vm1403 = vmand %vm1135, %vm1275
        %vm1404 = vmand %vm1136, %vm1276
        %vm1405 = vmand %vm1137, %vm1277
        %vm1406 = vmand %vm1138, %vm1278
        %vm1407 = vmand %vm1139, %vm1279
        %vm1408 = vmand %vm1140, %vm1280
        %vm1409 = vmand %vm1141, %vm1281
        %vm1410 = vmand %vm1142, %vm1282
        %vm1411 = vmand %vm1143, %vm1283
        %vm1412 = vmand %vm1144, %vm1284
        %vm1413 = vmand %vm1145, %vm1285
        %vm1414 = vmand %vm1146, %vm1286
        %vm1415 = vmand %vm1147, %vm1287
        %vm1416 = vmand %vm1148, %vm1288
        %vm1417 = vmand %vm1149, %vm1289
        %vm1418 = vmand %vm1150, %vm1290
        %vm1419 = vmand %vm1151, %vm1291
        %vm1420 = vmand %vm1152, %vm1292
        %vm1421 = vmand %vm1153, %vm1293
        %vm1422 = vmand %vm1154, %vm1294
        %vm1423 = vmand %vm1155, %vm1295
        %vm1424 = vmand %vm1156, %vm1296
        %vm1425 = vmand %vm1157, %vm1297
        %vm1426 = vmand %vm1158, %vm1298
        %vm1427 = vmand %vm1159, %vm1299
        %vm1428 = vmand %vm1160, %vm1300
        %vm1429 = vmand %vm1161, %vm1301
        %vm1430 = vmand %vm1162, %vm1302
        %vm1431 = vmand %vm1163, %vm1303
        %vm1432 = vmand %vm1164, %vm1304
        %vm1433 = vmand %vm1165, %vm1305
        %vm1434 = vmand %vm1166, %vm1306
        %vm1435 = vmand %vm1167, %vm1307
        %vm1436 = vmand %vm1168, %vm1308
        %vm1437 = vmand %vm1169, %vm1309
        %vm1438 = vmand %vm1170, %vm1310
        %vm1439 = vmand %vm1171, %vm1311
        %vm1440 = vmand %vm1172, %vm1312
        %vm1441 = vmand %vm1173, %vm1313
        %vm1442 = vmand %vm1174, %vm1314
        %vm1443 = vmand %vm1175, %vm1315
        %vm1444 = vmand %vm1176, %vm1316
        %vm1445 = vmand %vm1177, %vm1317
        %vm1446 = vmand %vm1178, %vm1318
        %vm1447 = vmand %vm1179, %vm1319
        %vm1448 = vmand %vm1180, %vm1320
        %vm1449 = vmand %vm1181, %vm1321
        %vm1450 = vmand %vm1182, %vm1322
        %vm1451 = vmand %vm1183, %vm1323
        %vm1452 = vmand %vm1184, %vm1324
        %vm1453 = vmand %vm1185, %vm1325
        %vm1454 = vmand %vm1186, %vm1326
        %vm1455 = vmand %vm1187, %vm1327
        %vm1456 = vmand %vm1188, %vm1328
        %vm1457 = vmand %vm1189, %vm1329
        %vm1458 = vmand %vm1190, %vm1330
        %vm1459 = vmand %vm1191, %vm1331
        %vm1460 = vmand %vm1192, %vm1332
        %vm1461 = vmand %vm1193, %vm1333
        %vm1462 = vmand %vm1194, %vm1334
        %vm1463 = vmand %vm1195, %vm1335
        %vm1464 = vmand %vm1196, %vm1336
        %vm1465 = vmand %vm1197, %vm1337
        %vm1466 = vmand %vm1198, %vm1338
        %vm1467 = vmand %vm1199, %vm1339
        %vm1468 = vmand %vm1200, %vm1340
        %vm1469 = vmand %vm1201, %vm1341
        %vm1470 = vmand %vm1202, %vm1342
        %vm1471 = vmand %vm1203, %vm1343
        %vm1472 = vmand %vm1204, %vm1344
        %vm1473 = vmand %vm1205, %vm1345
        %vm1474 = vmand %vm1206, %vm1346
        %vm1475 = vmand %vm1207, %vm1347
        %v1476 = vsel %vm1348, 1.0, 0.0
        %v1477 = vsel %vm1349, 1.0, 0.0
        %v1478 = vsel %vm1350, 1.0, 0.0
        %v1479 = vsel %vm1351, 1.0, 0.0
        %v1480 = vsel %vm1352, 1.0, 0.0
        %v1481 = vsel %vm1353, 1.0, 0.0
        %v1482 = vsel %vm1354, 1.0, 0.0
        %v1483 = vsel %vm1355, 1.0, 0.0
        %v1484 = vsel %vm1356, 1.0, 0.0
        %v1485 = vsel %vm1357, 1.0, 0.0
        %v1486 = vsel %vm1358, 1.0, 0.0
        %v1487 = vsel %vm1359, 1.0, 0.0
        %v1488 = vsel %vm1360, 1.0, 0.0
        %v1489 = vsel %vm1361, 1.0, 0.0
        %v1490 = vsel %vm1362, 1.0, 0.0
        %v1491 = vsel %vm1363, 1.0, 0.0
        %v1492 = vsel %vm1364, 1.0, 0.0
        %v1493 = vsel %vm1365, 1.0, 0.0
        %v1494 = vsel %vm1366, 1.0, 0.0
        %v1495 = vsel %vm1367, 1.0, 0.0
        %v1496 = vsel %vm1368, 1.0, 0.0
        %v1497 = vsel %vm1369, 1.0, 0.0
        %v1498 = vsel %vm1370, 1.0, 0.0
        %v1499 = vsel %vm1371, 1.0, 0.0
        %v1500 = vsel %vm1372, 1.0, 0.0
        %v1501 = vsel %vm1373, 1.0, 0.0
        %v1502 = vsel %vm1374, 1.0, 0.0
        %v1503 = vsel %vm1375, 1.0, 0.0
        %v1504 = vsel %vm1376, 1.0, 0.0
        %v1505 = vsel %vm1377, 1.0, 0.0
        %v1506 = vsel %vm1378, 1.0, 0.0
        %v1507 = vsel %vm1379, 1.0, 0.0
        %v1508 = vsel %vm1380, 1.0, 0.0
        %v1509 = vsel %vm1381, 1.0, 0.0
        %v1510 = vsel %vm1382, 1.0, 0.0
        %v1511 = vsel %vm1383, 1.0, 0.0
        %v1512 = vsel %vm1384, 1.0, 0.0
        %v1513 = vsel %vm1385, 1.0, 0.0
        %v1514 = vsel %vm1386, 1.0, 0.0
        %v1515 = vsel %vm1387, 1.0, 0.0
        %v1516 = vsel %vm1388, 1.0, 0.0
        %v1517 = vsel %vm1389, 1.0, 0.0
        %v1518 = vsel %vm1390, 1.0, 0.0
        %v1519 = vsel %vm1391, 1.0, 0.0
        %v1520 = vsel %vm1392, 1.0, 0.0
        %v1521 = vsel %vm1393, 1.0, 0.0
        %v1522 = vsel %vm1394, 1.0, 0.0
        %v1523 = vsel %vm1395, 1.0, 0.0
        %v1524 = vsel %vm1396, 1.0, 0.0
        %v1525 = vsel %vm1397, 1.0, 0.0
        %v1526 = vsel %vm1398, 1.0, 0.0
        %v1527 = vsel %vm1399, 1.0, 0.0
        %v1528 = vsel %vm1400, 1.0, 0.0
        %v1529 = vsel %vm1401, 1.0, 0.0
        %v1530 = vsel %vm1402, 1.0, 0.0
        %v1531 = vsel %vm1403, 1.0, 0.0
        %v1532 = vsel %vm1404, 1.0, 0.0
        %v1533 = vsel %vm1405, 1.0, 0.0
        %v1534 = vsel %vm1406, 1.0, 0.0
        %v1535 = vsel %vm1407, 1.0, 0.0
        %v1536 = vsel %vm1408, 1.0, 0.0
        %v1537 = vsel %vm1409, 1.0, 0.0
        %v1538 = vsel %vm1410, 1.0, 0.0
        %v1539 = vsel %vm1411, 1.0, 0.0
        %v1540 = vsel %vm1412, 1.0, 0.0
        %v1541 = vsel %vm1413, 1.0, 0.0
        %v1542 = vsel %vm1414, 1.0, 0.0
        %v1543 = vsel %vm1415, 1.0, 0.0
        %v1544 = vsel %vm1416, 1.0, 0.0
        %v1545 = vsel %vm1417, 1.0, 0.0
        %v1546 = vsel %vm1418, 1.0, 0.0
        %v1547 = vsel %vm1419, 1.0, 0.0
        %v1548 = vsel %vm1420, 1.0, 0.0
        %v1549 = vsel %vm1421, 1.0, 0.0
        %v1550 = vsel %vm1422, 1.0, 0.0
        %v1551 = vsel %vm1423, 1.0, 0.0
        %v1552 = vsel %vm1424, 1.0, 0.0
        %v1553 = vsel %vm1425, 1.0, 0.0
        %v1554 = vsel %vm1426, 1.0, 0.0
        %v1555 = vsel %vm1427, 1.0, 0.0
        %v1556 = vsel %vm1428, 1.0, 0.0
        %v1557 = vsel %vm1429, 1.0, 0.0
        %v1558 = vsel %vm1430, 1.0, 0.0
        %v1559 = vsel %vm1431, 1.0, 0.0
        %v1560 = vsel %vm1432, 1.0, 0.0
        %v1561 = vsel %vm1433, 1.0, 0.0
        %v1562 = vsel %vm1434, 1.0, 0.0
        %v1563 = vsel %vm1435, 1.0, 0.0
        %v1564 = vsel %vm1436, 1.0, 0.0
        %v1565 = vsel %vm1437, 1.0, 0.0
        %v1566 = vsel %vm1438, 1.0, 0.0
        %v1567 = vsel %vm1439, 1.0, 0.0
        %v1568 = vsel %vm1440, 1.0, 0.0
        %v1569 = vsel %vm1441, 1.0, 0.0
        %v1570 = vsel %vm1442, 1.0, 0.0
        %v1571 = vsel %vm1443, 1.0, 0.0
        %v1572 = vsel %vm1444, 1.0, 0.0
        %v1573 = vsel %vm1445, 1.0, 0.0
        %v1574 = vsel %vm1446, 1.0, 0.0
        %v1575 = vsel %vm1447, 1.0, 0.0
        %v1576 = vsel %vm1448, 1.0, 0.0
        %v1577 = vsel %vm1449, 1.0, 0.0
        %v1578 = vsel %vm1450, 1.0, 0.0
        %v1579 = vsel %vm1451, 1.0, 0.0
        %v1580 = vsel %vm1452, 1.0, 0.0
        %v1581 = vsel %vm1453, 1.0, 0.0
        %v1582 = vsel %vm1454, 1.0, 0.0
        %v1583 = vsel %vm1455, 1.0, 0.0
        %v1584 = vsel %vm1456, 1.0, 0.0
        %v1585 = vsel %vm1457, 1.0, 0.0
        %v1586 = vsel %vm1458, 1.0, 0.0
        %v1587 = vsel %vm1459, 1.0, 0.0
        %v1588 = vsel %vm1460, 1.0, 0.0
        %v1589 = vsel %vm1461, 1.0, 0.0
        %v1590 = vsel %vm1462, 1.0, 0.0
        %v1591 = vsel %vm1463, 1.0, 0.0
        %v1592 = vsel %vm1464, 1.0, 0.0
        %v1593 = vsel %vm1465, 1.0, 0.0
        %v1594 = vsel %vm1466, 1.0, 0.0
        %v1595 = vsel %vm1467, 1.0, 0.0
        %v1596 = vsel %vm1468, 1.0, 0.0
        %v1597 = vsel %vm1469, 1.0, 0.0
        %v1598 = vsel %vm1470, 1.0, 0.0
        %v1599 = vsel %vm1471, 1.0, 0.0
        %v1600 = vsel %vm1472, 1.0, 0.0
        %v1601 = vsel %vm1473, 1.0, 0.0
        %v1602 = vsel %vm1474, 1.0, 0.0
        %v1603 = vsel %vm1475, 1.0, 0.0
        %v1604 = vpack.c.bf16 %v1508, %v1476
        %v1605 = vpack.c.bf16 %v1509, %v1477
        %v1606 = vpack.c.bf16 %v1510, %v1478
        %v1607 = vpack.c.bf16 %v1511, %v1479
        %v1608 = vpack.c.bf16 %v1512, %v1480
        %v1609 = vpack.c.bf16 %v1513, %v1481
        %v1610 = vpack.c.bf16 %v1514, %v1482
        %v1611 = vpack.c.bf16 %v1515, %v1483
        %v1612 = vpack.c.bf16 %v1516, %v1484
        %v1613 = vpack.c.bf16 %v1517, %v1485
        %v1614 = vpack.c.bf16 %v1518, %v1486
        %v1615 = vpack.c.bf16 %v1519, %v1487
        %v1616 = vpack.c.bf16 %v1520, %v1488
        %v1617 = vpack.c.bf16 %v1521, %v1489
        %v1618 = vpack.c.bf16 %v1522, %v1490
        %v1619 = vpack.c.bf16 %v1523, %v1491
        %v1620 = vpack.c.bf16 %v1524, %v1492
        %v1621 = vpack.c.bf16 %v1525, %v1493
        %v1622 = vpack.c.bf16 %v1526, %v1494
        %v1623 = vpack.c.bf16 %v1527, %v1495
        %v1624 = vpack.c.bf16 %v1528, %v1496
        %v1625 = vpack.c.bf16 %v1529, %v1497
        %v1626 = vpack.c.bf16 %v1530, %v1498
        %v1627 = vpack.c.bf16 %v1531, %v1499
        %v1628 = vpack.c.bf16 %v1532, %v1500
        %v1629 = vpack.c.bf16 %v1533, %v1501
        %v1630 = vpack.c.bf16 %v1534, %v1502
        %v1631 = vpack.c.bf16 %v1535, %v1503
        %v1632 = vpack.c.bf16 %v1536, %v1504
        %v1633 = vpack.c.bf16 %v1537, %v1505
        %v1634 = vpack.c.bf16 %v1538, %v1506
        %v1635 = vpack.c.bf16 %v1539, %v1507
        %v1636 = vpack.c.bf16 %v1572, %v1540
        %v1637 = vpack.c.bf16 %v1573, %v1541
        %v1638 = vpack.c.bf16 %v1574, %v1542
        %v1639 = vpack.c.bf16 %v1575, %v1543
        %v1640 = vpack.c.bf16 %v1576, %v1544
        %v1641 = vpack.c.bf16 %v1577, %v1545
        %v1642 = vpack.c.bf16 %v1578, %v1546
        %v1643 = vpack.c.bf16 %v1579, %v1547
        %v1644 = vpack.c.bf16 %v1580, %v1548
        %v1645 = vpack.c.bf16 %v1581, %v1549
        %v1646 = vpack.c.bf16 %v1582, %v1550
        %v1647 = vpack.c.bf16 %v1583, %v1551
        %v1648 = vpack.c.bf16 %v1584, %v1552
        %v1649 = vpack.c.bf16 %v1585, %v1553
        %v1650 = vpack.c.bf16 %v1586, %v1554
        %v1651 = vpack.c.bf16 %v1587, %v1555
        %v1652 = vpack.c.bf16 %v1588, %v1556
        %v1653 = vpack.c.bf16 %v1589, %v1557
        %v1654 = vpack.c.bf16 %v1590, %v1558
        %v1655 = vpack.c.bf16 %v1591, %v1559
        %v1656 = vpack.c.bf16 %v1592, %v1560
        %v1657 = vpack.c.bf16 %v1593, %v1561
        %v1658 = vpack.c.bf16 %v1594, %v1562
        %v1659 = vpack.c.bf16 %v1595, %v1563
        %v1660 = vpack.c.bf16 %v1596, %v1564
        %v1661 = vpack.c.bf16 %v1597, %v1565
        %v1662 = vpack.c.bf16 %v1598, %v1566
        %v1663 = vpack.c.bf16 %v1599, %v1567
        %v1664 = vpack.c.bf16 %v1600, %v1568
        %v1665 = vpack.c.bf16 %v1601, %v1569
        %v1666 = vpack.c.bf16 %v1602, %v1570
        %v1667 = vpack.c.bf16 %v1603, %v1571
        %1668 = vst [vmem:[#allocation2] sm:$0xff] %v1604
        %1669 = vst [vmem:[#allocation2 + $0x8] sm:$0xff] %v1605
        %1670 = vst [vmem:[#allocation2 + $0x10] sm:$0xff] %v1606
        %1671 = vst [vmem:[#allocation2 + $0x18] sm:$0xff] %v1607
        %1672 = vst [vmem:[#allocation2 + $0x20] sm:$0xff] %v1608
        %1673 = vst [vmem:[#allocation2 + $0x28] sm:$0xff] %v1609
        %1674 = vst [vmem:[#allocation2 + $0x30] sm:$0xff] %v1610
        %1675 = vst [vmem:[#allocation2 + $0x38] sm:$0xff] %v1611
        %1676 = vst [vmem:[#allocation2 + $0x40] sm:$0xff] %v1612
        %1677 = vst [vmem:[#allocation2 + $0x48] sm:$0xff] %v1613
        %1678 = vst [vmem:[#allocation2 + $0x50] sm:$0xff] %v1614
        %1679 = vst [vmem:[#allocation2 + $0x58] sm:$0xff] %v1615
        %1680 = vst [vmem:[#allocation2 + $0x60] sm:$0xff] %v1616
        %1681 = vst [vmem:[#allocation2 + $0x68] sm:$0xff] %v1617
        %1682 = vst [vmem:[#allocation2 + $0x70] sm:$0xff] %v1618
        %1683 = vst [vmem:[#allocation2 + $0x78] sm:$0xff] %v1619
        %1684 = vst [vmem:[#allocation2 + $0x80] sm:$0xff] %v1620
        %1685 = vst [vmem:[#allocation2 + $0x88] sm:$0xff] %v1621
        %1686 = vst [vmem:[#allocation2 + $0x90] sm:$0xff] %v1622
        %1687 = vst [vmem:[#allocation2 + $0x98] sm:$0xff] %v1623
        %1688 = vst [vmem:[#allocation2 + $0xa0] sm:$0xff] %v1624
        %1689 = vst [vmem:[#allocation2 + $0xa8] sm:$0xff] %v1625
        %1690 = vst [vmem:[#allocation2 + $0xb0] sm:$0xff] %v1626
        %1691 = vst [vmem:[#allocation2 + $0xb8] sm:$0xff] %v1627
        %1692 = vst [vmem:[#allocation2 + $0xc0] sm:$0xff] %v1628
        %1693 = vst [vmem:[#allocation2 + $0xc8] sm:$0xff] %v1629
        %1694 = vst [vmem:[#allocation2 + $0xd0] sm:$0xff] %v1630
        %1695 = vst [vmem:[#allocation2 + $0xd8] sm:$0xff] %v1631
        %1696 = vst [vmem:[#allocation2 + $0xe0] sm:$0xff] %v1632
        %1697 = vst [vmem:[#allocation2 + $0xe8] sm:$0xff] %v1633
        %1698 = vst [vmem:[#allocation2 + $0xf0] sm:$0xff] %v1634
        %1699 = vst [vmem:[#allocation2 + $0xf8] sm:$0xff] %v1635
        %1700 = vst [vmem:[#allocation2 + $0x100] sm:$0xff] %v1636
        %1701 = vst [vmem:[#allocation2 + $0x108] sm:$0xff] %v1637
        %1702 = vst [vmem:[#allocation2 + $0x110] sm:$0xff] %v1638
        %1703 = vst [vmem:[#allocation2 + $0x118] sm:$0xff] %v1639
        %1704 = vst [vmem:[#allocation2 + $0x120] sm:$0xff] %v1640
        %1705 = vst [vmem:[#allocation2 + $0x128] sm:$0xff] %v1641
        %1706 = vst [vmem:[#allocation2 + $0x130] sm:$0xff] %v1642
        %1707 = vst [vmem:[#allocation2 + $0x138] sm:$0xff] %v1643
        %1708 = vst [vmem:[#allocation2 + $0x140] sm:$0xff] %v1644
        %1709 = vst [vmem:[#allocation2 + $0x148] sm:$0xff] %v1645
        %1710 = vst [vmem:[#allocation2 + $0x150] sm:$0xff] %v1646
        %1711 = vst [vmem:[#allocation2 + $0x158] sm:$0xff] %v1647
        %1712 = vst [vmem:[#allocation2 + $0x160] sm:$0xff] %v1648
        %1713 = vst [vmem:[#allocation2 + $0x168] sm:$0xff] %v1649
        %1714 = vst [vmem:[#allocation2 + $0x170] sm:$0xff] %v1650
        %1715 = vst [vmem:[#allocation2 + $0x178] sm:$0xff] %v1651
        %1716 = vst [vmem:[#allocation2 + $0x180] sm:$0xff] %v1652
        %1717 = vst [vmem:[#allocation2 + $0x188] sm:$0xff] %v1653
        %1718 = vst [vmem:[#allocation2 + $0x190] sm:$0xff] %v1654
        %1719 = vst [vmem:[#allocation2 + $0x198] sm:$0xff] %v1655
        %1720 = vst [vmem:[#allocation2 + $0x1a0] sm:$0xff] %v1656
        %1721 = vst [vmem:[#allocation2 + $0x1a8] sm:$0xff] %v1657
        %1722 = vst [vmem:[#allocation2 + $0x1b0] sm:$0xff] %v1658
        %1723 = vst [vmem:[#allocation2 + $0x1b8] sm:$0xff] %v1659
        %1724 = vst [vmem:[#allocation2 + $0x1c0] sm:$0xff] %v1660
        %1725 = vst [vmem:[#allocation2 + $0x1c8] sm:$0xff] %v1661
        %1726 = vst [vmem:[#allocation2 + $0x1d0] sm:$0xff] %v1662
        %1727 = vst [vmem:[#allocation2 + $0x1d8] sm:$0xff] %v1663
        %1728 = vst [vmem:[#allocation2 + $0x1e0] sm:$0xff] %v1664
        %1729 = vst [vmem:[#allocation2 + $0x1e8] sm:$0xff] %v1665
        %1730 = vst [vmem:[#allocation2 + $0x1f0] sm:$0xff] %v1666
        %1731 = vst [vmem:[#allocation2 + $0x1f8] sm:$0xff] %v1667
        %v1732 = vld [vmem:[%s414] sm:$0xff]
        %v1733 = vld [vmem:[%s414 + $0x8] sm:$0xff]
        %v1734 = vld [vmem:[%s414 + $0x10] sm:$0xff]
        %v1735 = vld [vmem:[%s414 + $0x18] sm:$0xff]
        %1736 = vset.pattern.permute.xlu0 0
        %1737 = vperm.xlu0 %1736, %v1732
        %v1738 = vpop.permute.xlu0 %1737
        %1739 = vset.pattern.permute.xlu0 0
        %1740 = vperm.xlu0 %1739, %v1733
        %v1741 = vpop.permute.xlu0 %1740
        %1742 = vset.pattern.permute.xlu0 0
        %1743 = vperm.xlu0 %1742, %v1734
        %v1744 = vpop.permute.xlu0 %1743
        %1745 = vset.pattern.permute.xlu0 0
        %1746 = vperm.xlu0 %1745, %v1735
        %v1747 = vpop.permute.xlu0 %1746
        %vm1748 = vcmp.ge.s32.totalorder %v464, %v1738
        %vm1749 = vcmp.ge.s32.totalorder %v465, %v1738
        %vm1750 = vcmp.ge.s32.totalorder %v466, %v1738
        %vm1751 = vcmp.ge.s32.totalorder %v467, %v1738
        %vm1752 = vcmp.ge.s32.totalorder %v468, %v1738
        %vm1753 = vcmp.ge.s32.totalorder %v469, %v1738
        %vm1754 = vcmp.ge.s32.totalorder %v470, %v1738
        %vm1755 = vcmp.ge.s32.totalorder %v471, %v1738
        %vm1756 = vcmp.ge.s32.totalorder %v472, %v1738
        %vm1757 = vcmp.ge.s32.totalorder %v473, %v1738
        %vm1758 = vcmp.ge.s32.totalorder %v474, %v1738
        %vm1759 = vcmp.ge.s32.totalorder %v475, %v1738
        %vm1760 = vcmp.ge.s32.totalorder %v476, %v1738
        %vm1761 = vcmp.ge.s32.totalorder %v477, %v1738
        %vm1762 = vcmp.ge.s32.totalorder %v478, %v1738
        %vm1763 = vcmp.ge.s32.totalorder %v479, %v1738
        %vm1764 = vcmp.ge.s32.totalorder %v480, %v1738
        %vm1765 = vcmp.ge.s32.totalorder %v481, %v1738
        %vm1766 = vcmp.ge.s32.totalorder %v482, %v1738
        %vm1767 = vcmp.ge.s32.totalorder %v483, %v1738
        %vm1768 = vcmp.ge.s32.totalorder %v484, %v1738
        %vm1769 = vcmp.ge.s32.totalorder %v485, %v1738
        %vm1770 = vcmp.ge.s32.totalorder %v486, %v1738
        %vm1771 = vcmp.ge.s32.totalorder %v487, %v1738
        %vm1772 = vcmp.ge.s32.totalorder %v488, %v1738
        %vm1773 = vcmp.ge.s32.totalorder %v489, %v1738
        %vm1774 = vcmp.ge.s32.totalorder %v490, %v1738
        %vm1775 = vcmp.ge.s32.totalorder %v491, %v1738
        %vm1776 = vcmp.ge.s32.totalorder %v492, %v1738
        %vm1777 = vcmp.ge.s32.totalorder %v493, %v1738
        %vm1778 = vcmp.ge.s32.totalorder %v494, %v1738
        %vm1779 = vcmp.ge.s32.totalorder %v495, %v1738
        %vm1780 = vcmp.ge.s32.totalorder %v464, %v1741
        %vm1781 = vcmp.ge.s32.totalorder %v465, %v1741
        %vm1782 = vcmp.ge.s32.totalorder %v466, %v1741
        %vm1783 = vcmp.ge.s32.totalorder %v467, %v1741
        %vm1784 = vcmp.ge.s32.totalorder %v468, %v1741
        %vm1785 = vcmp.ge.s32.totalorder %v469, %v1741
        %vm1786 = vcmp.ge.s32.totalorder %v470, %v1741
        %vm1787 = vcmp.ge.s32.totalorder %v471, %v1741
        %vm1788 = vcmp.ge.s32.totalorder %v472, %v1741
        %vm1789 = vcmp.ge.s32.totalorder %v473, %v1741
        %vm1790 = vcmp.ge.s32.totalorder %v474, %v1741
        %vm1791 = vcmp.ge.s32.totalorder %v475, %v1741
        %vm1792 = vcmp.ge.s32.totalorder %v476, %v1741
        %vm1793 = vcmp.ge.s32.totalorder %v477, %v1741
        %vm1794 = vcmp.ge.s32.totalorder %v478, %v1741
        %vm1795 = vcmp.ge.s32.totalorder %v479, %v1741
        %vm1796 = vcmp.ge.s32.totalorder %v480, %v1741
        %vm1797 = vcmp.ge.s32.totalorder %v481, %v1741
        %vm1798 = vcmp.ge.s32.totalorder %v482, %v1741
        %vm1799 = vcmp.ge.s32.totalorder %v483, %v1741
        %vm1800 = vcmp.ge.s32.totalorder %v484, %v1741
        %vm1801 = vcmp.ge.s32.totalorder %v485, %v1741
        %vm1802 = vcmp.ge.s32.totalorder %v486, %v1741
        %vm1803 = vcmp.ge.s32.totalorder %v487, %v1741
        %vm1804 = vcmp.ge.s32.totalorder %v488, %v1741
        %vm1805 = vcmp.ge.s32.totalorder %v489, %v1741
        %vm1806 = vcmp.ge.s32.totalorder %v490, %v1741
        %vm1807 = vcmp.ge.s32.totalorder %v491, %v1741
        %vm1808 = vcmp.ge.s32.totalorder %v492, %v1741
        %vm1809 = vcmp.ge.s32.totalorder %v493, %v1741
        %vm1810 = vcmp.ge.s32.totalorder %v494, %v1741
        %vm1811 = vcmp.ge.s32.totalorder %v495, %v1741
        %vm1812 = vcmp.ge.s32.totalorder %v464, %v1744
        %vm1813 = vcmp.ge.s32.totalorder %v465, %v1744
        %vm1814 = vcmp.ge.s32.totalorder %v466, %v1744
        %vm1815 = vcmp.ge.s32.totalorder %v467, %v1744
        %vm1816 = vcmp.ge.s32.totalorder %v468, %v1744
        %vm1817 = vcmp.ge.s32.totalorder %v469, %v1744
        %vm1818 = vcmp.ge.s32.totalorder %v470, %v1744
        %vm1819 = vcmp.ge.s32.totalorder %v471, %v1744
        %vm1820 = vcmp.ge.s32.totalorder %v472, %v1744
        %vm1821 = vcmp.ge.s32.totalorder %v473, %v1744
        %vm1822 = vcmp.ge.s32.totalorder %v474, %v1744
        %vm1823 = vcmp.ge.s32.totalorder %v475, %v1744
        %vm1824 = vcmp.ge.s32.totalorder %v476, %v1744
        %vm1825 = vcmp.ge.s32.totalorder %v477, %v1744
        %vm1826 = vcmp.ge.s32.totalorder %v478, %v1744
        %vm1827 = vcmp.ge.s32.totalorder %v479, %v1744
        %vm1828 = vcmp.ge.s32.totalorder %v480, %v1744
        %vm1829 = vcmp.ge.s32.totalorder %v481, %v1744
        %vm1830 = vcmp.ge.s32.totalorder %v482, %v1744
        %vm1831 = vcmp.ge.s32.totalorder %v483, %v1744
        %vm1832 = vcmp.ge.s32.totalorder %v484, %v1744
        %vm1833 = vcmp.ge.s32.totalorder %v485, %v1744
        %vm1834 = vcmp.ge.s32.totalorder %v486, %v1744
        %vm1835 = vcmp.ge.s32.totalorder %v487, %v1744
        %vm1836 = vcmp.ge.s32.totalorder %v488, %v1744
        %vm1837 = vcmp.ge.s32.totalorder %v489, %v1744
        %vm1838 = vcmp.ge.s32.totalorder %v490, %v1744
        %vm1839 = vcmp.ge.s32.totalorder %v491, %v1744
        %vm1840 = vcmp.ge.s32.totalorder %v492, %v1744
        %vm1841 = vcmp.ge.s32.totalorder %v493, %v1744
        %vm1842 = vcmp.ge.s32.totalorder %v494, %v1744
        %vm1843 = vcmp.ge.s32.totalorder %v495, %v1744
        %vm1844 = vcmp.ge.s32.totalorder %v464, %v1747
        %vm1845 = vcmp.ge.s32.totalorder %v465, %v1747
        %vm1846 = vcmp.ge.s32.totalorder %v466, %v1747
        %vm1847 = vcmp.ge.s32.totalorder %v467, %v1747
        %vm1848 = vcmp.ge.s32.totalorder %v468, %v1747
        %vm1849 = vcmp.ge.s32.totalorder %v469, %v1747
        %vm1850 = vcmp.ge.s32.totalorder %v470, %v1747
        %vm1851 = vcmp.ge.s32.totalorder %v471, %v1747
        %vm1852 = vcmp.ge.s32.totalorder %v472, %v1747
        %vm1853 = vcmp.ge.s32.totalorder %v473, %v1747
        %vm1854 = vcmp.ge.s32.totalorder %v474, %v1747
        %vm1855 = vcmp.ge.s32.totalorder %v475, %v1747
        %vm1856 = vcmp.ge.s32.totalorder %v476, %v1747
        %vm1857 = vcmp.ge.s32.totalorder %v477, %v1747
        %vm1858 = vcmp.ge.s32.totalorder %v478, %v1747
        %vm1859 = vcmp.ge.s32.totalorder %v479, %v1747
        %vm1860 = vcmp.ge.s32.totalorder %v480, %v1747
        %vm1861 = vcmp.ge.s32.totalorder %v481, %v1747
        %vm1862 = vcmp.ge.s32.totalorder %v482, %v1747
        %vm1863 = vcmp.ge.s32.totalorder %v483, %v1747
        %vm1864 = vcmp.ge.s32.totalorder %v484, %v1747
        %vm1865 = vcmp.ge.s32.totalorder %v485, %v1747
        %vm1866 = vcmp.ge.s32.totalorder %v486, %v1747
        %vm1867 = vcmp.ge.s32.totalorder %v487, %v1747
        %vm1868 = vcmp.ge.s32.totalorder %v488, %v1747
        %vm1869 = vcmp.ge.s32.totalorder %v489, %v1747
        %vm1870 = vcmp.ge.s32.totalorder %v490, %v1747
        %vm1871 = vcmp.ge.s32.totalorder %v491, %v1747
        %vm1872 = vcmp.ge.s32.totalorder %v492, %v1747
        %vm1873 = vcmp.ge.s32.totalorder %v493, %v1747
        %vm1874 = vcmp.ge.s32.totalorder %v494, %v1747
        %vm1875 = vcmp.ge.s32.totalorder %v495, %v1747
        %1876 = vset.pattern.permute.xlu0 1
        %1877 = vperm.xlu0 %1876, %v1732
        %v1878 = vpop.permute.xlu0 %1877
        %1879 = vset.pattern.permute.xlu0 1
        %1880 = vperm.xlu0 %1879, %v1733
        %v1881 = vpop.permute.xlu0 %1880
        %1882 = vset.pattern.permute.xlu0 1
        %1883 = vperm.xlu0 %1882, %v1734
        %v1884 = vpop.permute.xlu0 %1883
        %1885 = vset.pattern.permute.xlu0 1
        %1886 = vperm.xlu0 %1885, %v1735
        %v1887 = vpop.permute.xlu0 %1886
        %vm1888 = vcmp.lt.s32.totalorder %v464, %v1878
        %vm1889 = vcmp.lt.s32.totalorder %v465, %v1878
        %vm1890 = vcmp.lt.s32.totalorder %v466, %v1878
        %vm1891 = vcmp.lt.s32.totalorder %v467, %v1878
        %vm1892 = vcmp.lt.s32.totalorder %v468, %v1878
        %vm1893 = vcmp.lt.s32.totalorder %v469, %v1878
        %vm1894 = vcmp.lt.s32.totalorder %v470, %v1878
        %vm1895 = vcmp.lt.s32.totalorder %v471, %v1878
        %vm1896 = vcmp.lt.s32.totalorder %v472, %v1878
        %vm1897 = vcmp.lt.s32.totalorder %v473, %v1878
        %vm1898 = vcmp.lt.s32.totalorder %v474, %v1878
        %vm1899 = vcmp.lt.s32.totalorder %v475, %v1878
        %vm1900 = vcmp.lt.s32.totalorder %v476, %v1878
        %vm1901 = vcmp.lt.s32.totalorder %v477, %v1878
        %vm1902 = vcmp.lt.s32.totalorder %v478, %v1878
        %vm1903 = vcmp.lt.s32.totalorder %v479, %v1878
        %vm1904 = vcmp.lt.s32.totalorder %v480, %v1878
        %vm1905 = vcmp.lt.s32.totalorder %v481, %v1878
        %vm1906 = vcmp.lt.s32.totalorder %v482, %v1878
        %vm1907 = vcmp.lt.s32.totalorder %v483, %v1878
        %vm1908 = vcmp.lt.s32.totalorder %v484, %v1878
        %vm1909 = vcmp.lt.s32.totalorder %v485, %v1878
        %vm1910 = vcmp.lt.s32.totalorder %v486, %v1878
        %vm1911 = vcmp.lt.s32.totalorder %v487, %v1878
        %vm1912 = vcmp.lt.s32.totalorder %v488, %v1878
        %vm1913 = vcmp.lt.s32.totalorder %v489, %v1878
        %vm1914 = vcmp.lt.s32.totalorder %v490, %v1878
        %vm1915 = vcmp.lt.s32.totalorder %v491, %v1878
        %vm1916 = vcmp.lt.s32.totalorder %v492, %v1878
        %vm1917 = vcmp.lt.s32.totalorder %v493, %v1878
        %vm1918 = vcmp.lt.s32.totalorder %v494, %v1878
        %vm1919 = vcmp.lt.s32.totalorder %v495, %v1878
        %vm1920 = vcmp.lt.s32.totalorder %v464, %v1881
        %vm1921 = vcmp.lt.s32.totalorder %v465, %v1881
        %vm1922 = vcmp.lt.s32.totalorder %v466, %v1881
        %vm1923 = vcmp.lt.s32.totalorder %v467, %v1881
        %vm1924 = vcmp.lt.s32.totalorder %v468, %v1881
        %vm1925 = vcmp.lt.s32.totalorder %v469, %v1881
        %vm1926 = vcmp.lt.s32.totalorder %v470, %v1881
        %vm1927 = vcmp.lt.s32.totalorder %v471, %v1881
        %vm1928 = vcmp.lt.s32.totalorder %v472, %v1881
        %vm1929 = vcmp.lt.s32.totalorder %v473, %v1881
        %vm1930 = vcmp.lt.s32.totalorder %v474, %v1881
        %vm1931 = vcmp.lt.s32.totalorder %v475, %v1881
        %vm1932 = vcmp.lt.s32.totalorder %v476, %v1881
        %vm1933 = vcmp.lt.s32.totalorder %v477, %v1881
        %vm1934 = vcmp.lt.s32.totalorder %v478, %v1881
        %vm1935 = vcmp.lt.s32.totalorder %v479, %v1881
        %vm1936 = vcmp.lt.s32.totalorder %v480, %v1881
        %vm1937 = vcmp.lt.s32.totalorder %v481, %v1881
        %vm1938 = vcmp.lt.s32.totalorder %v482, %v1881
        %vm1939 = vcmp.lt.s32.totalorder %v483, %v1881
        %vm1940 = vcmp.lt.s32.totalorder %v484, %v1881
        %vm1941 = vcmp.lt.s32.totalorder %v485, %v1881
        %vm1942 = vcmp.lt.s32.totalorder %v486, %v1881
        %vm1943 = vcmp.lt.s32.totalorder %v487, %v1881
        %vm1944 = vcmp.lt.s32.totalorder %v488, %v1881
        %vm1945 = vcmp.lt.s32.totalorder %v489, %v1881
        %vm1946 = vcmp.lt.s32.totalorder %v490, %v1881
        %vm1947 = vcmp.lt.s32.totalorder %v491, %v1881
        %vm1948 = vcmp.lt.s32.totalorder %v492, %v1881
        %vm1949 = vcmp.lt.s32.totalorder %v493, %v1881
        %vm1950 = vcmp.lt.s32.totalorder %v494, %v1881
        %vm1951 = vcmp.lt.s32.totalorder %v495, %v1881
        %vm1952 = vcmp.lt.s32.totalorder %v464, %v1884
        %vm1953 = vcmp.lt.s32.totalorder %v465, %v1884
        %vm1954 = vcmp.lt.s32.totalorder %v466, %v1884
        %vm1955 = vcmp.lt.s32.totalorder %v467, %v1884
        %vm1956 = vcmp.lt.s32.totalorder %v468, %v1884
        %vm1957 = vcmp.lt.s32.totalorder %v469, %v1884
        %vm1958 = vcmp.lt.s32.totalorder %v470, %v1884
        %vm1959 = vcmp.lt.s32.totalorder %v471, %v1884
        %vm1960 = vcmp.lt.s32.totalorder %v472, %v1884
        %vm1961 = vcmp.lt.s32.totalorder %v473, %v1884
        %vm1962 = vcmp.lt.s32.totalorder %v474, %v1884
        %vm1963 = vcmp.lt.s32.totalorder %v475, %v1884
        %vm1964 = vcmp.lt.s32.totalorder %v476, %v1884
        %vm1965 = vcmp.lt.s32.totalorder %v477, %v1884
        %vm1966 = vcmp.lt.s32.totalorder %v478, %v1884
        %vm1967 = vcmp.lt.s32.totalorder %v479, %v1884
        %vm1968 = vcmp.lt.s32.totalorder %v480, %v1884
        %vm1969 = vcmp.lt.s32.totalorder %v481, %v1884
        %vm1970 = vcmp.lt.s32.totalorder %v482, %v1884
        %vm1971 = vcmp.lt.s32.totalorder %v483, %v1884
        %vm1972 = vcmp.lt.s32.totalorder %v484, %v1884
        %vm1973 = vcmp.lt.s32.totalorder %v485, %v1884
        %vm1974 = vcmp.lt.s32.totalorder %v486, %v1884
        %vm1975 = vcmp.lt.s32.totalorder %v487, %v1884
        %vm1976 = vcmp.lt.s32.totalorder %v488, %v1884
        %vm1977 = vcmp.lt.s32.totalorder %v489, %v1884
        %vm1978 = vcmp.lt.s32.totalorder %v490, %v1884
        %vm1979 = vcmp.lt.s32.totalorder %v491, %v1884
        %vm1980 = vcmp.lt.s32.totalorder %v492, %v1884
        %vm1981 = vcmp.lt.s32.totalorder %v493, %v1884
        %vm1982 = vcmp.lt.s32.totalorder %v494, %v1884
        %vm1983 = vcmp.lt.s32.totalorder %v495, %v1884
        %vm1984 = vcmp.lt.s32.totalorder %v464, %v1887
        %vm1985 = vcmp.lt.s32.totalorder %v465, %v1887
        %vm1986 = vcmp.lt.s32.totalorder %v466, %v1887
        %vm1987 = vcmp.lt.s32.totalorder %v467, %v1887
        %vm1988 = vcmp.lt.s32.totalorder %v468, %v1887
        %vm1989 = vcmp.lt.s32.totalorder %v469, %v1887
        %vm1990 = vcmp.lt.s32.totalorder %v470, %v1887
        %vm1991 = vcmp.lt.s32.totalorder %v471, %v1887
        %vm1992 = vcmp.lt.s32.totalorder %v472, %v1887
        %vm1993 = vcmp.lt.s32.totalorder %v473, %v1887
        %vm1994 = vcmp.lt.s32.totalorder %v474, %v1887
        %vm1995 = vcmp.lt.s32.totalorder %v475, %v1887
        %vm1996 = vcmp.lt.s32.totalorder %v476, %v1887
        %vm1997 = vcmp.lt.s32.totalorder %v477, %v1887
        %vm1998 = vcmp.lt.s32.totalorder %v478, %v1887
        %vm1999 = vcmp.lt.s32.totalorder %v479, %v1887
        %vm2000 = vcmp.lt.s32.totalorder %v480, %v1887
        %vm2001 = vcmp.lt.s32.totalorder %v481, %v1887
        %vm2002 = vcmp.lt.s32.totalorder %v482, %v1887
        %vm2003 = vcmp.lt.s32.totalorder %v483, %v1887
        %vm2004 = vcmp.lt.s32.totalorder %v484, %v1887
        %vm2005 = vcmp.lt.s32.totalorder %v485, %v1887
        %vm2006 = vcmp.lt.s32.totalorder %v486, %v1887
        %vm2007 = vcmp.lt.s32.totalorder %v487, %v1887
        %vm2008 = vcmp.lt.s32.totalorder %v488, %v1887
        %vm2009 = vcmp.lt.s32.totalorder %v489, %v1887
        %vm2010 = vcmp.lt.s32.totalorder %v490, %v1887
        %vm2011 = vcmp.lt.s32.totalorder %v491, %v1887
        %vm2012 = vcmp.lt.s32.totalorder %v492, %v1887
        %vm2013 = vcmp.lt.s32.totalorder %v493, %v1887
        %vm2014 = vcmp.lt.s32.totalorder %v494, %v1887
        %vm2015 = vcmp.lt.s32.totalorder %v495, %v1887
        %vm2016 = vmand %vm1748, %vm1888
        %vm2017 = vmand %vm1749, %vm1889
        %vm2018 = vmand %vm1750, %vm1890
        %vm2019 = vmand %vm1751, %vm1891
        %vm2020 = vmand %vm1752, %vm1892
        %vm2021 = vmand %vm1753, %vm1893
        %vm2022 = vmand %vm1754, %vm1894
        %vm2023 = vmand %vm1755, %vm1895
        %vm2024 = vmand %vm1756, %vm1896
        %vm2025 = vmand %vm1757, %vm1897
        %vm2026 = vmand %vm1758, %vm1898
        %vm2027 = vmand %vm1759, %vm1899
        %vm2028 = vmand %vm1760, %vm1900
        %vm2029 = vmand %vm1761, %vm1901
        %vm2030 = vmand %vm1762, %vm1902
        %vm2031 = vmand %vm1763, %vm1903
        %vm2032 = vmand %vm1764, %vm1904
        %vm2033 = vmand %vm1765, %vm1905
        %vm2034 = vmand %vm1766, %vm1906
        %vm2035 = vmand %vm1767, %vm1907
        %vm2036 = vmand %vm1768, %vm1908
        %vm2037 = vmand %vm1769, %vm1909
        %vm2038 = vmand %vm1770, %vm1910
        %vm2039 = vmand %vm1771, %vm1911
        %vm2040 = vmand %vm1772, %vm1912
        %vm2041 = vmand %vm1773, %vm1913
        %vm2042 = vmand %vm1774, %vm1914
        %vm2043 = vmand %vm1775, %vm1915
        %vm2044 = vmand %vm1776, %vm1916
        %vm2045 = vmand %vm1777, %vm1917
        %vm2046 = vmand %vm1778, %vm1918
        %vm2047 = vmand %vm1779, %vm1919
        %vm2048 = vmand %vm1780, %vm1920
        %vm2049 = vmand %vm1781, %vm1921
        %vm2050 = vmand %vm1782, %vm1922
        %vm2051 = vmand %vm1783, %vm1923
        %vm2052 = vmand %vm1784, %vm1924
        %vm2053 = vmand %vm1785, %vm1925
        %vm2054 = vmand %vm1786, %vm1926
        %vm2055 = vmand %vm1787, %vm1927
        %vm2056 = vmand %vm1788, %vm1928
        %vm2057 = vmand %vm1789, %vm1929
        %vm2058 = vmand %vm1790, %vm1930
        %vm2059 = vmand %vm1791, %vm1931
        %vm2060 = vmand %vm1792, %vm1932
        %vm2061 = vmand %vm1793, %vm1933
        %vm2062 = vmand %vm1794, %vm1934
        %vm2063 = vmand %vm1795, %vm1935
        %vm2064 = vmand %vm1796, %vm1936
        %vm2065 = vmand %vm1797, %vm1937
        %vm2066 = vmand %vm1798, %vm1938
        %vm2067 = vmand %vm1799, %vm1939
        %vm2068 = vmand %vm1800, %vm1940
        %vm2069 = vmand %vm1801, %vm1941
        %vm2070 = vmand %vm1802, %vm1942
        %vm2071 = vmand %vm1803, %vm1943
        %vm2072 = vmand %vm1804, %vm1944
        %vm2073 = vmand %vm1805, %vm1945
        %vm2074 = vmand %vm1806, %vm1946
        %vm2075 = vmand %vm1807, %vm1947
        %vm2076 = vmand %vm1808, %vm1948
        %vm2077 = vmand %vm1809, %vm1949
        %vm2078 = vmand %vm1810, %vm1950
        %vm2079 = vmand %vm1811, %vm1951
        %vm2080 = vmand %vm1812, %vm1952
        %vm2081 = vmand %vm1813, %vm1953
        %vm2082 = vmand %vm1814, %vm1954
        %vm2083 = vmand %vm1815, %vm1955
        %vm2084 = vmand %vm1816, %vm1956
        %vm2085 = vmand %vm1817, %vm1957
        %vm2086 = vmand %vm1818, %vm1958
        %vm2087 = vmand %vm1819, %vm1959
        %vm2088 = vmand %vm1820, %vm1960
        %vm2089 = vmand %vm1821, %vm1961
        %vm2090 = vmand %vm1822, %vm1962
        %vm2091 = vmand %vm1823, %vm1963
        %vm2092 = vmand %vm1824, %vm1964
        %vm2093 = vmand %vm1825, %vm1965
        %vm2094 = vmand %vm1826, %vm1966
        %vm2095 = vmand %vm1827, %vm1967
        %vm2096 = vmand %vm1828, %vm1968
        %vm2097 = vmand %vm1829, %vm1969
        %vm2098 = vmand %vm1830, %vm1970
        %vm2099 = vmand %vm1831, %vm1971
        %vm2100 = vmand %vm1832, %vm1972
        %vm2101 = vmand %vm1833, %vm1973
        %vm2102 = vmand %vm1834, %vm1974
        %vm2103 = vmand %vm1835, %vm1975
        %vm2104 = vmand %vm1836, %vm1976
        %vm2105 = vmand %vm1837, %vm1977
        %vm2106 = vmand %vm1838, %vm1978
        %vm2107 = vmand %vm1839, %vm1979
        %vm2108 = vmand %vm1840, %vm1980
        %vm2109 = vmand %vm1841, %vm1981
        %vm2110 = vmand %vm1842, %vm1982
        %vm2111 = vmand %vm1843, %vm1983
        %vm2112 = vmand %vm1844, %vm1984
        %vm2113 = vmand %vm1845, %vm1985
        %vm2114 = vmand %vm1846, %vm1986
        %vm2115 = vmand %vm1847, %vm1987
        %vm2116 = vmand %vm1848, %vm1988
        %vm2117 = vmand %vm1849, %vm1989
        %vm2118 = vmand %vm1850, %vm1990
        %vm2119 = vmand %vm1851, %vm1991
        %vm2120 = vmand %vm1852, %vm1992
        %vm2121 = vmand %vm1853, %vm1993
        %vm2122 = vmand %vm1854, %vm1994
        %vm2123 = vmand %vm1855, %vm1995
        %vm2124 = vmand %vm1856, %vm1996
        %vm2125 = vmand %vm1857, %vm1997
        %vm2126 = vmand %vm1858, %vm1998
        %vm2127 = vmand %vm1859, %vm1999
        %vm2128 = vmand %vm1860, %vm2000
        %vm2129 = vmand %vm1861, %vm2001
        %vm2130 = vmand %vm1862, %vm2002
        %vm2131 = vmand %vm1863, %vm2003
        %vm2132 = vmand %vm1864, %vm2004
        %vm2133 = vmand %vm1865, %vm2005
        %vm2134 = vmand %vm1866, %vm2006
        %vm2135 = vmand %vm1867, %vm2007
        %vm2136 = vmand %vm1868, %vm2008
        %vm2137 = vmand %vm1869, %vm2009
        %vm2138 = vmand %vm1870, %vm2010
        %vm2139 = vmand %vm1871, %vm2011
        %vm2140 = vmand %vm1872, %vm2012
        %vm2141 = vmand %vm1873, %vm2013
        %vm2142 = vmand %vm1874, %vm2014
        %vm2143 = vmand %vm1875, %vm2015
        %2144 = vset.pattern.permute.xlu0 2
        %2145 = vperm.xlu0 %2144, %v1732
        %v2146 = vpop.permute.xlu0 %2145
        %2147 = vset.pattern.permute.xlu0 2
        %2148 = vperm.xlu0 %2147, %v1733
        %v2149 = vpop.permute.xlu0 %2148
        %2150 = vset.pattern.permute.xlu0 2
        %2151 = vperm.xlu0 %2150, %v1734
        %v2152 = vpop.permute.xlu0 %2151
        %2153 = vset.pattern.permute.xlu0 2
        %2154 = vperm.xlu0 %2153, %v1735
        %v2155 = vpop.permute.xlu0 %2154
        %vm2156 = vcmp.ge.s32.totalorder %v496, %v2146
        %vm2157 = vcmp.ge.s32.totalorder %v497, %v2146
        %vm2158 = vcmp.ge.s32.totalorder %v498, %v2146
        %vm2159 = vcmp.ge.s32.totalorder %v499, %v2146
        %vm2160 = vcmp.ge.s32.totalorder %v500, %v2146
        %vm2161 = vcmp.ge.s32.totalorder %v501, %v2146
        %vm2162 = vcmp.ge.s32.totalorder %v502, %v2146
        %vm2163 = vcmp.ge.s32.totalorder %v503, %v2146
        %vm2164 = vcmp.ge.s32.totalorder %v504, %v2146
        %vm2165 = vcmp.ge.s32.totalorder %v505, %v2146
        %vm2166 = vcmp.ge.s32.totalorder %v506, %v2146
        %vm2167 = vcmp.ge.s32.totalorder %v507, %v2146
        %vm2168 = vcmp.ge.s32.totalorder %v508, %v2146
        %vm2169 = vcmp.ge.s32.totalorder %v509, %v2146
        %vm2170 = vcmp.ge.s32.totalorder %v510, %v2146
        %vm2171 = vcmp.ge.s32.totalorder %v511, %v2146
        %vm2172 = vcmp.ge.s32.totalorder %v512, %v2146
        %vm2173 = vcmp.ge.s32.totalorder %v513, %v2146
        %vm2174 = vcmp.ge.s32.totalorder %v514, %v2146
        %vm2175 = vcmp.ge.s32.totalorder %v515, %v2146
        %vm2176 = vcmp.ge.s32.totalorder %v516, %v2146
        %vm2177 = vcmp.ge.s32.totalorder %v517, %v2146
        %vm2178 = vcmp.ge.s32.totalorder %v518, %v2146
        %vm2179 = vcmp.ge.s32.totalorder %v519, %v2146
        %vm2180 = vcmp.ge.s32.totalorder %v520, %v2146
        %vm2181 = vcmp.ge.s32.totalorder %v521, %v2146
        %vm2182 = vcmp.ge.s32.totalorder %v522, %v2146
        %vm2183 = vcmp.ge.s32.totalorder %v523, %v2146
        %vm2184 = vcmp.ge.s32.totalorder %v524, %v2146
        %vm2185 = vcmp.ge.s32.totalorder %v525, %v2146
        %vm2186 = vcmp.ge.s32.totalorder %v526, %v2146
        %vm2187 = vcmp.ge.s32.totalorder %v527, %v2146
        %vm2188 = vcmp.ge.s32.totalorder %v496, %v2149
        %vm2189 = vcmp.ge.s32.totalorder %v497, %v2149
        %vm2190 = vcmp.ge.s32.totalorder %v498, %v2149
        %vm2191 = vcmp.ge.s32.totalorder %v499, %v2149
        %vm2192 = vcmp.ge.s32.totalorder %v500, %v2149
        %vm2193 = vcmp.ge.s32.totalorder %v501, %v2149
        %vm2194 = vcmp.ge.s32.totalorder %v502, %v2149
        %vm2195 = vcmp.ge.s32.totalorder %v503, %v2149
        %vm2196 = vcmp.ge.s32.totalorder %v504, %v2149
        %vm2197 = vcmp.ge.s32.totalorder %v505, %v2149
        %vm2198 = vcmp.ge.s32.totalorder %v506, %v2149
        %vm2199 = vcmp.ge.s32.totalorder %v507, %v2149
        %vm2200 = vcmp.ge.s32.totalorder %v508, %v2149
        %vm2201 = vcmp.ge.s32.totalorder %v509, %v2149
        %vm2202 = vcmp.ge.s32.totalorder %v510, %v2149
        %vm2203 = vcmp.ge.s32.totalorder %v511, %v2149
        %vm2204 = vcmp.ge.s32.totalorder %v512, %v2149
        %vm2205 = vcmp.ge.s32.totalorder %v513, %v2149
        %vm2206 = vcmp.ge.s32.totalorder %v514, %v2149
        %vm2207 = vcmp.ge.s32.totalorder %v515, %v2149
        %vm2208 = vcmp.ge.s32.totalorder %v516, %v2149
        %vm2209 = vcmp.ge.s32.totalorder %v517, %v2149
        %vm2210 = vcmp.ge.s32.totalorder %v518, %v2149
        %vm2211 = vcmp.ge.s32.totalorder %v519, %v2149
        %vm2212 = vcmp.ge.s32.totalorder %v520, %v2149
        %vm2213 = vcmp.ge.s32.totalorder %v521, %v2149
        %vm2214 = vcmp.ge.s32.totalorder %v522, %v2149
        %vm2215 = vcmp.ge.s32.totalorder %v523, %v2149
        %vm2216 = vcmp.ge.s32.totalorder %v524, %v2149
        %vm2217 = vcmp.ge.s32.totalorder %v525, %v2149
        %vm2218 = vcmp.ge.s32.totalorder %v526, %v2149
        %vm2219 = vcmp.ge.s32.totalorder %v527, %v2149
        %vm2220 = vcmp.ge.s32.totalorder %v496, %v2152
        %vm2221 = vcmp.ge.s32.totalorder %v497, %v2152
        %vm2222 = vcmp.ge.s32.totalorder %v498, %v2152
        %vm2223 = vcmp.ge.s32.totalorder %v499, %v2152
        %vm2224 = vcmp.ge.s32.totalorder %v500, %v2152
        %vm2225 = vcmp.ge.s32.totalorder %v501, %v2152
        %vm2226 = vcmp.ge.s32.totalorder %v502, %v2152
        %vm2227 = vcmp.ge.s32.totalorder %v503, %v2152
        %vm2228 = vcmp.ge.s32.totalorder %v504, %v2152
        %vm2229 = vcmp.ge.s32.totalorder %v505, %v2152
        %vm2230 = vcmp.ge.s32.totalorder %v506, %v2152
        %vm2231 = vcmp.ge.s32.totalorder %v507, %v2152
        %vm2232 = vcmp.ge.s32.totalorder %v508, %v2152
        %vm2233 = vcmp.ge.s32.totalorder %v509, %v2152
        %vm2234 = vcmp.ge.s32.totalorder %v510, %v2152
        %vm2235 = vcmp.ge.s32.totalorder %v511, %v2152
        %vm2236 = vcmp.ge.s32.totalorder %v512, %v2152
        %vm2237 = vcmp.ge.s32.totalorder %v513, %v2152
        %vm2238 = vcmp.ge.s32.totalorder %v514, %v2152
        %vm2239 = vcmp.ge.s32.totalorder %v515, %v2152
        %vm2240 = vcmp.ge.s32.totalorder %v516, %v2152
        %vm2241 = vcmp.ge.s32.totalorder %v517, %v2152
        %vm2242 = vcmp.ge.s32.totalorder %v518, %v2152
        %vm2243 = vcmp.ge.s32.totalorder %v519, %v2152
        %vm2244 = vcmp.ge.s32.totalorder %v520, %v2152
        %vm2245 = vcmp.ge.s32.totalorder %v521, %v2152
        %vm2246 = vcmp.ge.s32.totalorder %v522, %v2152
        %vm2247 = vcmp.ge.s32.totalorder %v523, %v2152
        %vm2248 = vcmp.ge.s32.totalorder %v524, %v2152
        %vm2249 = vcmp.ge.s32.totalorder %v525, %v2152
        %vm2250 = vcmp.ge.s32.totalorder %v526, %v2152
        %vm2251 = vcmp.ge.s32.totalorder %v527, %v2152
        %vm2252 = vcmp.ge.s32.totalorder %v496, %v2155
        %vm2253 = vcmp.ge.s32.totalorder %v497, %v2155
        %vm2254 = vcmp.ge.s32.totalorder %v498, %v2155
        %vm2255 = vcmp.ge.s32.totalorder %v499, %v2155
        %vm2256 = vcmp.ge.s32.totalorder %v500, %v2155
        %vm2257 = vcmp.ge.s32.totalorder %v501, %v2155
        %vm2258 = vcmp.ge.s32.totalorder %v502, %v2155
        %vm2259 = vcmp.ge.s32.totalorder %v503, %v2155
        %vm2260 = vcmp.ge.s32.totalorder %v504, %v2155
        %vm2261 = vcmp.ge.s32.totalorder %v505, %v2155
        %vm2262 = vcmp.ge.s32.totalorder %v506, %v2155
        %vm2263 = vcmp.ge.s32.totalorder %v507, %v2155
        %vm2264 = vcmp.ge.s32.totalorder %v508, %v2155
        %vm2265 = vcmp.ge.s32.totalorder %v509, %v2155
        %vm2266 = vcmp.ge.s32.totalorder %v510, %v2155
        %vm2267 = vcmp.ge.s32.totalorder %v511, %v2155
        %vm2268 = vcmp.ge.s32.totalorder %v512, %v2155
        %vm2269 = vcmp.ge.s32.totalorder %v513, %v2155
        %vm2270 = vcmp.ge.s32.totalorder %v514, %v2155
        %vm2271 = vcmp.ge.s32.totalorder %v515, %v2155
        %vm2272 = vcmp.ge.s32.totalorder %v516, %v2155
        %vm2273 = vcmp.ge.s32.totalorder %v517, %v2155
        %vm2274 = vcmp.ge.s32.totalorder %v518, %v2155
        %vm2275 = vcmp.ge.s32.totalorder %v519, %v2155
        %vm2276 = vcmp.ge.s32.totalorder %v520, %v2155
        %vm2277 = vcmp.ge.s32.totalorder %v521, %v2155
        %vm2278 = vcmp.ge.s32.totalorder %v522, %v2155
        %vm2279 = vcmp.ge.s32.totalorder %v523, %v2155
        %vm2280 = vcmp.ge.s32.totalorder %v524, %v2155
        %vm2281 = vcmp.ge.s32.totalorder %v525, %v2155
        %vm2282 = vcmp.ge.s32.totalorder %v526, %v2155
        %vm2283 = vcmp.ge.s32.totalorder %v527, %v2155
        %vm2284 = vmand %vm2016, %vm2156
        %vm2285 = vmand %vm2017, %vm2157
        %vm2286 = vmand %vm2018, %vm2158
        %vm2287 = vmand %vm2019, %vm2159
        %vm2288 = vmand %vm2020, %vm2160
        %vm2289 = vmand %vm2021, %vm2161
        %vm2290 = vmand %vm2022, %vm2162
        %vm2291 = vmand %vm2023, %vm2163
        %vm2292 = vmand %vm2024, %vm2164
        %vm2293 = vmand %vm2025, %vm2165
        %vm2294 = vmand %vm2026, %vm2166
        %vm2295 = vmand %vm2027, %vm2167
        %vm2296 = vmand %vm2028, %vm2168
        %vm2297 = vmand %vm2029, %vm2169
        %vm2298 = vmand %vm2030, %vm2170
        %vm2299 = vmand %vm2031, %vm2171
        %vm2300 = vmand %vm2032, %vm2172
        %vm2301 = vmand %vm2033, %vm2173
        %vm2302 = vmand %vm2034, %vm2174
        %vm2303 = vmand %vm2035, %vm2175
        %vm2304 = vmand %vm2036, %vm2176
        %vm2305 = vmand %vm2037, %vm2177
        %vm2306 = vmand %vm2038, %vm2178
        %vm2307 = vmand %vm2039, %vm2179
        %vm2308 = vmand %vm2040, %vm2180
        %vm2309 = vmand %vm2041, %vm2181
        %vm2310 = vmand %vm2042, %vm2182
        %vm2311 = vmand %vm2043, %vm2183
        %vm2312 = vmand %vm2044, %vm2184
        %vm2313 = vmand %vm2045, %vm2185
        %vm2314 = vmand %vm2046, %vm2186
        %vm2315 = vmand %vm2047, %vm2187
        %vm2316 = vmand %vm2048, %vm2188
        %vm2317 = vmand %vm2049, %vm2189
        %vm2318 = vmand %vm2050, %vm2190
        %vm2319 = vmand %vm2051, %vm2191
        %vm2320 = vmand %vm2052, %vm2192
        %vm2321 = vmand %vm2053, %vm2193
        %vm2322 = vmand %vm2054, %vm2194
        %vm2323 = vmand %vm2055, %vm2195
        %vm2324 = vmand %vm2056, %vm2196
        %vm2325 = vmand %vm2057, %vm2197
        %vm2326 = vmand %vm2058, %vm2198
        %vm2327 = vmand %vm2059, %vm2199
        %vm2328 = vmand %vm2060, %vm2200
        %vm2329 = vmand %vm2061, %vm2201
        %vm2330 = vmand %vm2062, %vm2202
        %vm2331 = vmand %vm2063, %vm2203
        %vm2332 = vmand %vm2064, %vm2204
        %vm2333 = vmand %vm2065, %vm2205
        %vm2334 = vmand %vm2066, %vm2206
        %vm2335 = vmand %vm2067, %vm2207
        %vm2336 = vmand %vm2068, %vm2208
        %vm2337 = vmand %vm2069, %vm2209
        %vm2338 = vmand %vm2070, %vm2210
        %vm2339 = vmand %vm2071, %vm2211
        %vm2340 = vmand %vm2072, %vm2212
        %vm2341 = vmand %vm2073, %vm2213
        %vm2342 = vmand %vm2074, %vm2214
        %vm2343 = vmand %vm2075, %vm2215
        %vm2344 = vmand %vm2076, %vm2216
        %vm2345 = vmand %vm2077, %vm2217
        %vm2346 = vmand %vm2078, %vm2218
        %vm2347 = vmand %vm2079, %vm2219
        %vm2348 = vmand %vm2080, %vm2220
        %vm2349 = vmand %vm2081, %vm2221
        %vm2350 = vmand %vm2082, %vm2222
        %vm2351 = vmand %vm2083, %vm2223
        %vm2352 = vmand %vm2084, %vm2224
        %vm2353 = vmand %vm2085, %vm2225
        %vm2354 = vmand %vm2086, %vm2226
        %vm2355 = vmand %vm2087, %vm2227
        %vm2356 = vmand %vm2088, %vm2228
        %vm2357 = vmand %vm2089, %vm2229
        %vm2358 = vmand %vm2090, %vm2230
        %vm2359 = vmand %vm2091, %vm2231
        %vm2360 = vmand %vm2092, %vm2232
        %vm2361 = vmand %vm2093, %vm2233
        %vm2362 = vmand %vm2094, %vm2234
        %vm2363 = vmand %vm2095, %vm2235
        %vm2364 = vmand %vm2096, %vm2236
        %vm2365 = vmand %vm2097, %vm2237
        %vm2366 = vmand %vm2098, %vm2238
        %vm2367 = vmand %vm2099, %vm2239
        %vm2368 = vmand %vm2100, %vm2240
        %vm2369 = vmand %vm2101, %vm2241
        %vm2370 = vmand %vm2102, %vm2242
        %vm2371 = vmand %vm2103, %vm2243
        %vm2372 = vmand %vm2104, %vm2244
        %vm2373 = vmand %vm2105, %vm2245
        %vm2374 = vmand %vm2106, %vm2246
        %vm2375 = vmand %vm2107, %vm2247
        %vm2376 = vmand %vm2108, %vm2248
        %vm2377 = vmand %vm2109, %vm2249
        %vm2378 = vmand %vm2110, %vm2250
        %vm2379 = vmand %vm2111, %vm2251
        %vm2380 = vmand %vm2112, %vm2252
        %vm2381 = vmand %vm2113, %vm2253
        %vm2382 = vmand %vm2114, %vm2254
        %vm2383 = vmand %vm2115, %vm2255
        %vm2384 = vmand %vm2116, %vm2256
        %vm2385 = vmand %vm2117, %vm2257
        %vm2386 = vmand %vm2118, %vm2258
        %vm2387 = vmand %vm2119, %vm2259
        %vm2388 = vmand %vm2120, %vm2260
        %vm2389 = vmand %vm2121, %vm2261
        %vm2390 = vmand %vm2122, %vm2262
        %vm2391 = vmand %vm2123, %vm2263
        %vm2392 = vmand %vm2124, %vm2264
        %vm2393 = vmand %vm2125, %vm2265
        %vm2394 = vmand %vm2126, %vm2266
        %vm2395 = vmand %vm2127, %vm2267
        %vm2396 = vmand %vm2128, %vm2268
        %vm2397 = vmand %vm2129, %vm2269
        %vm2398 = vmand %vm2130, %vm2270
        %vm2399 = vmand %vm2131, %vm2271
        %vm2400 = vmand %vm2132, %vm2272
        %vm2401 = vmand %vm2133, %vm2273
        %vm2402 = vmand %vm2134, %vm2274
        %vm2403 = vmand %vm2135, %vm2275
        %vm2404 = vmand %vm2136, %vm2276
        %vm2405 = vmand %vm2137, %vm2277
        %vm2406 = vmand %vm2138, %vm2278
        %vm2407 = vmand %vm2139, %vm2279
        %vm2408 = vmand %vm2140, %vm2280
        %vm2409 = vmand %vm2141, %vm2281
        %vm2410 = vmand %vm2142, %vm2282
        %vm2411 = vmand %vm2143, %vm2283
        %2412 = vset.pattern.permute.xlu0 3
        %2413 = vperm.xlu0 %2412, %v1732
        %v2414 = vpop.permute.xlu0 %2413
        %2415 = vset.pattern.permute.xlu0 3
        %2416 = vperm.xlu0 %2415, %v1733
        %v2417 = vpop.permute.xlu0 %2416
        %2418 = vset.pattern.permute.xlu0 3
        %2419 = vperm.xlu0 %2418, %v1734
        %v2420 = vpop.permute.xlu0 %2419
        %2421 = vset.pattern.permute.xlu0 3
        %2422 = vperm.xlu0 %2421, %v1735
        %v2423 = vpop.permute.xlu0 %2422
        %vm2424 = vcmp.lt.s32.totalorder %v496, %v2414
        %vm2425 = vcmp.lt.s32.totalorder %v497, %v2414
        %vm2426 = vcmp.lt.s32.totalorder %v498, %v2414
        %vm2427 = vcmp.lt.s32.totalorder %v499, %v2414
        %vm2428 = vcmp.lt.s32.totalorder %v500, %v2414
        %vm2429 = vcmp.lt.s32.totalorder %v501, %v2414
        %vm2430 = vcmp.lt.s32.totalorder %v502, %v2414
        %vm2431 = vcmp.lt.s32.totalorder %v503, %v2414
        %vm2432 = vcmp.lt.s32.totalorder %v504, %v2414
        %vm2433 = vcmp.lt.s32.totalorder %v505, %v2414
        %vm2434 = vcmp.lt.s32.totalorder %v506, %v2414
        %vm2435 = vcmp.lt.s32.totalorder %v507, %v2414
        %vm2436 = vcmp.lt.s32.totalorder %v508, %v2414
        %vm2437 = vcmp.lt.s32.totalorder %v509, %v2414
        %vm2438 = vcmp.lt.s32.totalorder %v510, %v2414
        %vm2439 = vcmp.lt.s32.totalorder %v511, %v2414
        %vm2440 = vcmp.lt.s32.totalorder %v512, %v2414
        %vm2441 = vcmp.lt.s32.totalorder %v513, %v2414
        %vm2442 = vcmp.lt.s32.totalorder %v514, %v2414
        %vm2443 = vcmp.lt.s32.totalorder %v515, %v2414
        %vm2444 = vcmp.lt.s32.totalorder %v516, %v2414
        %vm2445 = vcmp.lt.s32.totalorder %v517, %v2414
        %vm2446 = vcmp.lt.s32.totalorder %v518, %v2414
        %vm2447 = vcmp.lt.s32.totalorder %v519, %v2414
        %vm2448 = vcmp.lt.s32.totalorder %v520, %v2414
        %vm2449 = vcmp.lt.s32.totalorder %v521, %v2414
        %vm2450 = vcmp.lt.s32.totalorder %v522, %v2414
        %vm2451 = vcmp.lt.s32.totalorder %v523, %v2414
        %vm2452 = vcmp.lt.s32.totalorder %v524, %v2414
        %vm2453 = vcmp.lt.s32.totalorder %v525, %v2414
        %vm2454 = vcmp.lt.s32.totalorder %v526, %v2414
        %vm2455 = vcmp.lt.s32.totalorder %v527, %v2414
        %vm2456 = vcmp.lt.s32.totalorder %v496, %v2417
        %vm2457 = vcmp.lt.s32.totalorder %v497, %v2417
        %vm2458 = vcmp.lt.s32.totalorder %v498, %v2417
        %vm2459 = vcmp.lt.s32.totalorder %v499, %v2417
        %vm2460 = vcmp.lt.s32.totalorder %v500, %v2417
        %vm2461 = vcmp.lt.s32.totalorder %v501, %v2417
        %vm2462 = vcmp.lt.s32.totalorder %v502, %v2417
        %vm2463 = vcmp.lt.s32.totalorder %v503, %v2417
        %vm2464 = vcmp.lt.s32.totalorder %v504, %v2417
        %vm2465 = vcmp.lt.s32.totalorder %v505, %v2417
        %vm2466 = vcmp.lt.s32.totalorder %v506, %v2417
        %vm2467 = vcmp.lt.s32.totalorder %v507, %v2417
        %vm2468 = vcmp.lt.s32.totalorder %v508, %v2417
        %vm2469 = vcmp.lt.s32.totalorder %v509, %v2417
        %vm2470 = vcmp.lt.s32.totalorder %v510, %v2417
        %vm2471 = vcmp.lt.s32.totalorder %v511, %v2417
        %vm2472 = vcmp.lt.s32.totalorder %v512, %v2417
        %vm2473 = vcmp.lt.s32.totalorder %v513, %v2417
        %vm2474 = vcmp.lt.s32.totalorder %v514, %v2417
        %vm2475 = vcmp.lt.s32.totalorder %v515, %v2417
        %vm2476 = vcmp.lt.s32.totalorder %v516, %v2417
        %vm2477 = vcmp.lt.s32.totalorder %v517, %v2417
        %vm2478 = vcmp.lt.s32.totalorder %v518, %v2417
        %vm2479 = vcmp.lt.s32.totalorder %v519, %v2417
        %vm2480 = vcmp.lt.s32.totalorder %v520, %v2417
        %vm2481 = vcmp.lt.s32.totalorder %v521, %v2417
        %vm2482 = vcmp.lt.s32.totalorder %v522, %v2417
        %vm2483 = vcmp.lt.s32.totalorder %v523, %v2417
        %vm2484 = vcmp.lt.s32.totalorder %v524, %v2417
        %vm2485 = vcmp.lt.s32.totalorder %v525, %v2417
        %vm2486 = vcmp.lt.s32.totalorder %v526, %v2417
        %vm2487 = vcmp.lt.s32.totalorder %v527, %v2417
        %vm2488 = vcmp.lt.s32.totalorder %v496, %v2420
        %vm2489 = vcmp.lt.s32.totalorder %v497, %v2420
        %vm2490 = vcmp.lt.s32.totalorder %v498, %v2420
        %vm2491 = vcmp.lt.s32.totalorder %v499, %v2420
        %vm2492 = vcmp.lt.s32.totalorder %v500, %v2420
        %vm2493 = vcmp.lt.s32.totalorder %v501, %v2420
        %vm2494 = vcmp.lt.s32.totalorder %v502, %v2420
        %vm2495 = vcmp.lt.s32.totalorder %v503, %v2420
        %vm2496 = vcmp.lt.s32.totalorder %v504, %v2420
        %vm2497 = vcmp.lt.s32.totalorder %v505, %v2420
        %vm2498 = vcmp.lt.s32.totalorder %v506, %v2420
        %vm2499 = vcmp.lt.s32.totalorder %v507, %v2420
        %vm2500 = vcmp.lt.s32.totalorder %v508, %v2420
        %vm2501 = vcmp.lt.s32.totalorder %v509, %v2420
        %vm2502 = vcmp.lt.s32.totalorder %v510, %v2420
        %vm2503 = vcmp.lt.s32.totalorder %v511, %v2420
        %vm2504 = vcmp.lt.s32.totalorder %v512, %v2420
        %vm2505 = vcmp.lt.s32.totalorder %v513, %v2420
        %vm2506 = vcmp.lt.s32.totalorder %v514, %v2420
        %vm2507 = vcmp.lt.s32.totalorder %v515, %v2420
        %vm2508 = vcmp.lt.s32.totalorder %v516, %v2420
        %vm2509 = vcmp.lt.s32.totalorder %v517, %v2420
        %vm2510 = vcmp.lt.s32.totalorder %v518, %v2420
        %vm2511 = vcmp.lt.s32.totalorder %v519, %v2420
        %vm2512 = vcmp.lt.s32.totalorder %v520, %v2420
        %vm2513 = vcmp.lt.s32.totalorder %v521, %v2420
        %vm2514 = vcmp.lt.s32.totalorder %v522, %v2420
        %vm2515 = vcmp.lt.s32.totalorder %v523, %v2420
        %vm2516 = vcmp.lt.s32.totalorder %v524, %v2420
        %vm2517 = vcmp.lt.s32.totalorder %v525, %v2420
        %vm2518 = vcmp.lt.s32.totalorder %v526, %v2420
        %vm2519 = vcmp.lt.s32.totalorder %v527, %v2420
        %vm2520 = vcmp.lt.s32.totalorder %v496, %v2423
        %vm2521 = vcmp.lt.s32.totalorder %v497, %v2423
        %vm2522 = vcmp.lt.s32.totalorder %v498, %v2423
        %vm2523 = vcmp.lt.s32.totalorder %v499, %v2423
        %vm2524 = vcmp.lt.s32.totalorder %v500, %v2423
        %vm2525 = vcmp.lt.s32.totalorder %v501, %v2423
        %vm2526 = vcmp.lt.s32.totalorder %v502, %v2423
        %vm2527 = vcmp.lt.s32.totalorder %v503, %v2423
        %vm2528 = vcmp.lt.s32.totalorder %v504, %v2423
        %vm2529 = vcmp.lt.s32.totalorder %v505, %v2423
        %vm2530 = vcmp.lt.s32.totalorder %v506, %v2423
        %vm2531 = vcmp.lt.s32.totalorder %v507, %v2423
        %vm2532 = vcmp.lt.s32.totalorder %v508, %v2423
        %vm2533 = vcmp.lt.s32.totalorder %v509, %v2423
        %vm2534 = vcmp.lt.s32.totalorder %v510, %v2423
        %vm2535 = vcmp.lt.s32.totalorder %v511, %v2423
        %vm2536 = vcmp.lt.s32.totalorder %v512, %v2423
        %vm2537 = vcmp.lt.s32.totalorder %v513, %v2423
        %vm2538 = vcmp.lt.s32.totalorder %v514, %v2423
        %vm2539 = vcmp.lt.s32.totalorder %v515, %v2423
        %vm2540 = vcmp.lt.s32.totalorder %v516, %v2423
        %vm2541 = vcmp.lt.s32.totalorder %v517, %v2423
        %vm2542 = vcmp.lt.s32.totalorder %v518, %v2423
        %vm2543 = vcmp.lt.s32.totalorder %v519, %v2423
        %vm2544 = vcmp.lt.s32.totalorder %v520, %v2423
        %vm2545 = vcmp.lt.s32.totalorder %v521, %v2423
        %vm2546 = vcmp.lt.s32.totalorder %v522, %v2423
        %vm2547 = vcmp.lt.s32.totalorder %v523, %v2423
        %vm2548 = vcmp.lt.s32.totalorder %v524, %v2423
        %vm2549 = vcmp.lt.s32.totalorder %v525, %v2423
        %vm2550 = vcmp.lt.s32.totalorder %v526, %v2423
        %vm2551 = vcmp.lt.s32.totalorder %v527, %v2423
        %vm2552 = vmand %vm2284, %vm2424
        %vm2553 = vmand %vm2285, %vm2425
        %vm2554 = vmand %vm2286, %vm2426
        %vm2555 = vmand %vm2287, %vm2427
        %vm2556 = vmand %vm2288, %vm2428
        %vm2557 = vmand %vm2289, %vm2429
        %vm2558 = vmand %vm2290, %vm2430
        %vm2559 = vmand %vm2291, %vm2431
        %vm2560 = vmand %vm2292, %vm2432
        %vm2561 = vmand %vm2293, %vm2433
        %vm2562 = vmand %vm2294, %vm2434
        %vm2563 = vmand %vm2295, %vm2435
        %vm2564 = vmand %vm2296, %vm2436
        %vm2565 = vmand %vm2297, %vm2437
        %vm2566 = vmand %vm2298, %vm2438
        %vm2567 = vmand %vm2299, %vm2439
        %vm2568 = vmand %vm2300, %vm2440
        %vm2569 = vmand %vm2301, %vm2441
        %vm2570 = vmand %vm2302, %vm2442
        %vm2571 = vmand %vm2303, %vm2443
        %vm2572 = vmand %vm2304, %vm2444
        %vm2573 = vmand %vm2305, %vm2445
        %vm2574 = vmand %vm2306, %vm2446
        %vm2575 = vmand %vm2307, %vm2447
        %vm2576 = vmand %vm2308, %vm2448
        %vm2577 = vmand %vm2309, %vm2449
        %vm2578 = vmand %vm2310, %vm2450
        %vm2579 = vmand %vm2311, %vm2451
        %vm2580 = vmand %vm2312, %vm2452
        %vm2581 = vmand %vm2313, %vm2453
        %vm2582 = vmand %vm2314, %vm2454
        %vm2583 = vmand %vm2315, %vm2455
        %vm2584 = vmand %vm2316, %vm2456
        %vm2585 = vmand %vm2317, %vm2457
        %vm2586 = vmand %vm2318, %vm2458
        %vm2587 = vmand %vm2319, %vm2459
        %vm2588 = vmand %vm2320, %vm2460
        %vm2589 = vmand %vm2321, %vm2461
        %vm2590 = vmand %vm2322, %vm2462
        %vm2591 = vmand %vm2323, %vm2463
        %vm2592 = vmand %vm2324, %vm2464
        %vm2593 = vmand %vm2325, %vm2465
        %vm2594 = vmand %vm2326, %vm2466
        %vm2595 = vmand %vm2327, %vm2467
        %vm2596 = vmand %vm2328, %vm2468
        %vm2597 = vmand %vm2329, %vm2469
        %vm2598 = vmand %vm2330, %vm2470
        %vm2599 = vmand %vm2331, %vm2471
        %vm2600 = vmand %vm2332, %vm2472
        %vm2601 = vmand %vm2333, %vm2473
        %vm2602 = vmand %vm2334, %vm2474
        %vm2603 = vmand %vm2335, %vm2475
        %vm2604 = vmand %vm2336, %vm2476
        %vm2605 = vmand %vm2337, %vm2477
        %vm2606 = vmand %vm2338, %vm2478
        %vm2607 = vmand %vm2339, %vm2479
        %vm2608 = vmand %vm2340, %vm2480
        %vm2609 = vmand %vm2341, %vm2481
        %vm2610 = vmand %vm2342, %vm2482
        %vm2611 = vmand %vm2343, %vm2483
        %vm2612 = vmand %vm2344, %vm2484
        %vm2613 = vmand %vm2345, %vm2485
        %vm2614 = vmand %vm2346, %vm2486
        %vm2615 = vmand %vm2347, %vm2487
        %vm2616 = vmand %vm2348, %vm2488
        %vm2617 = vmand %vm2349, %vm2489
        %vm2618 = vmand %vm2350, %vm2490
        %vm2619 = vmand %vm2351, %vm2491
        %vm2620 = vmand %vm2352, %vm2492
        %vm2621 = vmand %vm2353, %vm2493
        %vm2622 = vmand %vm2354, %vm2494
        %vm2623 = vmand %vm2355, %vm2495
        %vm2624 = vmand %vm2356, %vm2496
        %vm2625 = vmand %vm2357, %vm2497
        %vm2626 = vmand %vm2358, %vm2498
        %vm2627 = vmand %vm2359, %vm2499
        %vm2628 = vmand %vm2360, %vm2500
        %vm2629 = vmand %vm2361, %vm2501
        %vm2630 = vmand %vm2362, %vm2502
        %vm2631 = vmand %vm2363, %vm2503
        %vm2632 = vmand %vm2364, %vm2504
        %vm2633 = vmand %vm2365, %vm2505
        %vm2634 = vmand %vm2366, %vm2506
        %vm2635 = vmand %vm2367, %vm2507
        %vm2636 = vmand %vm2368, %vm2508
        %vm2637 = vmand %vm2369, %vm2509
        %vm2638 = vmand %vm2370, %vm2510
        %vm2639 = vmand %vm2371, %vm2511
        %vm2640 = vmand %vm2372, %vm2512
        %vm2641 = vmand %vm2373, %vm2513
        %vm2642 = vmand %vm2374, %vm2514
        %vm2643 = vmand %vm2375, %vm2515
        %vm2644 = vmand %vm2376, %vm2516
        %vm2645 = vmand %vm2377, %vm2517
        %vm2646 = vmand %vm2378, %vm2518
        %vm2647 = vmand %vm2379, %vm2519
        %vm2648 = vmand %vm2380, %vm2520
        %vm2649 = vmand %vm2381, %vm2521
        %vm2650 = vmand %vm2382, %vm2522
        %vm2651 = vmand %vm2383, %vm2523
        %vm2652 = vmand %vm2384, %vm2524
        %vm2653 = vmand %vm2385, %vm2525
        %vm2654 = vmand %vm2386, %vm2526
        %vm2655 = vmand %vm2387, %vm2527
        %vm2656 = vmand %vm2388, %vm2528
        %vm2657 = vmand %vm2389, %vm2529
        %vm2658 = vmand %vm2390, %vm2530
        %vm2659 = vmand %vm2391, %vm2531
        %vm2660 = vmand %vm2392, %vm2532
        %vm2661 = vmand %vm2393, %vm2533
        %vm2662 = vmand %vm2394, %vm2534
        %vm2663 = vmand %vm2395, %vm2535
        %vm2664 = vmand %vm2396, %vm2536
        %vm2665 = vmand %vm2397, %vm2537
        %vm2666 = vmand %vm2398, %vm2538
        %vm2667 = vmand %vm2399, %vm2539
        %vm2668 = vmand %vm2400, %vm2540
        %vm2669 = vmand %vm2401, %vm2541
        %vm2670 = vmand %vm2402, %vm2542
        %vm2671 = vmand %vm2403, %vm2543
        %vm2672 = vmand %vm2404, %vm2544
        %vm2673 = vmand %vm2405, %vm2545
        %vm2674 = vmand %vm2406, %vm2546
        %vm2675 = vmand %vm2407, %vm2547
        %vm2676 = vmand %vm2408, %vm2548
        %vm2677 = vmand %vm2409, %vm2549
        %vm2678 = vmand %vm2410, %vm2550
        %vm2679 = vmand %vm2411, %vm2551
        %v2680 = vsel %vm2552, 1.0, 0.0
        %v2681 = vsel %vm2553, 1.0, 0.0
        %v2682 = vsel %vm2554, 1.0, 0.0
        %v2683 = vsel %vm2555, 1.0, 0.0
        %v2684 = vsel %vm2556, 1.0, 0.0
        %v2685 = vsel %vm2557, 1.0, 0.0
        %v2686 = vsel %vm2558, 1.0, 0.0
        %v2687 = vsel %vm2559, 1.0, 0.0
        %v2688 = vsel %vm2560, 1.0, 0.0
        %v2689 = vsel %vm2561, 1.0, 0.0
        %v2690 = vsel %vm2562, 1.0, 0.0
        %v2691 = vsel %vm2563, 1.0, 0.0
        %v2692 = vsel %vm2564, 1.0, 0.0
        %v2693 = vsel %vm2565, 1.0, 0.0
        %v2694 = vsel %vm2566, 1.0, 0.0
        %v2695 = vsel %vm2567, 1.0, 0.0
        %v2696 = vsel %vm2568, 1.0, 0.0
        %v2697 = vsel %vm2569, 1.0, 0.0
        %v2698 = vsel %vm2570, 1.0, 0.0
        %v2699 = vsel %vm2571, 1.0, 0.0
        %v2700 = vsel %vm2572, 1.0, 0.0
        %v2701 = vsel %vm2573, 1.0, 0.0
        %v2702 = vsel %vm2574, 1.0, 0.0
        %v2703 = vsel %vm2575, 1.0, 0.0
        %v2704 = vsel %vm2576, 1.0, 0.0
        %v2705 = vsel %vm2577, 1.0, 0.0
        %v2706 = vsel %vm2578, 1.0, 0.0
        %v2707 = vsel %vm2579, 1.0, 0.0
        %v2708 = vsel %vm2580, 1.0, 0.0
        %v2709 = vsel %vm2581, 1.0, 0.0
        %v2710 = vsel %vm2582, 1.0, 0.0
        %v2711 = vsel %vm2583, 1.0, 0.0
        %v2712 = vsel %vm2584, 1.0, 0.0
        %v2713 = vsel %vm2585, 1.0, 0.0
        %v2714 = vsel %vm2586, 1.0, 0.0
        %v2715 = vsel %vm2587, 1.0, 0.0
        %v2716 = vsel %vm2588, 1.0, 0.0
        %v2717 = vsel %vm2589, 1.0, 0.0
        %v2718 = vsel %vm2590, 1.0, 0.0
        %v2719 = vsel %vm2591, 1.0, 0.0
        %v2720 = vsel %vm2592, 1.0, 0.0
        %v2721 = vsel %vm2593, 1.0, 0.0
        %v2722 = vsel %vm2594, 1.0, 0.0
        %v2723 = vsel %vm2595, 1.0, 0.0
        %v2724 = vsel %vm2596, 1.0, 0.0
        %v2725 = vsel %vm2597, 1.0, 0.0
        %v2726 = vsel %vm2598, 1.0, 0.0
        %v2727 = vsel %vm2599, 1.0, 0.0
        %v2728 = vsel %vm2600, 1.0, 0.0
        %v2729 = vsel %vm2601, 1.0, 0.0
        %v2730 = vsel %vm2602, 1.0, 0.0
        %v2731 = vsel %vm2603, 1.0, 0.0
        %v2732 = vsel %vm2604, 1.0, 0.0
        %v2733 = vsel %vm2605, 1.0, 0.0
        %v2734 = vsel %vm2606, 1.0, 0.0
        %v2735 = vsel %vm2607, 1.0, 0.0
        %v2736 = vsel %vm2608, 1.0, 0.0
        %v2737 = vsel %vm2609, 1.0, 0.0
        %v2738 = vsel %vm2610, 1.0, 0.0
        %v2739 = vsel %vm2611, 1.0, 0.0
        %v2740 = vsel %vm2612, 1.0, 0.0
        %v2741 = vsel %vm2613, 1.0, 0.0
        %v2742 = vsel %vm2614, 1.0, 0.0
        %v2743 = vsel %vm2615, 1.0, 0.0
        %v2744 = vsel %vm2616, 1.0, 0.0
        %v2745 = vsel %vm2617, 1.0, 0.0
        %v2746 = vsel %vm2618, 1.0, 0.0
        %v2747 = vsel %vm2619, 1.0, 0.0
        %v2748 = vsel %vm2620, 1.0, 0.0
        %v2749 = vsel %vm2621, 1.0, 0.0
        %v2750 = vsel %vm2622, 1.0, 0.0
        %v2751 = vsel %vm2623, 1.0, 0.0
        %v2752 = vsel %vm2624, 1.0, 0.0
        %v2753 = vsel %vm2625, 1.0, 0.0
        %v2754 = vsel %vm2626, 1.0, 0.0
        %v2755 = vsel %vm2627, 1.0, 0.0
        %v2756 = vsel %vm2628, 1.0, 0.0
        %v2757 = vsel %vm2629, 1.0, 0.0
        %v2758 = vsel %vm2630, 1.0, 0.0
        %v2759 = vsel %vm2631, 1.0, 0.0
        %v2760 = vsel %vm2632, 1.0, 0.0
        %v2761 = vsel %vm2633, 1.0, 0.0
        %v2762 = vsel %vm2634, 1.0, 0.0
        %v2763 = vsel %vm2635, 1.0, 0.0
        %v2764 = vsel %vm2636, 1.0, 0.0
        %v2765 = vsel %vm2637, 1.0, 0.0
        %v2766 = vsel %vm2638, 1.0, 0.0
        %v2767 = vsel %vm2639, 1.0, 0.0
        %v2768 = vsel %vm2640, 1.0, 0.0
        %v2769 = vsel %vm2641, 1.0, 0.0
        %v2770 = vsel %vm2642, 1.0, 0.0
        %v2771 = vsel %vm2643, 1.0, 0.0
        %v2772 = vsel %vm2644, 1.0, 0.0
        %v2773 = vsel %vm2645, 1.0, 0.0
        %v2774 = vsel %vm2646, 1.0, 0.0
        %v2775 = vsel %vm2647, 1.0, 0.0
        %v2776 = vsel %vm2648, 1.0, 0.0
        %v2777 = vsel %vm2649, 1.0, 0.0
        %v2778 = vsel %vm2650, 1.0, 0.0
        %v2779 = vsel %vm2651, 1.0, 0.0
        %v2780 = vsel %vm2652, 1.0, 0.0
        %v2781 = vsel %vm2653, 1.0, 0.0
        %v2782 = vsel %vm2654, 1.0, 0.0
        %v2783 = vsel %vm2655, 1.0, 0.0
        %v2784 = vsel %vm2656, 1.0, 0.0
        %v2785 = vsel %vm2657, 1.0, 0.0
        %v2786 = vsel %vm2658, 1.0, 0.0
        %v2787 = vsel %vm2659, 1.0, 0.0
        %v2788 = vsel %vm2660, 1.0, 0.0
        %v2789 = vsel %vm2661, 1.0, 0.0
        %v2790 = vsel %vm2662, 1.0, 0.0
        %v2791 = vsel %vm2663, 1.0, 0.0
        %v2792 = vsel %vm2664, 1.0, 0.0
        %v2793 = vsel %vm2665, 1.0, 0.0
        %v2794 = vsel %vm2666, 1.0, 0.0
        %v2795 = vsel %vm2667, 1.0, 0.0
        %v2796 = vsel %vm2668, 1.0, 0.0
        %v2797 = vsel %vm2669, 1.0, 0.0
        %v2798 = vsel %vm2670, 1.0, 0.0
        %v2799 = vsel %vm2671, 1.0, 0.0
        %v2800 = vsel %vm2672, 1.0, 0.0
        %v2801 = vsel %vm2673, 1.0, 0.0
        %v2802 = vsel %vm2674, 1.0, 0.0
        %v2803 = vsel %vm2675, 1.0, 0.0
        %v2804 = vsel %vm2676, 1.0, 0.0
        %v2805 = vsel %vm2677, 1.0, 0.0
        %v2806 = vsel %vm2678, 1.0, 0.0
        %v2807 = vsel %vm2679, 1.0, 0.0
        %v2808 = vpack.c.bf16 %v2712, %v2680
        %v2809 = vpack.c.bf16 %v2713, %v2681
        %v2810 = vpack.c.bf16 %v2714, %v2682
        %v2811 = vpack.c.bf16 %v2715, %v2683
        %v2812 = vpack.c.bf16 %v2716, %v2684
        %v2813 = vpack.c.bf16 %v2717, %v2685
        %v2814 = vpack.c.bf16 %v2718, %v2686
        %v2815 = vpack.c.bf16 %v2719, %v2687
        %v2816 = vpack.c.bf16 %v2720, %v2688
        %v2817 = vpack.c.bf16 %v2721, %v2689
        %v2818 = vpack.c.bf16 %v2722, %v2690
        %v2819 = vpack.c.bf16 %v2723, %v2691
        %v2820 = vpack.c.bf16 %v2724, %v2692
        %v2821 = vpack.c.bf16 %v2725, %v2693
        %v2822 = vpack.c.bf16 %v2726, %v2694
        %v2823 = vpack.c.bf16 %v2727, %v2695
        %v2824 = vpack.c.bf16 %v2728, %v2696
        %v2825 = vpack.c.bf16 %v2729, %v2697
        %v2826 = vpack.c.bf16 %v2730, %v2698
        %v2827 = vpack.c.bf16 %v2731, %v2699
        %v2828 = vpack.c.bf16 %v2732, %v2700
        %v2829 = vpack.c.bf16 %v2733, %v2701
        %v2830 = vpack.c.bf16 %v2734, %v2702
        %v2831 = vpack.c.bf16 %v2735, %v2703
        %v2832 = vpack.c.bf16 %v2736, %v2704
        %v2833 = vpack.c.bf16 %v2737, %v2705
        %v2834 = vpack.c.bf16 %v2738, %v2706
        %v2835 = vpack.c.bf16 %v2739, %v2707
        %v2836 = vpack.c.bf16 %v2740, %v2708
        %v2837 = vpack.c.bf16 %v2741, %v2709
        %v2838 = vpack.c.bf16 %v2742, %v2710
        %v2839 = vpack.c.bf16 %v2743, %v2711
        %v2840 = vpack.c.bf16 %v2776, %v2744
        %v2841 = vpack.c.bf16 %v2777, %v2745
        %v2842 = vpack.c.bf16 %v2778, %v2746
        %v2843 = vpack.c.bf16 %v2779, %v2747
        %v2844 = vpack.c.bf16 %v2780, %v2748
        %v2845 = vpack.c.bf16 %v2781, %v2749
        %v2846 = vpack.c.bf16 %v2782, %v2750
        %v2847 = vpack.c.bf16 %v2783, %v2751
        %v2848 = vpack.c.bf16 %v2784, %v2752
        %v2849 = vpack.c.bf16 %v2785, %v2753
        %v2850 = vpack.c.bf16 %v2786, %v2754
        %v2851 = vpack.c.bf16 %v2787, %v2755
        %v2852 = vpack.c.bf16 %v2788, %v2756
        %v2853 = vpack.c.bf16 %v2789, %v2757
        %v2854 = vpack.c.bf16 %v2790, %v2758
        %v2855 = vpack.c.bf16 %v2791, %v2759
        %v2856 = vpack.c.bf16 %v2792, %v2760
        %v2857 = vpack.c.bf16 %v2793, %v2761
        %v2858 = vpack.c.bf16 %v2794, %v2762
        %v2859 = vpack.c.bf16 %v2795, %v2763
        %v2860 = vpack.c.bf16 %v2796, %v2764
        %v2861 = vpack.c.bf16 %v2797, %v2765
        %v2862 = vpack.c.bf16 %v2798, %v2766
        %v2863 = vpack.c.bf16 %v2799, %v2767
        %v2864 = vpack.c.bf16 %v2800, %v2768
        %v2865 = vpack.c.bf16 %v2801, %v2769
        %v2866 = vpack.c.bf16 %v2802, %v2770
        %v2867 = vpack.c.bf16 %v2803, %v2771
        %v2868 = vpack.c.bf16 %v2804, %v2772
        %v2869 = vpack.c.bf16 %v2805, %v2773
        %v2870 = vpack.c.bf16 %v2806, %v2774
        %v2871 = vpack.c.bf16 %v2807, %v2775
        %2872 = vst [vmem:[#allocation3] sm:$0xff] %v2808
        %2873 = vst [vmem:[#allocation3 + $0x8] sm:$0xff] %v2809
        %2874 = vst [vmem:[#allocation3 + $0x10] sm:$0xff] %v2810
        %2875 = vst [vmem:[#allocation3 + $0x18] sm:$0xff] %v2811
        %2876 = vst [vmem:[#allocation3 + $0x20] sm:$0xff] %v2812
        %2877 = vst [vmem:[#allocation3 + $0x28] sm:$0xff] %v2813
        %2878 = vst [vmem:[#allocation3 + $0x30] sm:$0xff] %v2814
        %2879 = vst [vmem:[#allocation3 + $0x38] sm:$0xff] %v2815
        %2880 = vst [vmem:[#allocation3 + $0x40] sm:$0xff] %v2816
        %2881 = vst [vmem:[#allocation3 + $0x48] sm:$0xff] %v2817
        %2882 = vst [vmem:[#allocation3 + $0x50] sm:$0xff] %v2818
        %2883 = vst [vmem:[#allocation3 + $0x58] sm:$0xff] %v2819
        %2884 = vst [vmem:[#allocation3 + $0x60] sm:$0xff] %v2820
        %2885 = vst [vmem:[#allocation3 + $0x68] sm:$0xff] %v2821
        %2886 = vst [vmem:[#allocation3 + $0x70] sm:$0xff] %v2822
        %2887 = vst [vmem:[#allocation3 + $0x78] sm:$0xff] %v2823
        %2888 = vst [vmem:[#allocation3 + $0x80] sm:$0xff] %v2824
        %2889 = vst [vmem:[#allocation3 + $0x88] sm:$0xff] %v2825
        %2890 = vst [vmem:[#allocation3 + $0x90] sm:$0xff] %v2826
        %2891 = vst [vmem:[#allocation3 + $0x98] sm:$0xff] %v2827
        %2892 = vst [vmem:[#allocation3 + $0xa0] sm:$0xff] %v2828
        %2893 = vst [vmem:[#allocation3 + $0xa8] sm:$0xff] %v2829
        %2894 = vst [vmem:[#allocation3 + $0xb0] sm:$0xff] %v2830
        %2895 = vst [vmem:[#allocation3 + $0xb8] sm:$0xff] %v2831
        %2896 = vst [vmem:[#allocation3 + $0xc0] sm:$0xff] %v2832
        %2897 = vst [vmem:[#allocation3 + $0xc8] sm:$0xff] %v2833
        %2898 = vst [vmem:[#allocation3 + $0xd0] sm:$0xff] %v2834
        %2899 = vst [vmem:[#allocation3 + $0xd8] sm:$0xff] %v2835
        %2900 = vst [vmem:[#allocation3 + $0xe0] sm:$0xff] %v2836
        %2901 = vst [vmem:[#allocation3 + $0xe8] sm:$0xff] %v2837
        %2902 = vst [vmem:[#allocation3 + $0xf0] sm:$0xff] %v2838
        %2903 = vst [vmem:[#allocation3 + $0xf8] sm:$0xff] %v2839
        %2904 = vst [vmem:[#allocation3 + $0x100] sm:$0xff] %v2840
        %2905 = vst [vmem:[#allocation3 + $0x108] sm:$0xff] %v2841
        %2906 = vst [vmem:[#allocation3 + $0x110] sm:$0xff] %v2842
        %2907 = vst [vmem:[#allocation3 + $0x118] sm:$0xff] %v2843
        %2908 = vst [vmem:[#allocation3 + $0x120] sm:$0xff] %v2844
        %2909 = vst [vmem:[#allocation3 + $0x128] sm:$0xff] %v2845
        %2910 = vst [vmem:[#allocation3 + $0x130] sm:$0xff] %v2846
        %2911 = vst [vmem:[#allocation3 + $0x138] sm:$0xff] %v2847
        %2912 = vst [vmem:[#allocation3 + $0x140] sm:$0xff] %v2848
        %2913 = vst [vmem:[#allocation3 + $0x148] sm:$0xff] %v2849
        %2914 = vst [vmem:[#allocation3 + $0x150] sm:$0xff] %v2850
        %2915 = vst [vmem:[#allocation3 + $0x158] sm:$0xff] %v2851
        %2916 = vst [vmem:[#allocation3 + $0x160] sm:$0xff] %v2852
        %2917 = vst [vmem:[#allocation3 + $0x168] sm:$0xff] %v2853
        %2918 = vst [vmem:[#allocation3 + $0x170] sm:$0xff] %v2854
        %2919 = vst [vmem:[#allocation3 + $0x178] sm:$0xff] %v2855
        %2920 = vst [vmem:[#allocation3 + $0x180] sm:$0xff] %v2856
        %2921 = vst [vmem:[#allocation3 + $0x188] sm:$0xff] %v2857
        %2922 = vst [vmem:[#allocation3 + $0x190] sm:$0xff] %v2858
        %2923 = vst [vmem:[#allocation3 + $0x198] sm:$0xff] %v2859
        %2924 = vst [vmem:[#allocation3 + $0x1a0] sm:$0xff] %v2860
        %2925 = vst [vmem:[#allocation3 + $0x1a8] sm:$0xff] %v2861
        %2926 = vst [vmem:[#allocation3 + $0x1b0] sm:$0xff] %v2862
        %2927 = vst [vmem:[#allocation3 + $0x1b8] sm:$0xff] %v2863
        %2928 = vst [vmem:[#allocation3 + $0x1c0] sm:$0xff] %v2864
        %2929 = vst [vmem:[#allocation3 + $0x1c8] sm:$0xff] %v2865
        %2930 = vst [vmem:[#allocation3 + $0x1d0] sm:$0xff] %v2866
        %2931 = vst [vmem:[#allocation3 + $0x1d8] sm:$0xff] %v2867
        %2932 = vst [vmem:[#allocation3 + $0x1e0] sm:$0xff] %v2868
        %2933 = vst [vmem:[#allocation3 + $0x1e8] sm:$0xff] %v2869
        %2934 = vst [vmem:[#allocation3 + $0x1f0] sm:$0xff] %v2870
        %2935 = vst [vmem:[#allocation3 + $0x1f8] sm:$0xff] %v2871
      $region48: #{lossx_forward.1} parent=43 // pred_fallthru
        _
      %v2936 = vld [vmem:[#allocation2] sm:$0xff]
      %v2937 = vld [vmem:[#allocation2 + $0x8] sm:$0xff]
      %v2938 = vld [vmem:[#allocation2 + $0x10] sm:$0xff]
      %v2939 = vld [vmem:[#allocation2 + $0x18] sm:$0xff]
      %v2940 = vld [vmem:[#allocation2 + $0x20] sm:$0xff]
      %v2941 = vld [vmem:[#allocation2 + $0x28] sm:$0xff]
      %v2942 = vld [vmem:[#allocation2 + $0x30] sm:$0xff]
      %v2943 = vld [vmem:[#allocation2 + $0x38] sm:$0xff]
      %v2944 = vld [vmem:[#allocation2 + $0x40] sm:$0xff]
      %v2945 = vld [vmem:[#allocation2 + $0x48] sm:$0xff]
      %v2946 = vld [vmem:[#allocation2 + $0x50] sm:$0xff]
      %v2947 = vld [vmem:[#allocation2 + $0x58] sm:$0xff]
      %v2948 = vld [vmem:[#allocation2 + $0x60] sm:$0xff]
      %v2949 = vld [vmem:[#allocation2 + $0x68] sm:$0xff]
      %v2950 = vld [vmem:[#allocation2 + $0x70] sm:$0xff]
      %v2951 = vld [vmem:[#allocation2 + $0x78] sm:$0xff]
      %v2952 = vld [vmem:[#allocation2 + $0x80] sm:$0xff]
      %v2953 = vld [vmem:[#allocation2 + $0x88] sm:$0xff]
      %v2954 = vld [vmem:[#allocation2 + $0x90] sm:$0xff]
      %v2955 = vld [vmem:[#allocation2 + $0x98] sm:$0xff]
      %v2956 = vld [vmem:[#allocation2 + $0xa0] sm:$0xff]
      %v2957 = vld [vmem:[#allocation2 + $0xa8] sm:$0xff]
      %v2958 = vld [vmem:[#allocation2 + $0xb0] sm:$0xff]
      %v2959 = vld [vmem:[#allocation2 + $0xb8] sm:$0xff]
      %v2960 = vld [vmem:[#allocation2 + $0xc0] sm:$0xff]
      %v2961 = vld [vmem:[#allocation2 + $0xc8] sm:$0xff]
      %v2962 = vld [vmem:[#allocation2 + $0xd0] sm:$0xff]
      %v2963 = vld [vmem:[#allocation2 + $0xd8] sm:$0xff]
      %v2964 = vld [vmem:[#allocation2 + $0xe0] sm:$0xff]
      %v2965 = vld [vmem:[#allocation2 + $0xe8] sm:$0xff]
      %v2966 = vld [vmem:[#allocation2 + $0xf0] sm:$0xff]
      %v2967 = vld [vmem:[#allocation2 + $0xf8] sm:$0xff]
      %v2968 = vld [vmem:[#allocation2 + $0x100] sm:$0xff]
      %v2969 = vld [vmem:[#allocation2 + $0x108] sm:$0xff]
      %v2970 = vld [vmem:[#allocation2 + $0x110] sm:$0xff]
      %v2971 = vld [vmem:[#allocation2 + $0x118] sm:$0xff]
      %v2972 = vld [vmem:[#allocation2 + $0x120] sm:$0xff]
      %v2973 = vld [vmem:[#allocation2 + $0x128] sm:$0xff]
      %v2974 = vld [vmem:[#allocation2 + $0x130] sm:$0xff]
      %v2975 = vld [vmem:[#allocation2 + $0x138] sm:$0xff]
      %v2976 = vld [vmem:[#allocation2 + $0x140] sm:$0xff]
      %v2977 = vld [vmem:[#allocation2 + $0x148] sm:$0xff]
      %v2978 = vld [vmem:[#allocation2 + $0x150] sm:$0xff]
      %v2979 = vld [vmem:[#allocation2 + $0x158] sm:$0xff]
      %v2980 = vld [vmem:[#allocation2 + $0x160] sm:$0xff]
      %v2981 = vld [vmem:[#allocation2 + $0x168] sm:$0xff]
      %v2982 = vld [vmem:[#allocation2 + $0x170] sm:$0xff]
      %v2983 = vld [vmem:[#allocation2 + $0x178] sm:$0xff]
      %v2984 = vld [vmem:[#allocation2 + $0x180] sm:$0xff]
      %v2985 = vld [vmem:[#allocation2 + $0x188] sm:$0xff]
      %v2986 = vld [vmem:[#allocation2 + $0x190] sm:$0xff]
      %v2987 = vld [vmem:[#allocation2 + $0x198] sm:$0xff]
      %v2988 = vld [vmem:[#allocation2 + $0x1a0] sm:$0xff]
      %v2989 = vld [vmem:[#allocation2 + $0x1a8] sm:$0xff]
      %v2990 = vld [vmem:[#allocation2 + $0x1b0] sm:$0xff]
      %v2991 = vld [vmem:[#allocation2 + $0x1b8] sm:$0xff]
      %v2992 = vld [vmem:[#allocation2 + $0x1c0] sm:$0xff]
      %v2993 = vld [vmem:[#allocation2 + $0x1c8] sm:$0xff]
      %v2994 = vld [vmem:[#allocation2 + $0x1d0] sm:$0xff]
      %v2995 = vld [vmem:[#allocation2 + $0x1d8] sm:$0xff]
      %v2996 = vld [vmem:[#allocation2 + $0x1e0] sm:$0xff]
      %v2997 = vld [vmem:[#allocation2 + $0x1e8] sm:$0xff]
      %v2998 = vld [vmem:[#allocation2 + $0x1f0] sm:$0xff]
      %v2999 = vld [vmem:[#allocation2 + $0x1f8] sm:$0xff]
      %v3000 = vld [vmem:[%s429] sm:$0xff]
      %v3001 = vld [vmem:[%s429 + $0x8] sm:$0xff]
      %v3002 = vld [vmem:[%s429 + $0x10] sm:$0xff]
      %v3003 = vld [vmem:[%s429 + $0x18] sm:$0xff]
      %v3004 = vld [vmem:[%s429 + $0x20] sm:$0xff]
      %v3005 = vld [vmem:[%s429 + $0x28] sm:$0xff]
      %v3006 = vld [vmem:[%s429 + $0x30] sm:$0xff]
      %v3007 = vld [vmem:[%s429 + $0x38] sm:$0xff]
      %v3008 = vld [vmem:[%s429 + $0x40] sm:$0xff]
      %v3009 = vld [vmem:[%s429 + $0x48] sm:$0xff]
      %v3010 = vld [vmem:[%s429 + $0x50] sm:$0xff]
      %v3011 = vld [vmem:[%s429 + $0x58] sm:$0xff]
      %v3012 = vld [vmem:[%s429 + $0x60] sm:$0xff]
      %v3013 = vld [vmem:[%s429 + $0x68] sm:$0xff]
      %v3014 = vld [vmem:[%s429 + $0x70] sm:$0xff]
      %v3015 = vld [vmem:[%s429 + $0x78] sm:$0xff]
      %v3016 = vld [vmem:[%s429 + $0x80] sm:$0xff]
      %v3017 = vld [vmem:[%s429 + $0x88] sm:$0xff]
      %v3018 = vld [vmem:[%s429 + $0x90] sm:$0xff]
      %v3019 = vld [vmem:[%s429 + $0x98] sm:$0xff]
      %v3020 = vld [vmem:[%s429 + $0xa0] sm:$0xff]
      %v3021 = vld [vmem:[%s429 + $0xa8] sm:$0xff]
      %v3022 = vld [vmem:[%s429 + $0xb0] sm:$0xff]
      %v3023 = vld [vmem:[%s429 + $0xb8] sm:$0xff]
      %v3024 = vld [vmem:[%s429 + $0xc0] sm:$0xff]
      %v3025 = vld [vmem:[%s429 + $0xc8] sm:$0xff]
      %v3026 = vld [vmem:[%s429 + $0xd0] sm:$0xff]
      %v3027 = vld [vmem:[%s429 + $0xd8] sm:$0xff]
      %v3028 = vld [vmem:[%s429 + $0xe0] sm:$0xff]
      %v3029 = vld [vmem:[%s429 + $0xe8] sm:$0xff]
      %v3030 = vld [vmem:[%s429 + $0xf0] sm:$0xff]
      %v3031 = vld [vmem:[%s429 + $0xf8] sm:$0xff]
      %v3032 = vld [vmem:[%s429 + $0x100] sm:$0xff]
      %v3033 = vld [vmem:[%s429 + $0x108] sm:$0xff]
      %v3034 = vld [vmem:[%s429 + $0x110] sm:$0xff]
      %v3035 = vld [vmem:[%s429 + $0x118] sm:$0xff]
      %v3036 = vld [vmem:[%s429 + $0x120] sm:$0xff]
      %v3037 = vld [vmem:[%s429 + $0x128] sm:$0xff]
      %v3038 = vld [vmem:[%s429 + $0x130] sm:$0xff]
      %v3039 = vld [vmem:[%s429 + $0x138] sm:$0xff]
      %v3040 = vld [vmem:[%s429 + $0x140] sm:$0xff]
      %v3041 = vld [vmem:[%s429 + $0x148] sm:$0xff]
      %v3042 = vld [vmem:[%s429 + $0x150] sm:$0xff]
      %v3043 = vld [vmem:[%s429 + $0x158] sm:$0xff]
      %v3044 = vld [vmem:[%s429 + $0x160] sm:$0xff]
      %v3045 = vld [vmem:[%s429 + $0x168] sm:$0xff]
      %v3046 = vld [vmem:[%s429 + $0x170] sm:$0xff]
      %v3047 = vld [vmem:[%s429 + $0x178] sm:$0xff]
      %v3048 = vld [vmem:[%s429 + $0x180] sm:$0xff]
      %v3049 = vld [vmem:[%s429 + $0x188] sm:$0xff]
      %v3050 = vld [vmem:[%s429 + $0x190] sm:$0xff]
      %v3051 = vld [vmem:[%s429 + $0x198] sm:$0xff]
      %v3052 = vld [vmem:[%s429 + $0x1a0] sm:$0xff]
      %v3053 = vld [vmem:[%s429 + $0x1a8] sm:$0xff]
      %v3054 = vld [vmem:[%s429 + $0x1b0] sm:$0xff]
      %v3055 = vld [vmem:[%s429 + $0x1b8] sm:$0xff]
      %v3056 = vld [vmem:[%s429 + $0x1c0] sm:$0xff]
      %v3057 = vld [vmem:[%s429 + $0x1c8] sm:$0xff]
      %v3058 = vld [vmem:[%s429 + $0x1d0] sm:$0xff]
      %v3059 = vld [vmem:[%s429 + $0x1d8] sm:$0xff]
      %v3060 = vld [vmem:[%s429 + $0x1e0] sm:$0xff]
      %v3061 = vld [vmem:[%s429 + $0x1e8] sm:$0xff]
      %v3062 = vld [vmem:[%s429 + $0x1f0] sm:$0xff]
      %v3063 = vld [vmem:[%s429 + $0x1f8] sm:$0xff]
      %v3064 = vld [vmem:[%s429 + $0x200] sm:$0xff]
      %v3065 = vld [vmem:[%s429 + $0x208] sm:$0xff]
      %v3066 = vld [vmem:[%s429 + $0x210] sm:$0xff]
      %v3067 = vld [vmem:[%s429 + $0x218] sm:$0xff]
      %v3068 = vld [vmem:[%s429 + $0x220] sm:$0xff]
      %v3069 = vld [vmem:[%s429 + $0x228] sm:$0xff]
      %v3070 = vld [vmem:[%s429 + $0x230] sm:$0xff]
      %v3071 = vld [vmem:[%s429 + $0x238] sm:$0xff]
      %v3072 = vld [vmem:[%s429 + $0x240] sm:$0xff]
      %v3073 = vld [vmem:[%s429 + $0x248] sm:$0xff]
      %v3074 = vld [vmem:[%s429 + $0x250] sm:$0xff]
      %v3075 = vld [vmem:[%s429 + $0x258] sm:$0xff]
      %v3076 = vld [vmem:[%s429 + $0x260] sm:$0xff]
      %v3077 = vld [vmem:[%s429 + $0x268] sm:$0xff]
      %v3078 = vld [vmem:[%s429 + $0x270] sm:$0xff]
      %v3079 = vld [vmem:[%s429 + $0x278] sm:$0xff]
      %v3080 = vld [vmem:[%s429 + $0x280] sm:$0xff]
      %v3081 = vld [vmem:[%s429 + $0x288] sm:$0xff]
      %v3082 = vld [vmem:[%s429 + $0x290] sm:$0xff]
      %v3083 = vld [vmem:[%s429 + $0x298] sm:$0xff]
      %v3084 = vld [vmem:[%s429 + $0x2a0] sm:$0xff]
      %v3085 = vld [vmem:[%s429 + $0x2a8] sm:$0xff]
      %v3086 = vld [vmem:[%s429 + $0x2b0] sm:$0xff]
      %v3087 = vld [vmem:[%s429 + $0x2b8] sm:$0xff]
      %v3088 = vld [vmem:[%s429 + $0x2c0] sm:$0xff]
      %v3089 = vld [vmem:[%s429 + $0x2c8] sm:$0xff]
      %v3090 = vld [vmem:[%s429 + $0x2d0] sm:$0xff]
      %v3091 = vld [vmem:[%s429 + $0x2d8] sm:$0xff]
      %v3092 = vld [vmem:[%s429 + $0x2e0] sm:$0xff]
      %v3093 = vld [vmem:[%s429 + $0x2e8] sm:$0xff]
      %v3094 = vld [vmem:[%s429 + $0x2f0] sm:$0xff]
      %v3095 = vld [vmem:[%s429 + $0x2f8] sm:$0xff]
      %v3096 = vld [vmem:[%s429 + $0x300] sm:$0xff]
      %v3097 = vld [vmem:[%s429 + $0x308] sm:$0xff]
      %v3098 = vld [vmem:[%s429 + $0x310] sm:$0xff]
      %v3099 = vld [vmem:[%s429 + $0x318] sm:$0xff]
      %v3100 = vld [vmem:[%s429 + $0x320] sm:$0xff]
      %v3101 = vld [vmem:[%s429 + $0x328] sm:$0xff]
      %v3102 = vld [vmem:[%s429 + $0x330] sm:$0xff]
      %v3103 = vld [vmem:[%s429 + $0x338] sm:$0xff]
      %v3104 = vld [vmem:[%s429 + $0x340] sm:$0xff]
      %v3105 = vld [vmem:[%s429 + $0x348] sm:$0xff]
      %v3106 = vld [vmem:[%s429 + $0x350] sm:$0xff]
      %v3107 = vld [vmem:[%s429 + $0x358] sm:$0xff]
      %v3108 = vld [vmem:[%s429 + $0x360] sm:$0xff]
      %v3109 = vld [vmem:[%s429 + $0x368] sm:$0xff]
      %v3110 = vld [vmem:[%s429 + $0x370] sm:$0xff]
      %v3111 = vld [vmem:[%s429 + $0x378] sm:$0xff]
      %v3112 = vld [vmem:[%s429 + $0x380] sm:$0xff]
      %v3113 = vld [vmem:[%s429 + $0x388] sm:$0xff]
      %v3114 = vld [vmem:[%s429 + $0x390] sm:$0xff]
      %v3115 = vld [vmem:[%s429 + $0x398] sm:$0xff]
      %v3116 = vld [vmem:[%s429 + $0x3a0] sm:$0xff]
      %v3117 = vld [vmem:[%s429 + $0x3a8] sm:$0xff]
      %v3118 = vld [vmem:[%s429 + $0x3b0] sm:$0xff]
      %v3119 = vld [vmem:[%s429 + $0x3b8] sm:$0xff]
      %v3120 = vld [vmem:[%s429 + $0x3c0] sm:$0xff]
      %v3121 = vld [vmem:[%s429 + $0x3c8] sm:$0xff]
      %v3122 = vld [vmem:[%s429 + $0x3d0] sm:$0xff]
      %v3123 = vld [vmem:[%s429 + $0x3d8] sm:$0xff]
      %v3124 = vld [vmem:[%s429 + $0x3e0] sm:$0xff]
      %v3125 = vld [vmem:[%s429 + $0x3e8] sm:$0xff]
      %v3126 = vld [vmem:[%s429 + $0x3f0] sm:$0xff]
      %v3127 = vld [vmem:[%s429 + $0x3f8] sm:$0xff]
      %v3128 = vpack.c.bf16 %v3032, %v3000
      %v3129 = vpack.c.bf16 %v3033, %v3001
      %v3130 = vpack.c.bf16 %v3034, %v3002
      %v3131 = vpack.c.bf16 %v3035, %v3003
      %v3132 = vpack.c.bf16 %v3036, %v3004
      %v3133 = vpack.c.bf16 %v3037, %v3005
      %v3134 = vpack.c.bf16 %v3038, %v3006
      %v3135 = vpack.c.bf16 %v3039, %v3007
      %v3136 = vpack.c.bf16 %v3040, %v3008
      %v3137 = vpack.c.bf16 %v3041, %v3009
      %v3138 = vpack.c.bf16 %v3042, %v3010
      %v3139 = vpack.c.bf16 %v3043, %v3011
      %v3140 = vpack.c.bf16 %v3044, %v3012
      %v3141 = vpack.c.bf16 %v3045, %v3013
      %v3142 = vpack.c.bf16 %v3046, %v3014
      %v3143 = vpack.c.bf16 %v3047, %v3015
      %v3144 = vpack.c.bf16 %v3048, %v3016
      %v3145 = vpack.c.bf16 %v3049, %v3017
      %v3146 = vpack.c.bf16 %v3050, %v3018
      %v3147 = vpack.c.bf16 %v3051, %v3019
      %v3148 = vpack.c.bf16 %v3052, %v3020
      %v3149 = vpack.c.bf16 %v3053, %v3021
      %v3150 = vpack.c.bf16 %v3054, %v3022
      %v3151 = vpack.c.bf16 %v3055, %v3023
      %v3152 = vpack.c.bf16 %v3056, %v3024
      %v3153 = vpack.c.bf16 %v3057, %v3025
      %v3154 = vpack.c.bf16 %v3058, %v3026
      %v3155 = vpack.c.bf16 %v3059, %v3027
      %v3156 = vpack.c.bf16 %v3060, %v3028
      %v3157 = vpack.c.bf16 %v3061, %v3029
      %v3158 = vpack.c.bf16 %v3062, %v3030
      %v3159 = vpack.c.bf16 %v3063, %v3031
      %v3160 = vpack.c.bf16 %v3096, %v3064
      %v3161 = vpack.c.bf16 %v3097, %v3065
      %v3162 = vpack.c.bf16 %v3098, %v3066
      %v3163 = vpack.c.bf16 %v3099, %v3067
      %v3164 = vpack.c.bf16 %v3100, %v3068
      %v3165 = vpack.c.bf16 %v3101, %v3069
      %v3166 = vpack.c.bf16 %v3102, %v3070
      %v3167 = vpack.c.bf16 %v3103, %v3071
      %v3168 = vpack.c.bf16 %v3104, %v3072
      %v3169 = vpack.c.bf16 %v3105, %v3073
      %v3170 = vpack.c.bf16 %v3106, %v3074
      %v3171 = vpack.c.bf16 %v3107, %v3075
      %v3172 = vpack.c.bf16 %v3108, %v3076
      %v3173 = vpack.c.bf16 %v3109, %v3077
      %v3174 = vpack.c.bf16 %v3110, %v3078
      %v3175 = vpack.c.bf16 %v3111, %v3079
      %v3176 = vpack.c.bf16 %v3112, %v3080
      %v3177 = vpack.c.bf16 %v3113, %v3081
      %v3178 = vpack.c.bf16 %v3114, %v3082
      %v3179 = vpack.c.bf16 %v3115, %v3083
      %v3180 = vpack.c.bf16 %v3116, %v3084
      %v3181 = vpack.c.bf16 %v3117, %v3085
      %v3182 = vpack.c.bf16 %v3118, %v3086
      %v3183 = vpack.c.bf16 %v3119, %v3087
      %v3184 = vpack.c.bf16 %v3120, %v3088
      %v3185 = vpack.c.bf16 %v3121, %v3089
      %v3186 = vpack.c.bf16 %v3122, %v3090
      %v3187 = vpack.c.bf16 %v3123, %v3091
      %v3188 = vpack.c.bf16 %v3124, %v3092
      %v3189 = vpack.c.bf16 %v3125, %v3093
      %v3190 = vpack.c.bf16 %v3126, %v3094
      %v3191 = vpack.c.bf16 %v3127, %v3095
      %3192 = vmatprep.subr.bf16.mxu0 %v3129
      %3193 = vmatpush1.bf16.xpose.msra.mxu0 %v3128
      %3194 = vmatprep.subr.bf16.mxu0 %v3161
      %3195 = vmatpush1.bf16.xpose.msra.mxu0 %v3160
      %3196 = vmatprep.subr.bf16.mxu0 0
      %3197 = vmatpush1.bf16.xpose.msra.mxu0 0
      %3198 = vmatprep.subr.bf16.mxu0 0
      %3199 = vmatpush1.bf16.xpose.msra.mxu0 0
      %3200 = vmatprep.subr.bf16.mxu0 0
      %3201 = vmatpush1.bf16.xpose.msra.mxu0 0
      %3202 = vmatprep.subr.bf16.mxu0 0
      %3203 = vmatpush1.bf16.xpose.msra.mxu0 0
      %3204 = vmatprep.subr.bf16.mxu0 0
      %3205 = vmatpush1.bf16.xpose.msra.mxu0 0
      %3206 = vmatprep.subr.bf16.mxu0 0
      %3207 = vmatpush1.bf16.xpose.msra.mxu0 0
      %3208 = vmatprep.subr.bf16.mxu0 0
      %3209 = vmatpush1.bf16.xpose.msra.mxu0 0
      %3210 = vmatprep.subr.bf16.mxu0 0
      %3211 = vmatpush1.bf16.xpose.msra.mxu0 0
      %3212 = vmatprep.subr.bf16.mxu0 0
      %3213 = vmatpush1.bf16.xpose.msra.mxu0 0
      %3214 = vmatprep.subr.bf16.mxu0 0
      %3215 = vmatpush1.bf16.xpose.msra.mxu0 0
      %3216 = vmatprep.subr.bf16.mxu0 0
      %3217 = vmatpush1.bf16.xpose.msra.mxu0 0
      %3218 = vmatprep.subr.bf16.mxu0 0
      %3219 = vmatpush1.bf16.xpose.msra.mxu0 0
      %3220 = vmatprep.subr.bf16.mxu0 0
      %3221 = vmatpush1.bf16.xpose.msra.mxu0 0
      %3222 = vmatprep.subr.bf16.mxu0 0
      %3223 = vmatpush1.bf16.xpose.msra.mxu0 0
      %3224 = vmatprep.mubr.bf16.mxu0 %v2937
      %3225 = vmatmul.mubr.bf16.gmra.mrb[0].mxu0 %v2936
      %v3226 = vpop.f32.mrb[0].mxu0
      %v3227 = vadd.f32 0.0, %v3226
      %v3228 = vpop.f32.mrb[0].mxu0
      %v3229 = vpop.f32.mrb[0].mxu0
      %v3230 = vadd.f32 0.0, %v3229
      %v3231 = vpop.f32.mrb[0].mxu0
      %3232 = vmatprep.mubr.bf16.mxu0 %v2969
      %3233 = vmatmul.mubr.bf16.gmra.mrb[0].mxu0 %v2968
      %v3234 = vpop.f32.mrb[0].mxu0
      %v3235 = vadd.f32 0.0, %v3234
      %v3236 = vpop.f32.mrb[0].mxu0
      %v3237 = vpop.f32.mrb[0].mxu0
      %v3238 = vadd.f32 0.0, %v3237
      %v3239 = vpop.f32.mrb[0].mxu0
      %3240 = vdwg.mxu0
      %3241 = vmatprep.subr.bf16.mxu0 %v3131
      %3242 = vmatpush1.bf16.xpose.msra.mxu0 %v3130
      %3243 = vmatprep.subr.bf16.mxu0 %v3163
      %3244 = vmatpush1.bf16.xpose.msra.mxu0 %v3162
      %3245 = vmatprep.subr.bf16.mxu0 0
      %3246 = vmatpush1.bf16.xpose.msra.mxu0 0
      %3247 = vmatprep.subr.bf16.mxu0 0
      %3248 = vmatpush1.bf16.xpose.msra.mxu0 0
      %3249 = vmatprep.subr.bf16.mxu0 0
      %3250 = vmatpush1.bf16.xpose.msra.mxu0 0
      %3251 = vmatprep.subr.bf16.mxu0 0
      %3252 = vmatpush1.bf16.xpose.msra.mxu0 0
      %3253 = vmatprep.subr.bf16.mxu0 0
      %3254 = vmatpush1.bf16.xpose.msra.mxu0 0
      %3255 = vmatprep.subr.bf16.mxu0 0
      %3256 = vmatpush1.bf16.xpose.msra.mxu0 0
      %3257 = vmatprep.subr.bf16.mxu0 0
      %3258 = vmatpush1.bf16.xpose.msra.mxu0 0
      %3259 = vmatprep.subr.bf16.mxu0 0
      %3260 = vmatpush1.bf16.xpose.msra.mxu0 0
      %3261 = vmatprep.subr.bf16.mxu0 0
      %3262 = vmatpush1.bf16.xpose.msra.mxu0 0
      %3263 = vmatprep.subr.bf16.mxu0 0
      %3264 = vmatpush1.bf16.xpose.msra.mxu0 0
      %3265 = vmatprep.subr.bf16.mxu0 0
      %3266 = vmatpush1.bf16.xpose.msra.mxu0 0
      %3267 = vmatprep.subr.bf16.mxu0 0
      %3268 = vmatpush1.bf16.xpose.msra.mxu0 0
      %3269 = vmatprep.subr.bf16.mxu0 0
      %3270 = vmatpush1.bf16.xpose.msra.mxu0 0
      %3271 = vmatprep.subr.bf16.mxu0 0
      %3272 = vmatpush1.bf16.xpose.msra.mxu0 0
      %3273 = vmatprep.mubr.bf16.mxu0 %v2939
      %3274 = vmatmul.mubr.bf16.gmra.mrb[0].mxu0 %v2938
      %v3275 = vpop.f32.mrb[0].mxu0
      %v3276 = vadd.f32 %v3227, %v3275
      %v3277 = vpop.f32.mrb[0].mxu0
      %v3278 = vpop.f32.mrb[0].mxu0
      %v3279 = vadd.f32 %v3230, %v3278
      %v3280 = vpop.f32.mrb[0].mxu0
      %3281 = vmatprep.mubr.bf16.mxu0 %v2971
      %3282 = vmatmul.mubr.bf16.gmra.mrb[0].mxu0 %v2970
      %v3283 = vpop.f32.mrb[0].mxu0
      %v3284 = vadd.f32 %v3235, %v3283
      %v3285 = vpop.f32.mrb[0].mxu0
      %v3286 = vpop.f32.mrb[0].mxu0
      %v3287 = vadd.f32 %v3238, %v3286
      %v3288 = vpop.f32.mrb[0].mxu0
      %3289 = vdwg.mxu0
      %3290 = vmatprep.subr.bf16.mxu0 %v3133
      %3291 = vmatpush1.bf16.xpose.msra.mxu0 %v3132
      %3292 = vmatprep.subr.bf16.mxu0 %v3165
      %3293 = vmatpush1.bf16.xpose.msra.mxu0 %v3164
      %3294 = vmatprep.subr.bf16.mxu0 0
      %3295 = vmatpush1.bf16.xpose.msra.mxu0 0
      %3296 = vmatprep.subr.bf16.mxu0 0
      %3297 = vmatpush1.bf16.xpose.msra.mxu0 0
      %3298 = vmatprep.subr.bf16.mxu0 0
      %3299 = vmatpush1.bf16.xpose.msra.mxu0 0
      %3300 = vmatprep.subr.bf16.mxu0 0
      %3301 = vmatpush1.bf16.xpose.msra.mxu0 0
      %3302 = vmatprep.subr.bf16.mxu0 0
      %3303 = vmatpush1.bf16.xpose.msra.mxu0 0
      %3304 = vmatprep.subr.bf16.mxu0 0
      %3305 = vmatpush1.bf16.xpose.msra.mxu0 0
      %3306 = vmatprep.subr.bf16.mxu0 0
      %3307 = vmatpush1.bf16.xpose.msra.mxu0 0
      %3308 = vmatprep.subr.bf16.mxu0 0
      %3309 = vmatpush1.bf16.xpose.msra.mxu0 0
      %3310 = vmatprep.subr.bf16.mxu0 0
      %3311 = vmatpush1.bf16.xpose.msra.mxu0 0
      %3312 = vmatprep.subr.bf16.mxu0 0
      %3313 = vmatpush1.bf16.xpose.msra.mxu0 0
      %3314 = vmatprep.subr.bf16.mxu0 0
      %3315 = vmatpush1.bf16.xpose.msra.mxu0 0
      %3316 = vmatprep.subr.bf16.mxu0 0
      %3317 = vmatpush1.bf16.xpose.msra.mxu0 0
      %3318 = vmatprep.subr.bf16.mxu0 0
      %3319 = vmatpush1.bf16.xpose.msra.mxu0 0
      %3320 = vmatprep.subr.bf16.mxu0 0
      %3321 = vmatpush1.bf16.xpose.msra.mxu0 0
      %3322 = vmatprep.mubr.bf16.mxu0 %v2941
      %3323 = vmatmul.mubr.bf16.gmra.mrb[0].mxu0 %v2940
      %v3324 = vpop.f32.mrb[0].mxu0
      %v3325 = vadd.f32 %v3276, %v3324
      %v3326 = vpop.f32.mrb[0].mxu0
      %v3327 = vpop.f32.mrb[0].mxu0
      %v3328 = vadd.f32 %v3279, %v3327
      %v3329 = vpop.f32.mrb[0].mxu0
      %3330 = vmatprep.mubr.bf16.mxu0 %v2973
      %3331 = vmatmul.mubr.bf16.gmra.mrb[0].mxu0 %v2972
      %v3332 = vpop.f32.mrb[0].mxu0
      %v3333 = vadd.f32 %v3284, %v3332
      %v3334 = vpop.f32.mrb[0].mxu0
      %v3335 = vpop.f32.mrb[0].mxu0
      %v3336 = vadd.f32 %v3287, %v3335
      %v3337 = vpop.f32.mrb[0].mxu0
      %3338 = vdwg.mxu0
      %3339 = vmatprep.subr.bf16.mxu0 %v3135
      %3340 = vmatpush1.bf16.xpose.msra.mxu0 %v3134
      %3341 = vmatprep.subr.bf16.mxu0 %v3167
      %3342 = vmatpush1.bf16.xpose.msra.mxu0 %v3166
      %3343 = vmatprep.subr.bf16.mxu0 0
      %3344 = vmatpush1.bf16.xpose.msra.mxu0 0
      %3345 = vmatprep.subr.bf16.mxu0 0
      %3346 = vmatpush1.bf16.xpose.msra.mxu0 0
      %3347 = vmatprep.subr.bf16.mxu0 0
      %3348 = vmatpush1.bf16.xpose.msra.mxu0 0
      %3349 = vmatprep.subr.bf16.mxu0 0
      %3350 = vmatpush1.bf16.xpose.msra.mxu0 0
      %3351 = vmatprep.subr.bf16.mxu0 0
      %3352 = vmatpush1.bf16.xpose.msra.mxu0 0
      %3353 = vmatprep.subr.bf16.mxu0 0
      %3354 = vmatpush1.bf16.xpose.msra.mxu0 0
      %3355 = vmatprep.subr.bf16.mxu0 0
      %3356 = vmatpush1.bf16.xpose.msra.mxu0 0
      %3357 = vmatprep.subr.bf16.mxu0 0
      %3358 = vmatpush1.bf16.xpose.msra.mxu0 0
      %3359 = vmatprep.subr.bf16.mxu0 0
      %3360 = vmatpush1.bf16.xpose.msra.mxu0 0
      %3361 = vmatprep.subr.bf16.mxu0 0
      %3362 = vmatpush1.bf16.xpose.msra.mxu0 0
      %3363 = vmatprep.subr.bf16.mxu0 0
      %3364 = vmatpush1.bf16.xpose.msra.mxu0 0
      %3365 = vmatprep.subr.bf16.mxu0 0
      %3366 = vmatpush1.bf16.xpose.msra.mxu0 0
      %3367 = vmatprep.subr.bf16.mxu0 0
      %3368 = vmatpush1.bf16.xpose.msra.mxu0 0
      %3369 = vmatprep.subr.bf16.mxu0 0
      %3370 = vmatpush1.bf16.xpose.msra.mxu0 0
      %3371 = vmatprep.mubr.bf16.mxu0 %v2943
      %3372 = vmatmul.mubr.bf16.gmra.mrb[0].mxu0 %v2942
      %v3373 = vpop.f32.mrb[0].mxu0
      %v3374 = vadd.f32 %v3325, %v3373
      %v3375 = vpop.f32.mrb[0].mxu0
      %v3376 = vpop.f32.mrb[0].mxu0
      %v3377 = vadd.f32 %v3328, %v3376
      %v3378 = vpop.f32.mrb[0].mxu0
      %3379 = vmatprep.mubr.bf16.mxu0 %v2975
      %3380 = vmatmul.mubr.bf16.gmra.mrb[0].mxu0 %v2974
      %v3381 = vpop.f32.mrb[0].mxu0
      %v3382 = vadd.f32 %v3333, %v3381
      %v3383 = vpop.f32.mrb[0].mxu0
      %v3384 = vpop.f32.mrb[0].mxu0
      %v3385 = vadd.f32 %v3336, %v3384
      %v3386 = vpop.f32.mrb[0].mxu0
      %3387 = vdwg.mxu0
      %3388 = vmatprep.subr.bf16.mxu0 %v3137
      %3389 = vmatpush1.bf16.xpose.msra.mxu0 %v3136
      %3390 = vmatprep.subr.bf16.mxu0 %v3169
      %3391 = vmatpush1.bf16.xpose.msra.mxu0 %v3168
      %3392 = vmatprep.subr.bf16.mxu0 0
      %3393 = vmatpush1.bf16.xpose.msra.mxu0 0
      %3394 = vmatprep.subr.bf16.mxu0 0
      %3395 = vmatpush1.bf16.xpose.msra.mxu0 0
      %3396 = vmatprep.subr.bf16.mxu0 0
      %3397 = vmatpush1.bf16.xpose.msra.mxu0 0
      %3398 = vmatprep.subr.bf16.mxu0 0
      %3399 = vmatpush1.bf16.xpose.msra.mxu0 0
      %3400 = vmatprep.subr.bf16.mxu0 0
      %3401 = vmatpush1.bf16.xpose.msra.mxu0 0
      %3402 = vmatprep.subr.bf16.mxu0 0
      %3403 = vmatpush1.bf16.xpose.msra.mxu0 0
      %3404 = vmatprep.subr.bf16.mxu0 0
      %3405 = vmatpush1.bf16.xpose.msra.mxu0 0
      %3406 = vmatprep.subr.bf16.mxu0 0
      %3407 = vmatpush1.bf16.xpose.msra.mxu0 0
      %3408 = vmatprep.subr.bf16.mxu0 0
      %3409 = vmatpush1.bf16.xpose.msra.mxu0 0
      %3410 = vmatprep.subr.bf16.mxu0 0
      %3411 = vmatpush1.bf16.xpose.msra.mxu0 0
      %3412 = vmatprep.subr.bf16.mxu0 0
      %3413 = vmatpush1.bf16.xpose.msra.mxu0 0
      %3414 = vmatprep.subr.bf16.mxu0 0
      %3415 = vmatpush1.bf16.xpose.msra.mxu0 0
      %3416 = vmatprep.subr.bf16.mxu0 0
      %3417 = vmatpush1.bf16.xpose.msra.mxu0 0
      %3418 = vmatprep.subr.bf16.mxu0 0
      %3419 = vmatpush1.bf16.xpose.msra.mxu0 0
      %3420 = vmatprep.mubr.bf16.mxu0 %v2945
      %3421 = vmatmul.mubr.bf16.gmra.mrb[0].mxu0 %v2944
      %v3422 = vpop.f32.mrb[0].mxu0
      %v3423 = vadd.f32 %v3374, %v3422
      %v3424 = vpop.f32.mrb[0].mxu0
      %v3425 = vpop.f32.mrb[0].mxu0
      %v3426 = vadd.f32 %v3377, %v3425
      %v3427 = vpop.f32.mrb[0].mxu0
      %3428 = vmatprep.mubr.bf16.mxu0 %v2977
      %3429 = vmatmul.mubr.bf16.gmra.mrb[0].mxu0 %v2976
      %v3430 = vpop.f32.mrb[0].mxu0
      %v3431 = vadd.f32 %v3382, %v3430
      %v3432 = vpop.f32.mrb[0].mxu0
      %v3433 = vpop.f32.mrb[0].mxu0
      %v3434 = vadd.f32 %v3385, %v3433
      %v3435 = vpop.f32.mrb[0].mxu0
      %3436 = vdwg.mxu0
      %3437 = vmatprep.subr.bf16.mxu0 %v3139
      %3438 = vmatpush1.bf16.xpose.msra.mxu0 %v3138
      %3439 = vmatprep.subr.bf16.mxu0 %v3171
      %3440 = vmatpush1.bf16.xpose.msra.mxu0 %v3170
      %3441 = vmatprep.subr.bf16.mxu0 0
      %3442 = vmatpush1.bf16.xpose.msra.mxu0 0
      %3443 = vmatprep.subr.bf16.mxu0 0
      %3444 = vmatpush1.bf16.xpose.msra.mxu0 0
      %3445 = vmatprep.subr.bf16.mxu0 0
      %3446 = vmatpush1.bf16.xpose.msra.mxu0 0
      %3447 = vmatprep.subr.bf16.mxu0 0
      %3448 = vmatpush1.bf16.xpose.msra.mxu0 0
      %3449 = vmatprep.subr.bf16.mxu0 0
      %3450 = vmatpush1.bf16.xpose.msra.mxu0 0
      %3451 = vmatprep.subr.bf16.mxu0 0
      %3452 = vmatpush1.bf16.xpose.msra.mxu0 0
      %3453 = vmatprep.subr.bf16.mxu0 0
      %3454 = vmatpush1.bf16.xpose.msra.mxu0 0
      %3455 = vmatprep.subr.bf16.mxu0 0
      %3456 = vmatpush1.bf16.xpose.msra.mxu0 0
      %3457 = vmatprep.subr.bf16.mxu0 0
      %3458 = vmatpush1.bf16.xpose.msra.mxu0 0
      %3459 = vmatprep.subr.bf16.mxu0 0
      %3460 = vmatpush1.bf16.xpose.msra.mxu0 0
      %3461 = vmatprep.subr.bf16.mxu0 0
      %3462 = vmatpush1.bf16.xpose.msra.mxu0 0
      %3463 = vmatprep.subr.bf16.mxu0 0
      %3464 = vmatpush1.bf16.xpose.msra.mxu0 0
      %3465 = vmatprep.subr.bf16.mxu0 0
      %3466 = vmatpush1.bf16.xpose.msra.mxu0 0
      %3467 = vmatprep.subr.bf16.mxu0 0
      %3468 = vmatpush1.bf16.xpose.msra.mxu0 0
      %3469 = vmatprep.mubr.bf16.mxu0 %v2947
      %3470 = vmatmul.mubr.bf16.gmra.mrb[0].mxu0 %v2946
      %v3471 = vpop.f32.mrb[0].mxu0
      %v3472 = vadd.f32 %v3423, %v3471
      %v3473 = vpop.f32.mrb[0].mxu0
      %v3474 = vpop.f32.mrb[0].mxu0
      %v3475 = vadd.f32 %v3426, %v3474
      %v3476 = vpop.f32.mrb[0].mxu0
      %3477 = vmatprep.mubr.bf16.mxu0 %v2979
      %3478 = vmatmul.mubr.bf16.gmra.mrb[0].mxu0 %v2978
      %v3479 = vpop.f32.mrb[0].mxu0
      %v3480 = vadd.f32 %v3431, %v3479
      %v3481 = vpop.f32.mrb[0].mxu0
      %v3482 = vpop.f32.mrb[0].mxu0
      %v3483 = vadd.f32 %v3434, %v3482
      %v3484 = vpop.f32.mrb[0].mxu0
      %3485 = vdwg.mxu0
      %3486 = vmatprep.subr.bf16.mxu0 %v3141
      %3487 = vmatpush1.bf16.xpose.msra.mxu0 %v3140
      %3488 = vmatprep.subr.bf16.mxu0 %v3173
      %3489 = vmatpush1.bf16.xpose.msra.mxu0 %v3172
      %3490 = vmatprep.subr.bf16.mxu0 0
      %3491 = vmatpush1.bf16.xpose.msra.mxu0 0
      %3492 = vmatprep.subr.bf16.mxu0 0
      %3493 = vmatpush1.bf16.xpose.msra.mxu0 0
      %3494 = vmatprep.subr.bf16.mxu0 0
      %3495 = vmatpush1.bf16.xpose.msra.mxu0 0
      %3496 = vmatprep.subr.bf16.mxu0 0
      %3497 = vmatpush1.bf16.xpose.msra.mxu0 0
      %3498 = vmatprep.subr.bf16.mxu0 0
      %3499 = vmatpush1.bf16.xpose.msra.mxu0 0
      %3500 = vmatprep.subr.bf16.mxu0 0
      %3501 = vmatpush1.bf16.xpose.msra.mxu0 0
      %3502 = vmatprep.subr.bf16.mxu0 0
      %3503 = vmatpush1.bf16.xpose.msra.mxu0 0
      %3504 = vmatprep.subr.bf16.mxu0 0
      %3505 = vmatpush1.bf16.xpose.msra.mxu0 0
      %3506 = vmatprep.subr.bf16.mxu0 0
      %3507 = vmatpush1.bf16.xpose.msra.mxu0 0
      %3508 = vmatprep.subr.bf16.mxu0 0
      %3509 = vmatpush1.bf16.xpose.msra.mxu0 0
      %3510 = vmatprep.subr.bf16.mxu0 0
      %3511 = vmatpush1.bf16.xpose.msra.mxu0 0
      %3512 = vmatprep.subr.bf16.mxu0 0
      %3513 = vmatpush1.bf16.xpose.msra.mxu0 0
      %3514 = vmatprep.subr.bf16.mxu0 0
      %3515 = vmatpush1.bf16.xpose.msra.mxu0 0
      %3516 = vmatprep.subr.bf16.mxu0 0
      %3517 = vmatpush1.bf16.xpose.msra.mxu0 0
      %3518 = vmatprep.mubr.bf16.mxu0 %v2949
      %3519 = vmatmul.mubr.bf16.gmra.mrb[0].mxu0 %v2948
      %v3520 = vpop.f32.mrb[0].mxu0
      %v3521 = vadd.f32 %v3472, %v3520
      %v3522 = vpop.f32.mrb[0].mxu0
      %v3523 = vpop.f32.mrb[0].mxu0
      %v3524 = vadd.f32 %v3475, %v3523
      %v3525 = vpop.f32.mrb[0].mxu0
      %3526 = vmatprep.mubr.bf16.mxu0 %v2981
      %3527 = vmatmul.mubr.bf16.gmra.mrb[0].mxu0 %v2980
      %v3528 = vpop.f32.mrb[0].mxu0
      %v3529 = vadd.f32 %v3480, %v3528
      %v3530 = vpop.f32.mrb[0].mxu0
      %v3531 = vpop.f32.mrb[0].mxu0
      %v3532 = vadd.f32 %v3483, %v3531
      %v3533 = vpop.f32.mrb[0].mxu0
      %3534 = vdwg.mxu0
      %3535 = vmatprep.subr.bf16.mxu0 %v3143
      %3536 = vmatpush1.bf16.xpose.msra.mxu0 %v3142
      %3537 = vmatprep.subr.bf16.mxu0 %v3175
      %3538 = vmatpush1.bf16.xpose.msra.mxu0 %v3174
      %3539 = vmatprep.subr.bf16.mxu0 0
      %3540 = vmatpush1.bf16.xpose.msra.mxu0 0
      %3541 = vmatprep.subr.bf16.mxu0 0
      %3542 = vmatpush1.bf16.xpose.msra.mxu0 0
      %3543 = vmatprep.subr.bf16.mxu0 0
      %3544 = vmatpush1.bf16.xpose.msra.mxu0 0
      %3545 = vmatprep.subr.bf16.mxu0 0
      %3546 = vmatpush1.bf16.xpose.msra.mxu0 0
      %3547 = vmatprep.subr.bf16.mxu0 0
      %3548 = vmatpush1.bf16.xpose.msra.mxu0 0
      %3549 = vmatprep.subr.bf16.mxu0 0
      %3550 = vmatpush1.bf16.xpose.msra.mxu0 0
      %3551 = vmatprep.subr.bf16.mxu0 0
      %3552 = vmatpush1.bf16.xpose.msra.mxu0 0
      %3553 = vmatprep.subr.bf16.mxu0 0
      %3554 = vmatpush1.bf16.xpose.msra.mxu0 0
      %3555 = vmatprep.subr.bf16.mxu0 0
      %3556 = vmatpush1.bf16.xpose.msra.mxu0 0
      %3557 = vmatprep.subr.bf16.mxu0 0
      %3558 = vmatpush1.bf16.xpose.msra.mxu0 0
      %3559 = vmatprep.subr.bf16.mxu0 0
      %3560 = vmatpush1.bf16.xpose.msra.mxu0 0
      %3561 = vmatprep.subr.bf16.mxu0 0
      %3562 = vmatpush1.bf16.xpose.msra.mxu0 0
      %3563 = vmatprep.subr.bf16.mxu0 0
      %3564 = vmatpush1.bf16.xpose.msra.mxu0 0
      %3565 = vmatprep.subr.bf16.mxu0 0
      %3566 = vmatpush1.bf16.xpose.msra.mxu0 0
      %3567 = vmatprep.mubr.bf16.mxu0 %v2951
      %3568 = vmatmul.mubr.bf16.gmra.mrb[0].mxu0 %v2950
      %v3569 = vpop.f32.mrb[0].mxu0
      %v3570 = vadd.f32 %v3521, %v3569
      %v3571 = vpop.f32.mrb[0].mxu0
      %v3572 = vpop.f32.mrb[0].mxu0
      %v3573 = vadd.f32 %v3524, %v3572
      %v3574 = vpop.f32.mrb[0].mxu0
      %3575 = vmatprep.mubr.bf16.mxu0 %v2983
      %3576 = vmatmul.mubr.bf16.gmra.mrb[0].mxu0 %v2982
      %v3577 = vpop.f32.mrb[0].mxu0
      %v3578 = vadd.f32 %v3529, %v3577
      %v3579 = vpop.f32.mrb[0].mxu0
      %v3580 = vpop.f32.mrb[0].mxu0
      %v3581 = vadd.f32 %v3532, %v3580
      %v3582 = vpop.f32.mrb[0].mxu0
      %3583 = vdwg.mxu0
      %3584 = vmatprep.subr.bf16.mxu0 %v3145
      %3585 = vmatpush1.bf16.xpose.msra.mxu0 %v3144
      %3586 = vmatprep.subr.bf16.mxu0 %v3177
      %3587 = vmatpush1.bf16.xpose.msra.mxu0 %v3176
      %3588 = vmatprep.subr.bf16.mxu0 0
      %3589 = vmatpush1.bf16.xpose.msra.mxu0 0
      %3590 = vmatprep.subr.bf16.mxu0 0
      %3591 = vmatpush1.bf16.xpose.msra.mxu0 0
      %3592 = vmatprep.subr.bf16.mxu0 0
      %3593 = vmatpush1.bf16.xpose.msra.mxu0 0
      %3594 = vmatprep.subr.bf16.mxu0 0
      %3595 = vmatpush1.bf16.xpose.msra.mxu0 0
      %3596 = vmatprep.subr.bf16.mxu0 0
      %3597 = vmatpush1.bf16.xpose.msra.mxu0 0
      %3598 = vmatprep.subr.bf16.mxu0 0
      %3599 = vmatpush1.bf16.xpose.msra.mxu0 0
      %3600 = vmatprep.subr.bf16.mxu0 0
      %3601 = vmatpush1.bf16.xpose.msra.mxu0 0
      %3602 = vmatprep.subr.bf16.mxu0 0
      %3603 = vmatpush1.bf16.xpose.msra.mxu0 0
      %3604 = vmatprep.subr.bf16.mxu0 0
      %3605 = vmatpush1.bf16.xpose.msra.mxu0 0
      %3606 = vmatprep.subr.bf16.mxu0 0
      %3607 = vmatpush1.bf16.xpose.msra.mxu0 0
      %3608 = vmatprep.subr.bf16.mxu0 0
      %3609 = vmatpush1.bf16.xpose.msra.mxu0 0
      %3610 = vmatprep.subr.bf16.mxu0 0
      %3611 = vmatpush1.bf16.xpose.msra.mxu0 0
      %3612 = vmatprep.subr.bf16.mxu0 0
      %3613 = vmatpush1.bf16.xpose.msra.mxu0 0
      %3614 = vmatprep.subr.bf16.mxu0 0
      %3615 = vmatpush1.bf16.xpose.msra.mxu0 0
      %3616 = vmatprep.mubr.bf16.mxu0 %v2953
      %3617 = vmatmul.mubr.bf16.gmra.mrb[0].mxu0 %v2952
      %v3618 = vpop.f32.mrb[0].mxu0
      %v3619 = vadd.f32 %v3570, %v3618
      %v3620 = vpop.f32.mrb[0].mxu0
      %v3621 = vpop.f32.mrb[0].mxu0
      %v3622 = vadd.f32 %v3573, %v3621
      %v3623 = vpop.f32.mrb[0].mxu0
      %3624 = vmatprep.mubr.bf16.mxu0 %v2985
      %3625 = vmatmul.mubr.bf16.gmra.mrb[0].mxu0 %v2984
      %v3626 = vpop.f32.mrb[0].mxu0
      %v3627 = vadd.f32 %v3578, %v3626
      %v3628 = vpop.f32.mrb[0].mxu0
      %v3629 = vpop.f32.mrb[0].mxu0
      %v3630 = vadd.f32 %v3581, %v3629
      %v3631 = vpop.f32.mrb[0].mxu0
      %3632 = vdwg.mxu0
      %3633 = vmatprep.subr.bf16.mxu0 %v3147
      %3634 = vmatpush1.bf16.xpose.msra.mxu0 %v3146
      %3635 = vmatprep.subr.bf16.mxu0 %v3179
      %3636 = vmatpush1.bf16.xpose.msra.mxu0 %v3178
      %3637 = vmatprep.subr.bf16.mxu0 0
      %3638 = vmatpush1.bf16.xpose.msra.mxu0 0
      %3639 = vmatprep.subr.bf16.mxu0 0
      %3640 = vmatpush1.bf16.xpose.msra.mxu0 0
      %3641 = vmatprep.subr.bf16.mxu0 0
      %3642 = vmatpush1.bf16.xpose.msra.mxu0 0
      %3643 = vmatprep.subr.bf16.mxu0 0
      %3644 = vmatpush1.bf16.xpose.msra.mxu0 0
      %3645 = vmatprep.subr.bf16.mxu0 0
      %3646 = vmatpush1.bf16.xpose.msra.mxu0 0
      %3647 = vmatprep.subr.bf16.mxu0 0
      %3648 = vmatpush1.bf16.xpose.msra.mxu0 0
      %3649 = vmatprep.subr.bf16.mxu0 0
      %3650 = vmatpush1.bf16.xpose.msra.mxu0 0
      %3651 = vmatprep.subr.bf16.mxu0 0
      %3652 = vmatpush1.bf16.xpose.msra.mxu0 0
      %3653 = vmatprep.subr.bf16.mxu0 0
      %3654 = vmatpush1.bf16.xpose.msra.mxu0 0
      %3655 = vmatprep.subr.bf16.mxu0 0
      %3656 = vmatpush1.bf16.xpose.msra.mxu0 0
      %3657 = vmatprep.subr.bf16.mxu0 0
      %3658 = vmatpush1.bf16.xpose.msra.mxu0 0
      %3659 = vmatprep.subr.bf16.mxu0 0
      %3660 = vmatpush1.bf16.xpose.msra.mxu0 0
      %3661 = vmatprep.subr.bf16.mxu0 0
      %3662 = vmatpush1.bf16.xpose.msra.mxu0 0
      %3663 = vmatprep.subr.bf16.mxu0 0
      %3664 = vmatpush1.bf16.xpose.msra.mxu0 0
      %3665 = vmatprep.mubr.bf16.mxu0 %v2955
      %3666 = vmatmul.mubr.bf16.gmra.mrb[0].mxu0 %v2954
      %v3667 = vpop.f32.mrb[0].mxu0
      %v3668 = vadd.f32 %v3619, %v3667
      %v3669 = vpop.f32.mrb[0].mxu0
      %v3670 = vpop.f32.mrb[0].mxu0
      %v3671 = vadd.f32 %v3622, %v3670
      %v3672 = vpop.f32.mrb[0].mxu0
      %3673 = vmatprep.mubr.bf16.mxu0 %v2987
      %3674 = vmatmul.mubr.bf16.gmra.mrb[0].mxu0 %v2986
      %v3675 = vpop.f32.mrb[0].mxu0
      %v3676 = vadd.f32 %v3627, %v3675
      %v3677 = vpop.f32.mrb[0].mxu0
      %v3678 = vpop.f32.mrb[0].mxu0
      %v3679 = vadd.f32 %v3630, %v3678
      %v3680 = vpop.f32.mrb[0].mxu0
      %3681 = vdwg.mxu0
      %3682 = vmatprep.subr.bf16.mxu0 %v3149
      %3683 = vmatpush1.bf16.xpose.msra.mxu0 %v3148
      %3684 = vmatprep.subr.bf16.mxu0 %v3181
      %3685 = vmatpush1.bf16.xpose.msra.mxu0 %v3180
      %3686 = vmatprep.subr.bf16.mxu0 0
      %3687 = vmatpush1.bf16.xpose.msra.mxu0 0
      %3688 = vmatprep.subr.bf16.mxu0 0
      %3689 = vmatpush1.bf16.xpose.msra.mxu0 0
      %3690 = vmatprep.subr.bf16.mxu0 0
      %3691 = vmatpush1.bf16.xpose.msra.mxu0 0
      %3692 = vmatprep.subr.bf16.mxu0 0
      %3693 = vmatpush1.bf16.xpose.msra.mxu0 0
      %3694 = vmatprep.subr.bf16.mxu0 0
      %3695 = vmatpush1.bf16.xpose.msra.mxu0 0
      %3696 = vmatprep.subr.bf16.mxu0 0
      %3697 = vmatpush1.bf16.xpose.msra.mxu0 0
      %3698 = vmatprep.subr.bf16.mxu0 0
      %3699 = vmatpush1.bf16.xpose.msra.mxu0 0
      %3700 = vmatprep.subr.bf16.mxu0 0
      %3701 = vmatpush1.bf16.xpose.msra.mxu0 0
      %3702 = vmatprep.subr.bf16.mxu0 0
      %3703 = vmatpush1.bf16.xpose.msra.mxu0 0
      %3704 = vmatprep.subr.bf16.mxu0 0
      %3705 = vmatpush1.bf16.xpose.msra.mxu0 0
      %3706 = vmatprep.subr.bf16.mxu0 0
      %3707 = vmatpush1.bf16.xpose.msra.mxu0 0
      %3708 = vmatprep.subr.bf16.mxu0 0
      %3709 = vmatpush1.bf16.xpose.msra.mxu0 0
      %3710 = vmatprep.subr.bf16.mxu0 0
      %3711 = vmatpush1.bf16.xpose.msra.mxu0 0
      %3712 = vmatprep.subr.bf16.mxu0 0
      %3713 = vmatpush1.bf16.xpose.msra.mxu0 0
      %3714 = vmatprep.mubr.bf16.mxu0 %v2957
      %3715 = vmatmul.mubr.bf16.gmra.mrb[0].mxu0 %v2956
      %v3716 = vpop.f32.mrb[0].mxu0
      %v3717 = vadd.f32 %v3668, %v3716
      %v3718 = vpop.f32.mrb[0].mxu0
      %v3719 = vpop.f32.mrb[0].mxu0
      %v3720 = vadd.f32 %v3671, %v3719
      %v3721 = vpop.f32.mrb[0].mxu0
      %3722 = vmatprep.mubr.bf16.mxu0 %v2989
      %3723 = vmatmul.mubr.bf16.gmra.mrb[0].mxu0 %v2988
      %v3724 = vpop.f32.mrb[0].mxu0
      %v3725 = vadd.f32 %v3676, %v3724
      %v3726 = vpop.f32.mrb[0].mxu0
      %v3727 = vpop.f32.mrb[0].mxu0
      %v3728 = vadd.f32 %v3679, %v3727
      %v3729 = vpop.f32.mrb[0].mxu0
      %3730 = vdwg.mxu0
      %3731 = vmatprep.subr.bf16.mxu0 %v3151
      %3732 = vmatpush1.bf16.xpose.msra.mxu0 %v3150
      %3733 = vmatprep.subr.bf16.mxu0 %v3183
      %3734 = vmatpush1.bf16.xpose.msra.mxu0 %v3182
      %3735 = vmatprep.subr.bf16.mxu0 0
      %3736 = vmatpush1.bf16.xpose.msra.mxu0 0
      %3737 = vmatprep.subr.bf16.mxu0 0
      %3738 = vmatpush1.bf16.xpose.msra.mxu0 0
      %3739 = vmatprep.subr.bf16.mxu0 0
      %3740 = vmatpush1.bf16.xpose.msra.mxu0 0
      %3741 = vmatprep.subr.bf16.mxu0 0
      %3742 = vmatpush1.bf16.xpose.msra.mxu0 0
      %3743 = vmatprep.subr.bf16.mxu0 0
      %3744 = vmatpush1.bf16.xpose.msra.mxu0 0
      %3745 = vmatprep.subr.bf16.mxu0 0
      %3746 = vmatpush1.bf16.xpose.msra.mxu0 0
      %3747 = vmatprep.subr.bf16.mxu0 0
      %3748 = vmatpush1.bf16.xpose.msra.mxu0 0
      %3749 = vmatprep.subr.bf16.mxu0 0
      %3750 = vmatpush1.bf16.xpose.msra.mxu0 0
      %3751 = vmatprep.subr.bf16.mxu0 0
      %3752 = vmatpush1.bf16.xpose.msra.mxu0 0
      %3753 = vmatprep.subr.bf16.mxu0 0
      %3754 = vmatpush1.bf16.xpose.msra.mxu0 0
      %3755 = vmatprep.subr.bf16.mxu0 0
      %3756 = vmatpush1.bf16.xpose.msra.mxu0 0
      %3757 = vmatprep.subr.bf16.mxu0 0
      %3758 = vmatpush1.bf16.xpose.msra.mxu0 0
      %3759 = vmatprep.subr.bf16.mxu0 0
      %3760 = vmatpush1.bf16.xpose.msra.mxu0 0
      %3761 = vmatprep.subr.bf16.mxu0 0
      %3762 = vmatpush1.bf16.xpose.msra.mxu0 0
      %3763 = vmatprep.mubr.bf16.mxu0 %v2959
      %3764 = vmatmul.mubr.bf16.gmra.mrb[0].mxu0 %v2958
      %v3765 = vpop.f32.mrb[0].mxu0
      %v3766 = vadd.f32 %v3717, %v3765
      %v3767 = vpop.f32.mrb[0].mxu0
      %v3768 = vpop.f32.mrb[0].mxu0
      %v3769 = vadd.f32 %v3720, %v3768
      %v3770 = vpop.f32.mrb[0].mxu0
      %3771 = vmatprep.mubr.bf16.mxu0 %v2991
      %3772 = vmatmul.mubr.bf16.gmra.mrb[0].mxu0 %v2990
      %v3773 = vpop.f32.mrb[0].mxu0
      %v3774 = vadd.f32 %v3725, %v3773
      %v3775 = vpop.f32.mrb[0].mxu0
      %v3776 = vpop.f32.mrb[0].mxu0
      %v3777 = vadd.f32 %v3728, %v3776
      %v3778 = vpop.f32.mrb[0].mxu0
      %3779 = vdwg.mxu0
      %3780 = vmatprep.subr.bf16.mxu0 %v3153
      %3781 = vmatpush1.bf16.xpose.msra.mxu0 %v3152
      %3782 = vmatprep.subr.bf16.mxu0 %v3185
      %3783 = vmatpush1.bf16.xpose.msra.mxu0 %v3184
      %3784 = vmatprep.subr.bf16.mxu0 0
      %3785 = vmatpush1.bf16.xpose.msra.mxu0 0
      %3786 = vmatprep.subr.bf16.mxu0 0
      %3787 = vmatpush1.bf16.xpose.msra.mxu0 0
      %3788 = vmatprep.subr.bf16.mxu0 0
      %3789 = vmatpush1.bf16.xpose.msra.mxu0 0
      %3790 = vmatprep.subr.bf16.mxu0 0
      %3791 = vmatpush1.bf16.xpose.msra.mxu0 0
      %3792 = vmatprep.subr.bf16.mxu0 0
      %3793 = vmatpush1.bf16.xpose.msra.mxu0 0
      %3794 = vmatprep.subr.bf16.mxu0 0
      %3795 = vmatpush1.bf16.xpose.msra.mxu0 0
      %3796 = vmatprep.subr.bf16.mxu0 0
      %3797 = vmatpush1.bf16.xpose.msra.mxu0 0
      %3798 = vmatprep.subr.bf16.mxu0 0
      %3799 = vmatpush1.bf16.xpose.msra.mxu0 0
      %3800 = vmatprep.subr.bf16.mxu0 0
      %3801 = vmatpush1.bf16.xpose.msra.mxu0 0
      %3802 = vmatprep.subr.bf16.mxu0 0
      %3803 = vmatpush1.bf16.xpose.msra.mxu0 0
      %3804 = vmatprep.subr.bf16.mxu0 0
      %3805 = vmatpush1.bf16.xpose.msra.mxu0 0
      %3806 = vmatprep.subr.bf16.mxu0 0
      %3807 = vmatpush1.bf16.xpose.msra.mxu0 0
      %3808 = vmatprep.subr.bf16.mxu0 0
      %3809 = vmatpush1.bf16.xpose.msra.mxu0 0
      %3810 = vmatprep.subr.bf16.mxu0 0
      %3811 = vmatpush1.bf16.xpose.msra.mxu0 0
      %3812 = vmatprep.mubr.bf16.mxu0 %v2961
      %3813 = vmatmul.mubr.bf16.gmra.mrb[0].mxu0 %v2960
      %v3814 = vpop.f32.mrb[0].mxu0
      %v3815 = vadd.f32 %v3766, %v3814
      %v3816 = vpop.f32.mrb[0].mxu0
      %v3817 = vpop.f32.mrb[0].mxu0
      %v3818 = vadd.f32 %v3769, %v3817
      %v3819 = vpop.f32.mrb[0].mxu0
      %3820 = vmatprep.mubr.bf16.mxu0 %v2993
      %3821 = vmatmul.mubr.bf16.gmra.mrb[0].mxu0 %v2992
      %v3822 = vpop.f32.mrb[0].mxu0
      %v3823 = vadd.f32 %v3774, %v3822
      %v3824 = vpop.f32.mrb[0].mxu0
      %v3825 = vpop.f32.mrb[0].mxu0
      %v3826 = vadd.f32 %v3777, %v3825
      %v3827 = vpop.f32.mrb[0].mxu0
      %3828 = vdwg.mxu0
      %3829 = vmatprep.subr.bf16.mxu0 %v3155
      %3830 = vmatpush1.bf16.xpose.msra.mxu0 %v3154
      %3831 = vmatprep.subr.bf16.mxu0 %v3187
      %3832 = vmatpush1.bf16.xpose.msra.mxu0 %v3186
      %3833 = vmatprep.subr.bf16.mxu0 0
      %3834 = vmatpush1.bf16.xpose.msra.mxu0 0
      %3835 = vmatprep.subr.bf16.mxu0 0
      %3836 = vmatpush1.bf16.xpose.msra.mxu0 0
      %3837 = vmatprep.subr.bf16.mxu0 0
      %3838 = vmatpush1.bf16.xpose.msra.mxu0 0
      %3839 = vmatprep.subr.bf16.mxu0 0
      %3840 = vmatpush1.bf16.xpose.msra.mxu0 0
      %3841 = vmatprep.subr.bf16.mxu0 0
      %3842 = vmatpush1.bf16.xpose.msra.mxu0 0
      %3843 = vmatprep.subr.bf16.mxu0 0
      %3844 = vmatpush1.bf16.xpose.msra.mxu0 0
      %3845 = vmatprep.subr.bf16.mxu0 0
      %3846 = vmatpush1.bf16.xpose.msra.mxu0 0
      %3847 = vmatprep.subr.bf16.mxu0 0
      %3848 = vmatpush1.bf16.xpose.msra.mxu0 0
      %3849 = vmatprep.subr.bf16.mxu0 0
      %3850 = vmatpush1.bf16.xpose.msra.mxu0 0
      %3851 = vmatprep.subr.bf16.mxu0 0
      %3852 = vmatpush1.bf16.xpose.msra.mxu0 0
      %3853 = vmatprep.subr.bf16.mxu0 0
      %3854 = vmatpush1.bf16.xpose.msra.mxu0 0
      %3855 = vmatprep.subr.bf16.mxu0 0
      %3856 = vmatpush1.bf16.xpose.msra.mxu0 0
      %3857 = vmatprep.subr.bf16.mxu0 0
      %3858 = vmatpush1.bf16.xpose.msra.mxu0 0
      %3859 = vmatprep.subr.bf16.mxu0 0
      %3860 = vmatpush1.bf16.xpose.msra.mxu0 0
      %3861 = vmatprep.mubr.bf16.mxu0 %v2963
      %3862 = vmatmul.mubr.bf16.gmra.mrb[0].mxu0 %v2962
      %v3863 = vpop.f32.mrb[0].mxu0
      %v3864 = vadd.f32 %v3815, %v3863
      %v3865 = vpop.f32.mrb[0].mxu0
      %v3866 = vpop.f32.mrb[0].mxu0
      %v3867 = vadd.f32 %v3818, %v3866
      %v3868 = vpop.f32.mrb[0].mxu0
      %3869 = vmatprep.mubr.bf16.mxu0 %v2995
      %3870 = vmatmul.mubr.bf16.gmra.mrb[0].mxu0 %v2994
      %v3871 = vpop.f32.mrb[0].mxu0
      %v3872 = vadd.f32 %v3823, %v3871
      %v3873 = vpop.f32.mrb[0].mxu0
      %v3874 = vpop.f32.mrb[0].mxu0
      %v3875 = vadd.f32 %v3826, %v3874
      %v3876 = vpop.f32.mrb[0].mxu0
      %3877 = vdwg.mxu0
      %3878 = vmatprep.subr.bf16.mxu0 %v3157
      %3879 = vmatpush1.bf16.xpose.msra.mxu0 %v3156
      %3880 = vmatprep.subr.bf16.mxu0 %v3189
      %3881 = vmatpush1.bf16.xpose.msra.mxu0 %v3188
      %3882 = vmatprep.subr.bf16.mxu0 0
      %3883 = vmatpush1.bf16.xpose.msra.mxu0 0
      %3884 = vmatprep.subr.bf16.mxu0 0
      %3885 = vmatpush1.bf16.xpose.msra.mxu0 0
      %3886 = vmatprep.subr.bf16.mxu0 0
      %3887 = vmatpush1.bf16.xpose.msra.mxu0 0
      %3888 = vmatprep.subr.bf16.mxu0 0
      %3889 = vmatpush1.bf16.xpose.msra.mxu0 0
      %3890 = vmatprep.subr.bf16.mxu0 0
      %3891 = vmatpush1.bf16.xpose.msra.mxu0 0
      %3892 = vmatprep.subr.bf16.mxu0 0
      %3893 = vmatpush1.bf16.xpose.msra.mxu0 0
      %3894 = vmatprep.subr.bf16.mxu0 0
      %3895 = vmatpush1.bf16.xpose.msra.mxu0 0
      %3896 = vmatprep.subr.bf16.mxu0 0
      %3897 = vmatpush1.bf16.xpose.msra.mxu0 0
      %3898 = vmatprep.subr.bf16.mxu0 0
      %3899 = vmatpush1.bf16.xpose.msra.mxu0 0
      %3900 = vmatprep.subr.bf16.mxu0 0
      %3901 = vmatpush1.bf16.xpose.msra.mxu0 0
      %3902 = vmatprep.subr.bf16.mxu0 0
      %3903 = vmatpush1.bf16.xpose.msra.mxu0 0
      %3904 = vmatprep.subr.bf16.mxu0 0
      %3905 = vmatpush1.bf16.xpose.msra.mxu0 0
      %3906 = vmatprep.subr.bf16.mxu0 0
      %3907 = vmatpush1.bf16.xpose.msra.mxu0 0
      %3908 = vmatprep.subr.bf16.mxu0 0
      %3909 = vmatpush1.bf16.xpose.msra.mxu0 0
      %3910 = vmatprep.mubr.bf16.mxu0 %v2965
      %3911 = vmatmul.mubr.bf16.gmra.mrb[0].mxu0 %v2964
      %v3912 = vpop.f32.mrb[0].mxu0
      %v3913 = vadd.f32 %v3864, %v3912
      %v3914 = vpop.f32.mrb[0].mxu0
      %v3915 = vpop.f32.mrb[0].mxu0
      %v3916 = vadd.f32 %v3867, %v3915
      %v3917 = vpop.f32.mrb[0].mxu0
      %3918 = vmatprep.mubr.bf16.mxu0 %v2997
      %3919 = vmatmul.mubr.bf16.gmra.mrb[0].mxu0 %v2996
      %v3920 = vpop.f32.mrb[0].mxu0
      %v3921 = vadd.f32 %v3872, %v3920
      %v3922 = vpop.f32.mrb[0].mxu0
      %v3923 = vpop.f32.mrb[0].mxu0
      %v3924 = vadd.f32 %v3875, %v3923
      %v3925 = vpop.f32.mrb[0].mxu0
      %3926 = vdwg.mxu0
      %3927 = vmatprep.subr.bf16.mxu0 %v3159
      %3928 = vmatpush1.bf16.xpose.msra.mxu0 %v3158
      %3929 = vmatprep.subr.bf16.mxu0 %v3191
      %3930 = vmatpush1.bf16.xpose.msra.mxu0 %v3190
      %3931 = vmatprep.subr.bf16.mxu0 0
      %3932 = vmatpush1.bf16.xpose.msra.mxu0 0
      %3933 = vmatprep.subr.bf16.mxu0 0
      %3934 = vmatpush1.bf16.xpose.msra.mxu0 0
      %3935 = vmatprep.subr.bf16.mxu0 0
      %3936 = vmatpush1.bf16.xpose.msra.mxu0 0
      %3937 = vmatprep.subr.bf16.mxu0 0
      %3938 = vmatpush1.bf16.xpose.msra.mxu0 0
      %3939 = vmatprep.subr.bf16.mxu0 0
      %3940 = vmatpush1.bf16.xpose.msra.mxu0 0
      %3941 = vmatprep.subr.bf16.mxu0 0
      %3942 = vmatpush1.bf16.xpose.msra.mxu0 0
      %3943 = vmatprep.subr.bf16.mxu0 0
      %3944 = vmatpush1.bf16.xpose.msra.mxu0 0
      %3945 = vmatprep.subr.bf16.mxu0 0
      %3946 = vmatpush1.bf16.xpose.msra.mxu0 0
      %3947 = vmatprep.subr.bf16.mxu0 0
      %3948 = vmatpush1.bf16.xpose.msra.mxu0 0
      %3949 = vmatprep.subr.bf16.mxu0 0
      %3950 = vmatpush1.bf16.xpose.msra.mxu0 0
      %3951 = vmatprep.subr.bf16.mxu0 0
      %3952 = vmatpush1.bf16.xpose.msra.mxu0 0
      %3953 = vmatprep.subr.bf16.mxu0 0
      %3954 = vmatpush1.bf16.xpose.msra.mxu0 0
      %3955 = vmatprep.subr.bf16.mxu0 0
      %3956 = vmatpush1.bf16.xpose.msra.mxu0 0
      %3957 = vmatprep.subr.bf16.mxu0 0
      %3958 = vmatpush1.bf16.xpose.msra.mxu0 0
      %3959 = vmatprep.mubr.bf16.mxu0 %v2967
      %3960 = vmatmul.mubr.bf16.gmra.mrb[0].mxu0 %v2966
      %v3961 = vpop.f32.mrb[0].mxu0
      %v3962 = vadd.f32 %v3913, %v3961
      %v3963 = vpop.f32.mrb[0].mxu0
      %v3964 = vpop.f32.mrb[0].mxu0
      %v3965 = vadd.f32 %v3916, %v3964
      %v3966 = vpop.f32.mrb[0].mxu0
      %3967 = vmatprep.mubr.bf16.mxu0 %v2999
      %3968 = vmatmul.mubr.bf16.gmra.mrb[0].mxu0 %v2998
      %v3969 = vpop.f32.mrb[0].mxu0
      %v3970 = vadd.f32 %v3921, %v3969
      %v3971 = vpop.f32.mrb[0].mxu0
      %v3972 = vpop.f32.mrb[0].mxu0
      %v3973 = vadd.f32 %v3924, %v3972
      %v3974 = vpop.f32.mrb[0].mxu0
      %3975 = vdwg.mxu0
      %v3976 = vld [vmem:[%s409] sm:$0xff]
      %v3977 = vld [vmem:[%s409 + $0x8] sm:$0xff]
      %v3978 = vld [vmem:[%s409 + $0x10] sm:$0xff]
      %v3979 = vld [vmem:[%s409 + $0x18] sm:$0xff]
      %3981 = vset.pattern.permute.xlu0 0
      %3982 = vperm.xlu0 %3981, %v3976
      %v3983 = vpop.permute.xlu0 %3982
      %3986 = vset.pattern.permute.xlu0 0
      %3987 = vperm.xlu0 %3986, %v3977
      %v3988 = vpop.permute.xlu0 %3987
      %3991 = vset.pattern.permute.xlu0 0
      %3992 = vperm.xlu0 %3991, %v3978
      %v3993 = vpop.permute.xlu0 %3992
      %3996 = vset.pattern.permute.xlu0 0
      %3997 = vperm.xlu0 %3996, %v3979
      %v3998 = vpop.permute.xlu0 %3997
      %v4000 = vmul.f32 %v3962, %v3983
      %v4001 = vmul.f32 %v3965, %v3988
      %v4002 = vmul.f32 %v3970, %v3993
      %v4003 = vmul.f32 %v3973, %v3998
      %vm4004 = vcmask 261120
      %4005 = vst.msk [vmem:[%s449] sm:$0xff] %vm4004, %v4000
      %4006 = vst.msk [vmem:[%s449 + $0x8] sm:$0xff] %vm4004, %v4001
      %4007 = vst.msk [vmem:[%s449 + $0x10] sm:$0xff] %vm4004, %v4002
      %4008 = vst.msk [vmem:[%s449 + $0x18] sm:$0xff] %vm4004, %v4003
      %v4009 = vld [vmem:[#allocation3] sm:$0xff]
      %v4010 = vld [vmem:[#allocation3 + $0x8] sm:$0xff]
      %v4011 = vld [vmem:[#allocation3 + $0x10] sm:$0xff]
      %v4012 = vld [vmem:[#allocation3 + $0x18] sm:$0xff]
      %v4013 = vld [vmem:[#allocation3 + $0x20] sm:$0xff]
      %v4014 = vld [vmem:[#allocation3 + $0x28] sm:$0xff]
      %v4015 = vld [vmem:[#allocation3 + $0x30] sm:$0xff]
      %v4016 = vld [vmem:[#allocation3 + $0x38] sm:$0xff]
      %v4017 = vld [vmem:[#allocation3 + $0x40] sm:$0xff]
      %v4018 = vld [vmem:[#allocation3 + $0x48] sm:$0xff]
      %v4019 = vld [vmem:[#allocation3 + $0x50] sm:$0xff]
      %v4020 = vld [vmem:[#allocation3 + $0x58] sm:$0xff]
      %v4021 = vld [vmem:[#allocation3 + $0x60] sm:$0xff]
      %v4022 = vld [vmem:[#allocation3 + $0x68] sm:$0xff]
      %v4023 = vld [vmem:[#allocation3 + $0x70] sm:$0xff]
      %v4024 = vld [vmem:[#allocation3 + $0x78] sm:$0xff]
      %v4025 = vld [vmem:[#allocation3 + $0x80] sm:$0xff]
      %v4026 = vld [vmem:[#allocation3 + $0x88] sm:$0xff]
      %v4027 = vld [vmem:[#allocation3 + $0x90] sm:$0xff]
      %v4028 = vld [vmem:[#allocation3 + $0x98] sm:$0xff]
      %v4029 = vld [vmem:[#allocation3 + $0xa0] sm:$0xff]
      %v4030 = vld [vmem:[#allocation3 + $0xa8] sm:$0xff]
      %v4031 = vld [vmem:[#allocation3 + $0xb0] sm:$0xff]
      %v4032 = vld [vmem:[#allocation3 + $0xb8] sm:$0xff]
      %v4033 = vld [vmem:[#allocation3 + $0xc0] sm:$0xff]
      %v4034 = vld [vmem:[#allocation3 + $0xc8] sm:$0xff]
      %v4035 = vld [vmem:[#allocation3 + $0xd0] sm:$0xff]
      %v4036 = vld [vmem:[#allocation3 + $0xd8] sm:$0xff]
      %v4037 = vld [vmem:[#allocation3 + $0xe0] sm:$0xff]
      %v4038 = vld [vmem:[#allocation3 + $0xe8] sm:$0xff]
      %v4039 = vld [vmem:[#allocation3 + $0xf0] sm:$0xff]
      %v4040 = vld [vmem:[#allocation3 + $0xf8] sm:$0xff]
      %v4041 = vld [vmem:[#allocation3 + $0x100] sm:$0xff]
      %v4042 = vld [vmem:[#allocation3 + $0x108] sm:$0xff]
      %v4043 = vld [vmem:[#allocation3 + $0x110] sm:$0xff]
      %v4044 = vld [vmem:[#allocation3 + $0x118] sm:$0xff]
      %v4045 = vld [vmem:[#allocation3 + $0x120] sm:$0xff]
      %v4046 = vld [vmem:[#allocation3 + $0x128] sm:$0xff]
      %v4047 = vld [vmem:[#allocation3 + $0x130] sm:$0xff]
      %v4048 = vld [vmem:[#allocation3 + $0x138] sm:$0xff]
      %v4049 = vld [vmem:[#allocation3 + $0x140] sm:$0xff]
      %v4050 = vld [vmem:[#allocation3 + $0x148] sm:$0xff]
      %v4051 = vld [vmem:[#allocation3 + $0x150] sm:$0xff]
      %v4052 = vld [vmem:[#allocation3 + $0x158] sm:$0xff]
      %v4053 = vld [vmem:[#allocation3 + $0x160] sm:$0xff]
      %v4054 = vld [vmem:[#allocation3 + $0x168] sm:$0xff]
      %v4055 = vld [vmem:[#allocation3 + $0x170] sm:$0xff]
      %v4056 = vld [vmem:[#allocation3 + $0x178] sm:$0xff]
      %v4057 = vld [vmem:[#allocation3 + $0x180] sm:$0xff]
      %v4058 = vld [vmem:[#allocation3 + $0x188] sm:$0xff]
      %v4059 = vld [vmem:[#allocation3 + $0x190] sm:$0xff]
      %v4060 = vld [vmem:[#allocation3 + $0x198] sm:$0xff]
      %v4061 = vld [vmem:[#allocation3 + $0x1a0] sm:$0xff]
      %v4062 = vld [vmem:[#allocation3 + $0x1a8] sm:$0xff]
      %v4063 = vld [vmem:[#allocation3 + $0x1b0] sm:$0xff]
      %v4064 = vld [vmem:[#allocation3 + $0x1b8] sm:$0xff]
      %v4065 = vld [vmem:[#allocation3 + $0x1c0] sm:$0xff]
      %v4066 = vld [vmem:[#allocation3 + $0x1c8] sm:$0xff]
      %v4067 = vld [vmem:[#allocation3 + $0x1d0] sm:$0xff]
      %v4068 = vld [vmem:[#allocation3 + $0x1d8] sm:$0xff]
      %v4069 = vld [vmem:[#allocation3 + $0x1e0] sm:$0xff]
      %v4070 = vld [vmem:[#allocation3 + $0x1e8] sm:$0xff]
      %v4071 = vld [vmem:[#allocation3 + $0x1f0] sm:$0xff]
      %v4072 = vld [vmem:[#allocation3 + $0x1f8] sm:$0xff]
      %v4073 = vld [vmem:[%s440] sm:$0xff]
      %v4074 = vld [vmem:[%s440 + $0x8] sm:$0xff]
      %v4075 = vld [vmem:[%s440 + $0x10] sm:$0xff]
      %v4076 = vld [vmem:[%s440 + $0x18] sm:$0xff]
      %v4077 = vld [vmem:[%s440 + $0x20] sm:$0xff]
      %v4078 = vld [vmem:[%s440 + $0x28] sm:$0xff]
      %v4079 = vld [vmem:[%s440 + $0x30] sm:$0xff]
      %v4080 = vld [vmem:[%s440 + $0x38] sm:$0xff]
      %v4081 = vld [vmem:[%s440 + $0x40] sm:$0xff]
      %v4082 = vld [vmem:[%s440 + $0x48] sm:$0xff]
      %v4083 = vld [vmem:[%s440 + $0x50] sm:$0xff]
      %v4084 = vld [vmem:[%s440 + $0x58] sm:$0xff]
      %v4085 = vld [vmem:[%s440 + $0x60] sm:$0xff]
      %v4086 = vld [vmem:[%s440 + $0x68] sm:$0xff]
      %v4087 = vld [vmem:[%s440 + $0x70] sm:$0xff]
      %v4088 = vld [vmem:[%s440 + $0x78] sm:$0xff]
      %v4089 = vld [vmem:[%s440 + $0x80] sm:$0xff]
      %v4090 = vld [vmem:[%s440 + $0x88] sm:$0xff]
      %v4091 = vld [vmem:[%s440 + $0x90] sm:$0xff]
      %v4092 = vld [vmem:[%s440 + $0x98] sm:$0xff]
      %v4093 = vld [vmem:[%s440 + $0xa0] sm:$0xff]
      %v4094 = vld [vmem:[%s440 + $0xa8] sm:$0xff]
      %v4095 = vld [vmem:[%s440 + $0xb0] sm:$0xff]
      %v4096 = vld [vmem:[%s440 + $0xb8] sm:$0xff]
      %v4097 = vld [vmem:[%s440 + $0xc0] sm:$0xff]
      %v4098 = vld [vmem:[%s440 + $0xc8] sm:$0xff]
      %v4099 = vld [vmem:[%s440 + $0xd0] sm:$0xff]
      %v4100 = vld [vmem:[%s440 + $0xd8] sm:$0xff]
      %v4101 = vld [vmem:[%s440 + $0xe0] sm:$0xff]
      %v4102 = vld [vmem:[%s440 + $0xe8] sm:$0xff]
      %v4103 = vld [vmem:[%s440 + $0xf0] sm:$0xff]
      %v4104 = vld [vmem:[%s440 + $0xf8] sm:$0xff]
      %v4105 = vld [vmem:[%s440 + $0x100] sm:$0xff]
      %v4106 = vld [vmem:[%s440 + $0x108] sm:$0xff]
      %v4107 = vld [vmem:[%s440 + $0x110] sm:$0xff]
      %v4108 = vld [vmem:[%s440 + $0x118] sm:$0xff]
      %v4109 = vld [vmem:[%s440 + $0x120] sm:$0xff]
      %v4110 = vld [vmem:[%s440 + $0x128] sm:$0xff]
      %v4111 = vld [vmem:[%s440 + $0x130] sm:$0xff]
      %v4112 = vld [vmem:[%s440 + $0x138] sm:$0xff]
      %v4113 = vld [vmem:[%s440 + $0x140] sm:$0xff]
      %v4114 = vld [vmem:[%s440 + $0x148] sm:$0xff]
      %v4115 = vld [vmem:[%s440 + $0x150] sm:$0xff]
      %v4116 = vld [vmem:[%s440 + $0x158] sm:$0xff]
      %v4117 = vld [vmem:[%s440 + $0x160] sm:$0xff]
      %v4118 = vld [vmem:[%s440 + $0x168] sm:$0xff]
      %v4119 = vld [vmem:[%s440 + $0x170] sm:$0xff]
      %v4120 = vld [vmem:[%s440 + $0x178] sm:$0xff]
      %v4121 = vld [vmem:[%s440 + $0x180] sm:$0xff]
      %v4122 = vld [vmem:[%s440 + $0x188] sm:$0xff]
      %v4123 = vld [vmem:[%s440 + $0x190] sm:$0xff]
      %v4124 = vld [vmem:[%s440 + $0x198] sm:$0xff]
      %v4125 = vld [vmem:[%s440 + $0x1a0] sm:$0xff]
      %v4126 = vld [vmem:[%s440 + $0x1a8] sm:$0xff]
      %v4127 = vld [vmem:[%s440 + $0x1b0] sm:$0xff]
      %v4128 = vld [vmem:[%s440 + $0x1b8] sm:$0xff]
      %v4129 = vld [vmem:[%s440 + $0x1c0] sm:$0xff]
      %v4130 = vld [vmem:[%s440 + $0x1c8] sm:$0xff]
      %v4131 = vld [vmem:[%s440 + $0x1d0] sm:$0xff]
      %v4132 = vld [vmem:[%s440 + $0x1d8] sm:$0xff]
      %v4133 = vld [vmem:[%s440 + $0x1e0] sm:$0xff]
      %v4134 = vld [vmem:[%s440 + $0x1e8] sm:$0xff]
      %v4135 = vld [vmem:[%s440 + $0x1f0] sm:$0xff]
      %v4136 = vld [vmem:[%s440 + $0x1f8] sm:$0xff]
      %v4137 = vld [vmem:[%s440 + $0x200] sm:$0xff]
      %v4138 = vld [vmem:[%s440 + $0x208] sm:$0xff]
      %v4139 = vld [vmem:[%s440 + $0x210] sm:$0xff]
      %v4140 = vld [vmem:[%s440 + $0x218] sm:$0xff]
      %v4141 = vld [vmem:[%s440 + $0x220] sm:$0xff]
      %v4142 = vld [vmem:[%s440 + $0x228] sm:$0xff]
      %v4143 = vld [vmem:[%s440 + $0x230] sm:$0xff]
      %v4144 = vld [vmem:[%s440 + $0x238] sm:$0xff]
      %v4145 = vld [vmem:[%s440 + $0x240] sm:$0xff]
      %v4146 = vld [vmem:[%s440 + $0x248] sm:$0xff]
      %v4147 = vld [vmem:[%s440 + $0x250] sm:$0xff]
      %v4148 = vld [vmem:[%s440 + $0x258] sm:$0xff]
      %v4149 = vld [vmem:[%s440 + $0x260] sm:$0xff]
      %v4150 = vld [vmem:[%s440 + $0x268] sm:$0xff]
      %v4151 = vld [vmem:[%s440 + $0x270] sm:$0xff]
      %v4152 = vld [vmem:[%s440 + $0x278] sm:$0xff]
      %v4153 = vld [vmem:[%s440 + $0x280] sm:$0xff]
      %v4154 = vld [vmem:[%s440 + $0x288] sm:$0xff]
      %v4155 = vld [vmem:[%s440 + $0x290] sm:$0xff]
      %v4156 = vld [vmem:[%s440 + $0x298] sm:$0xff]
      %v4157 = vld [vmem:[%s440 + $0x2a0] sm:$0xff]
      %v4158 = vld [vmem:[%s440 + $0x2a8] sm:$0xff]
      %v4159 = vld [vmem:[%s440 + $0x2b0] sm:$0xff]
      %v4160 = vld [vmem:[%s440 + $0x2b8] sm:$0xff]
      %v4161 = vld [vmem:[%s440 + $0x2c0] sm:$0xff]
      %v4162 = vld [vmem:[%s440 + $0x2c8] sm:$0xff]
      %v4163 = vld [vmem:[%s440 + $0x2d0] sm:$0xff]
      %v4164 = vld [vmem:[%s440 + $0x2d8] sm:$0xff]
      %v4165 = vld [vmem:[%s440 + $0x2e0] sm:$0xff]
      %v4166 = vld [vmem:[%s440 + $0x2e8] sm:$0xff]
      %v4167 = vld [vmem:[%s440 + $0x2f0] sm:$0xff]
      %v4168 = vld [vmem:[%s440 + $0x2f8] sm:$0xff]
      %v4169 = vld [vmem:[%s440 + $0x300] sm:$0xff]
      %v4170 = vld [vmem:[%s440 + $0x308] sm:$0xff]
      %v4171 = vld [vmem:[%s440 + $0x310] sm:$0xff]
      %v4172 = vld [vmem:[%s440 + $0x318] sm:$0xff]
      %v4173 = vld [vmem:[%s440 + $0x320] sm:$0xff]
      %v4174 = vld [vmem:[%s440 + $0x328] sm:$0xff]
      %v4175 = vld [vmem:[%s440 + $0x330] sm:$0xff]
      %v4176 = vld [vmem:[%s440 + $0x338] sm:$0xff]
      %v4177 = vld [vmem:[%s440 + $0x340] sm:$0xff]
      %v4178 = vld [vmem:[%s440 + $0x348] sm:$0xff]
      %v4179 = vld [vmem:[%s440 + $0x350] sm:$0xff]
      %v4180 = vld [vmem:[%s440 + $0x358] sm:$0xff]
      %v4181 = vld [vmem:[%s440 + $0x360] sm:$0xff]
      %v4182 = vld [vmem:[%s440 + $0x368] sm:$0xff]
      %v4183 = vld [vmem:[%s440 + $0x370] sm:$0xff]
      %v4184 = vld [vmem:[%s440 + $0x378] sm:$0xff]
      %v4185 = vld [vmem:[%s440 + $0x380] sm:$0xff]
      %v4186 = vld [vmem:[%s440 + $0x388] sm:$0xff]
      %v4187 = vld [vmem:[%s440 + $0x390] sm:$0xff]
      %v4188 = vld [vmem:[%s440 + $0x398] sm:$0xff]
      %v4189 = vld [vmem:[%s440 + $0x3a0] sm:$0xff]
      %v4190 = vld [vmem:[%s440 + $0x3a8] sm:$0xff]
      %v4191 = vld [vmem:[%s440 + $0x3b0] sm:$0xff]
      %v4192 = vld [vmem:[%s440 + $0x3b8] sm:$0xff]
      %v4193 = vld [vmem:[%s440 + $0x3c0] sm:$0xff]
      %v4194 = vld [vmem:[%s440 + $0x3c8] sm:$0xff]
      %v4195 = vld [vmem:[%s440 + $0x3d0] sm:$0xff]
      %v4196 = vld [vmem:[%s440 + $0x3d8] sm:$0xff]
      %v4197 = vld [vmem:[%s440 + $0x3e0] sm:$0xff]
      %v4198 = vld [vmem:[%s440 + $0x3e8] sm:$0xff]
      %v4199 = vld [vmem:[%s440 + $0x3f0] sm:$0xff]
      %v4200 = vld [vmem:[%s440 + $0x3f8] sm:$0xff]
      %v4201 = vpack.c.bf16 %v4105, %v4073
      %v4202 = vpack.c.bf16 %v4106, %v4074
      %v4203 = vpack.c.bf16 %v4107, %v4075
      %v4204 = vpack.c.bf16 %v4108, %v4076
      %v4205 = vpack.c.bf16 %v4109, %v4077
      %v4206 = vpack.c.bf16 %v4110, %v4078
      %v4207 = vpack.c.bf16 %v4111, %v4079
      %v4208 = vpack.c.bf16 %v4112, %v4080
      %v4209 = vpack.c.bf16 %v4113, %v4081
      %v4210 = vpack.c.bf16 %v4114, %v4082
      %v4211 = vpack.c.bf16 %v4115, %v4083
      %v4212 = vpack.c.bf16 %v4116, %v4084
      %v4213 = vpack.c.bf16 %v4117, %v4085
      %v4214 = vpack.c.bf16 %v4118, %v4086
      %v4215 = vpack.c.bf16 %v4119, %v4087
      %v4216 = vpack.c.bf16 %v4120, %v4088
      %v4217 = vpack.c.bf16 %v4121, %v4089
      %v4218 = vpack.c.bf16 %v4122, %v4090
      %v4219 = vpack.c.bf16 %v4123, %v4091
      %v4220 = vpack.c.bf16 %v4124, %v4092
      %v4221 = vpack.c.bf16 %v4125, %v4093
      %v4222 = vpack.c.bf16 %v4126, %v4094
      %v4223 = vpack.c.bf16 %v4127, %v4095
      %v4224 = vpack.c.bf16 %v4128, %v4096
      %v4225 = vpack.c.bf16 %v4129, %v4097
      %v4226 = vpack.c.bf16 %v4130, %v4098
      %v4227 = vpack.c.bf16 %v4131, %v4099
      %v4228 = vpack.c.bf16 %v4132, %v4100
      %v4229 = vpack.c.bf16 %v4133, %v4101
      %v4230 = vpack.c.bf16 %v4134, %v4102
      %v4231 = vpack.c.bf16 %v4135, %v4103
      %v4232 = vpack.c.bf16 %v4136, %v4104
      %v4233 = vpack.c.bf16 %v4169, %v4137
      %v4234 = vpack.c.bf16 %v4170, %v4138
      %v4235 = vpack.c.bf16 %v4171, %v4139
      %v4236 = vpack.c.bf16 %v4172, %v4140
      %v4237 = vpack.c.bf16 %v4173, %v4141
      %v4238 = vpack.c.bf16 %v4174, %v4142
      %v4239 = vpack.c.bf16 %v4175, %v4143
      %v4240 = vpack.c.bf16 %v4176, %v4144
      %v4241 = vpack.c.bf16 %v4177, %v4145
      %v4242 = vpack.c.bf16 %v4178, %v4146
      %v4243 = vpack.c.bf16 %v4179, %v4147
      %v4244 = vpack.c.bf16 %v4180, %v4148
      %v4245 = vpack.c.bf16 %v4181, %v4149
      %v4246 = vpack.c.bf16 %v4182, %v4150
      %v4247 = vpack.c.bf16 %v4183, %v4151
      %v4248 = vpack.c.bf16 %v4184, %v4152
      %v4249 = vpack.c.bf16 %v4185, %v4153
      %v4250 = vpack.c.bf16 %v4186, %v4154
      %v4251 = vpack.c.bf16 %v4187, %v4155
      %v4252 = vpack.c.bf16 %v4188, %v4156
      %v4253 = vpack.c.bf16 %v4189, %v4157
      %v4254 = vpack.c.bf16 %v4190, %v4158
      %v4255 = vpack.c.bf16 %v4191, %v4159
      %v4256 = vpack.c.bf16 %v4192, %v4160
      %v4257 = vpack.c.bf16 %v4193, %v4161
      %v4258 = vpack.c.bf16 %v4194, %v4162
      %v4259 = vpack.c.bf16 %v4195, %v4163
      %v4260 = vpack.c.bf16 %v4196, %v4164
      %v4261 = vpack.c.bf16 %v4197, %v4165
      %v4262 = vpack.c.bf16 %v4198, %v4166
      %v4263 = vpack.c.bf16 %v4199, %v4167
      %v4264 = vpack.c.bf16 %v4200, %v4168
      %4265 = vmatprep.subr.bf16.mxu0 %v4202
      %4266 = vmatpush1.bf16.xpose.msra.mxu0 %v4201
      %4267 = vmatprep.subr.bf16.mxu0 %v4234
      %4268 = vmatpush1.bf16.xpose.msra.mxu0 %v4233
      %4269 = vmatprep.subr.bf16.mxu0 0
      %4270 = vmatpush1.bf16.xpose.msra.mxu0 0
      %4271 = vmatprep.subr.bf16.mxu0 0
      %4272 = vmatpush1.bf16.xpose.msra.mxu0 0
      %4273 = vmatprep.subr.bf16.mxu0 0
      %4274 = vmatpush1.bf16.xpose.msra.mxu0 0
      %4275 = vmatprep.subr.bf16.mxu0 0
      %4276 = vmatpush1.bf16.xpose.msra.mxu0 0
      %4277 = vmatprep.subr.bf16.mxu0 0
      %4278 = vmatpush1.bf16.xpose.msra.mxu0 0
      %4279 = vmatprep.subr.bf16.mxu0 0
      %4280 = vmatpush1.bf16.xpose.msra.mxu0 0
      %4281 = vmatprep.subr.bf16.mxu0 0
      %4282 = vmatpush1.bf16.xpose.msra.mxu0 0
      %4283 = vmatprep.subr.bf16.mxu0 0
      %4284 = vmatpush1.bf16.xpose.msra.mxu0 0
      %4285 = vmatprep.subr.bf16.mxu0 0
      %4286 = vmatpush1.bf16.xpose.msra.mxu0 0
      %4287 = vmatprep.subr.bf16.mxu0 0
      %4288 = vmatpush1.bf16.xpose.msra.mxu0 0
      %4289 = vmatprep.subr.bf16.mxu0 0
      %4290 = vmatpush1.bf16.xpose.msra.mxu0 0
      %4291 = vmatprep.subr.bf16.mxu0 0
      %4292 = vmatpush1.bf16.xpose.msra.mxu0 0
      %4293 = vmatprep.subr.bf16.mxu0 0
      %4294 = vmatpush1.bf16.xpose.msra.mxu0 0
      %4295 = vmatprep.subr.bf16.mxu0 0
      %4296 = vmatpush1.bf16.xpose.msra.mxu0 0
      %4297 = vmatprep.mubr.bf16.mxu0 %v4010
      %4298 = vmatmul.mubr.bf16.gmra.mrb[0].mxu0 %v4009
      %v4299 = vpop.f32.mrb[0].mxu0
      %v4300 = vadd.f32 0.0, %v4299
      %v4301 = vpop.f32.mrb[0].mxu0
      %v4302 = vpop.f32.mrb[0].mxu0
      %v4303 = vadd.f32 0.0, %v4302
      %v4304 = vpop.f32.mrb[0].mxu0
      %4305 = vmatprep.mubr.bf16.mxu0 %v4042
      %4306 = vmatmul.mubr.bf16.gmra.mrb[0].mxu0 %v4041
      %v4307 = vpop.f32.mrb[0].mxu0
      %v4308 = vadd.f32 0.0, %v4307
      %v4309 = vpop.f32.mrb[0].mxu0
      %v4310 = vpop.f32.mrb[0].mxu0
      %v4311 = vadd.f32 0.0, %v4310
      %v4312 = vpop.f32.mrb[0].mxu0
      %4313 = vdwg.mxu0
      %4314 = vmatprep.subr.bf16.mxu0 %v4204
      %4315 = vmatpush1.bf16.xpose.msra.mxu0 %v4203
      %4316 = vmatprep.subr.bf16.mxu0 %v4236
      %4317 = vmatpush1.bf16.xpose.msra.mxu0 %v4235
      %4318 = vmatprep.subr.bf16.mxu0 0
      %4319 = vmatpush1.bf16.xpose.msra.mxu0 0
      %4320 = vmatprep.subr.bf16.mxu0 0
      %4321 = vmatpush1.bf16.xpose.msra.mxu0 0
      %4322 = vmatprep.subr.bf16.mxu0 0
      %4323 = vmatpush1.bf16.xpose.msra.mxu0 0
      %4324 = vmatprep.subr.bf16.mxu0 0
      %4325 = vmatpush1.bf16.xpose.msra.mxu0 0
      %4326 = vmatprep.subr.bf16.mxu0 0
      %4327 = vmatpush1.bf16.xpose.msra.mxu0 0
      %4328 = vmatprep.subr.bf16.mxu0 0
      %4329 = vmatpush1.bf16.xpose.msra.mxu0 0
      %4330 = vmatprep.subr.bf16.mxu0 0
      %4331 = vmatpush1.bf16.xpose.msra.mxu0 0
      %4332 = vmatprep.subr.bf16.mxu0 0
      %4333 = vmatpush1.bf16.xpose.msra.mxu0 0
      %4334 = vmatprep.subr.bf16.mxu0 0
      %4335 = vmatpush1.bf16.xpose.msra.mxu0 0
      %4336 = vmatprep.subr.bf16.mxu0 0
      %4337 = vmatpush1.bf16.xpose.msra.mxu0 0
      %4338 = vmatprep.subr.bf16.mxu0 0
      %4339 = vmatpush1.bf16.xpose.msra.mxu0 0
      %4340 = vmatprep.subr.bf16.mxu0 0
      %4341 = vmatpush1.bf16.xpose.msra.mxu0 0
      %4342 = vmatprep.subr.bf16.mxu0 0
      %4343 = vmatpush1.bf16.xpose.msra.mxu0 0
      %4344 = vmatprep.subr.bf16.mxu0 0
      %4345 = vmatpush1.bf16.xpose.msra.mxu0 0
      %4346 = vmatprep.mubr.bf16.mxu0 %v4012
      %4347 = vmatmul.mubr.bf16.gmra.mrb[0].mxu0 %v4011
      %v4348 = vpop.f32.mrb[0].mxu0
      %v4349 = vadd.f32 %v4300, %v4348
      %v4350 = vpop.f32.mrb[0].mxu0
      %v4351 = vpop.f32.mrb[0].mxu0
      %v4352 = vadd.f32 %v4303, %v4351
      %v4353 = vpop.f32.mrb[0].mxu0
      %4354 = vmatprep.mubr.bf16.mxu0 %v4044
      %4355 = vmatmul.mubr.bf16.gmra.mrb[0].mxu0 %v4043
      %v4356 = vpop.f32.mrb[0].mxu0
      %v4357 = vadd.f32 %v4308, %v4356
      %v4358 = vpop.f32.mrb[0].mxu0
      %v4359 = vpop.f32.mrb[0].mxu0
      %v4360 = vadd.f32 %v4311, %v4359
      %v4361 = vpop.f32.mrb[0].mxu0
      %4362 = vdwg.mxu0
      %4363 = vmatprep.subr.bf16.mxu0 %v4206
      %4364 = vmatpush1.bf16.xpose.msra.mxu0 %v4205
      %4365 = vmatprep.subr.bf16.mxu0 %v4238
      %4366 = vmatpush1.bf16.xpose.msra.mxu0 %v4237
      %4367 = vmatprep.subr.bf16.mxu0 0
      %4368 = vmatpush1.bf16.xpose.msra.mxu0 0
      %4369 = vmatprep.subr.bf16.mxu0 0
      %4370 = vmatpush1.bf16.xpose.msra.mxu0 0
      %4371 = vmatprep.subr.bf16.mxu0 0
      %4372 = vmatpush1.bf16.xpose.msra.mxu0 0
      %4373 = vmatprep.subr.bf16.mxu0 0
      %4374 = vmatpush1.bf16.xpose.msra.mxu0 0
      %4375 = vmatprep.subr.bf16.mxu0 0
      %4376 = vmatpush1.bf16.xpose.msra.mxu0 0
      %4377 = vmatprep.subr.bf16.mxu0 0
      %4378 = vmatpush1.bf16.xpose.msra.mxu0 0
      %4379 = vmatprep.subr.bf16.mxu0 0
      %4380 = vmatpush1.bf16.xpose.msra.mxu0 0
      %4381 = vmatprep.subr.bf16.mxu0 0
      %4382 = vmatpush1.bf16.xpose.msra.mxu0 0
      %4383 = vmatprep.subr.bf16.mxu0 0
      %4384 = vmatpush1.bf16.xpose.msra.mxu0 0
      %4385 = vmatprep.subr.bf16.mxu0 0
      %4386 = vmatpush1.bf16.xpose.msra.mxu0 0
      %4387 = vmatprep.subr.bf16.mxu0 0
      %4388 = vmatpush1.bf16.xpose.msra.mxu0 0
      %4389 = vmatprep.subr.bf16.mxu0 0
      %4390 = vmatpush1.bf16.xpose.msra.mxu0 0
      %4391 = vmatprep.subr.bf16.mxu0 0
      %4392 = vmatpush1.bf16.xpose.msra.mxu0 0
      %4393 = vmatprep.subr.bf16.mxu0 0
      %4394 = vmatpush1.bf16.xpose.msra.mxu0 0
      %4395 = vmatprep.mubr.bf16.mxu0 %v4014
      %4396 = vmatmul.mubr.bf16.gmra.mrb[0].mxu0 %v4013
      %v4397 = vpop.f32.mrb[0].mxu0
      %v4398 = vadd.f32 %v4349, %v4397
      %v4399 = vpop.f32.mrb[0].mxu0
      %v4400 = vpop.f32.mrb[0].mxu0
      %v4401 = vadd.f32 %v4352, %v4400
      %v4402 = vpop.f32.mrb[0].mxu0
      %4403 = vmatprep.mubr.bf16.mxu0 %v4046
      %4404 = vmatmul.mubr.bf16.gmra.mrb[0].mxu0 %v4045
      %v4405 = vpop.f32.mrb[0].mxu0
      %v4406 = vadd.f32 %v4357, %v4405
      %v4407 = vpop.f32.mrb[0].mxu0
      %v4408 = vpop.f32.mrb[0].mxu0
      %v4409 = vadd.f32 %v4360, %v4408
      %v4410 = vpop.f32.mrb[0].mxu0
      %4411 = vdwg.mxu0
      %4412 = vmatprep.subr.bf16.mxu0 %v4208
      %4413 = vmatpush1.bf16.xpose.msra.mxu0 %v4207
      %4414 = vmatprep.subr.bf16.mxu0 %v4240
      %4415 = vmatpush1.bf16.xpose.msra.mxu0 %v4239
      %4416 = vmatprep.subr.bf16.mxu0 0
      %4417 = vmatpush1.bf16.xpose.msra.mxu0 0
      %4418 = vmatprep.subr.bf16.mxu0 0
      %4419 = vmatpush1.bf16.xpose.msra.mxu0 0
      %4420 = vmatprep.subr.bf16.mxu0 0
      %4421 = vmatpush1.bf16.xpose.msra.mxu0 0
      %4422 = vmatprep.subr.bf16.mxu0 0
      %4423 = vmatpush1.bf16.xpose.msra.mxu0 0
      %4424 = vmatprep.subr.bf16.mxu0 0
      %4425 = vmatpush1.bf16.xpose.msra.mxu0 0
      %4426 = vmatprep.subr.bf16.mxu0 0
      %4427 = vmatpush1.bf16.xpose.msra.mxu0 0
      %4428 = vmatprep.subr.bf16.mxu0 0
      %4429 = vmatpush1.bf16.xpose.msra.mxu0 0
      %4430 = vmatprep.subr.bf16.mxu0 0
      %4431 = vmatpush1.bf16.xpose.msra.mxu0 0
      %4432 = vmatprep.subr.bf16.mxu0 0
      %4433 = vmatpush1.bf16.xpose.msra.mxu0 0
      %4434 = vmatprep.subr.bf16.mxu0 0
      %4435 = vmatpush1.bf16.xpose.msra.mxu0 0
      %4436 = vmatprep.subr.bf16.mxu0 0
      %4437 = vmatpush1.bf16.xpose.msra.mxu0 0
      %4438 = vmatprep.subr.bf16.mxu0 0
      %4439 = vmatpush1.bf16.xpose.msra.mxu0 0
      %4440 = vmatprep.subr.bf16.mxu0 0
      %4441 = vmatpush1.bf16.xpose.msra.mxu0 0
      %4442 = vmatprep.subr.bf16.mxu0 0
      %4443 = vmatpush1.bf16.xpose.msra.mxu0 0
      %4444 = vmatprep.mubr.bf16.mxu0 %v4016
      %4445 = vmatmul.mubr.bf16.gmra.mrb[0].mxu0 %v4015
      %v4446 = vpop.f32.mrb[0].mxu0
      %v4447 = vadd.f32 %v4398, %v4446
      %v4448 = vpop.f32.mrb[0].mxu0
      %v4449 = vpop.f32.mrb[0].mxu0
      %v4450 = vadd.f32 %v4401, %v4449
      %v4451 = vpop.f32.mrb[0].mxu0
      %4452 = vmatprep.mubr.bf16.mxu0 %v4048
      %4453 = vmatmul.mubr.bf16.gmra.mrb[0].mxu0 %v4047
      %v4454 = vpop.f32.mrb[0].mxu0
      %v4455 = vadd.f32 %v4406, %v4454
      %v4456 = vpop.f32.mrb[0].mxu0
      %v4457 = vpop.f32.mrb[0].mxu0
      %v4458 = vadd.f32 %v4409, %v4457
      %v4459 = vpop.f32.mrb[0].mxu0
      %4460 = vdwg.mxu0
      %4461 = vmatprep.subr.bf16.mxu0 %v4210
      %4462 = vmatpush1.bf16.xpose.msra.mxu0 %v4209
      %4463 = vmatprep.subr.bf16.mxu0 %v4242
      %4464 = vmatpush1.bf16.xpose.msra.mxu0 %v4241
      %4465 = vmatprep.subr.bf16.mxu0 0
      %4466 = vmatpush1.bf16.xpose.msra.mxu0 0
      %4467 = vmatprep.subr.bf16.mxu0 0
      %4468 = vmatpush1.bf16.xpose.msra.mxu0 0
      %4469 = vmatprep.subr.bf16.mxu0 0
      %4470 = vmatpush1.bf16.xpose.msra.mxu0 0
      %4471 = vmatprep.subr.bf16.mxu0 0
      %4472 = vmatpush1.bf16.xpose.msra.mxu0 0
      %4473 = vmatprep.subr.bf16.mxu0 0
      %4474 = vmatpush1.bf16.xpose.msra.mxu0 0
      %4475 = vmatprep.subr.bf16.mxu0 0
      %4476 = vmatpush1.bf16.xpose.msra.mxu0 0
      %4477 = vmatprep.subr.bf16.mxu0 0
      %4478 = vmatpush1.bf16.xpose.msra.mxu0 0
      %4479 = vmatprep.subr.bf16.mxu0 0
      %4480 = vmatpush1.bf16.xpose.msra.mxu0 0
      %4481 = vmatprep.subr.bf16.mxu0 0
      %4482 = vmatpush1.bf16.xpose.msra.mxu0 0
      %4483 = vmatprep.subr.bf16.mxu0 0
      %4484 = vmatpush1.bf16.xpose.msra.mxu0 0
      %4485 = vmatprep.subr.bf16.mxu0 0
      %4486 = vmatpush1.bf16.xpose.msra.mxu0 0
      %4487 = vmatprep.subr.bf16.mxu0 0
      %4488 = vmatpush1.bf16.xpose.msra.mxu0 0
      %4489 = vmatprep.subr.bf16.mxu0 0
      %4490 = vmatpush1.bf16.xpose.msra.mxu0 0
      %4491 = vmatprep.subr.bf16.mxu0 0
      %4492 = vmatpush1.bf16.xpose.msra.mxu0 0
      %4493 = vmatprep.mubr.bf16.mxu0 %v4018
      %4494 = vmatmul.mubr.bf16.gmra.mrb[0].mxu0 %v4017
      %v4495 = vpop.f32.mrb[0].mxu0
      %v4496 = vadd.f32 %v4447, %v4495
      %v4497 = vpop.f32.mrb[0].mxu0
      %v4498 = vpop.f32.mrb[0].mxu0
      %v4499 = vadd.f32 %v4450, %v4498
      %v4500 = vpop.f32.mrb[0].mxu0
      %4501 = vmatprep.mubr.bf16.mxu0 %v4050
      %4502 = vmatmul.mubr.bf16.gmra.mrb[0].mxu0 %v4049
      %v4503 = vpop.f32.mrb[0].mxu0
      %v4504 = vadd.f32 %v4455, %v4503
      %v4505 = vpop.f32.mrb[0].mxu0
      %v4506 = vpop.f32.mrb[0].mxu0
      %v4507 = vadd.f32 %v4458, %v4506
      %v4508 = vpop.f32.mrb[0].mxu0
      %4509 = vdwg.mxu0
      %4510 = vmatprep.subr.bf16.mxu0 %v4212
      %4511 = vmatpush1.bf16.xpose.msra.mxu0 %v4211
      %4512 = vmatprep.subr.bf16.mxu0 %v4244
      %4513 = vmatpush1.bf16.xpose.msra.mxu0 %v4243
      %4514 = vmatprep.subr.bf16.mxu0 0
      %4515 = vmatpush1.bf16.xpose.msra.mxu0 0
      %4516 = vmatprep.subr.bf16.mxu0 0
      %4517 = vmatpush1.bf16.xpose.msra.mxu0 0
      %4518 = vmatprep.subr.bf16.mxu0 0
      %4519 = vmatpush1.bf16.xpose.msra.mxu0 0
      %4520 = vmatprep.subr.bf16.mxu0 0
      %4521 = vmatpush1.bf16.xpose.msra.mxu0 0
      %4522 = vmatprep.subr.bf16.mxu0 0
      %4523 = vmatpush1.bf16.xpose.msra.mxu0 0
      %4524 = vmatprep.subr.bf16.mxu0 0
      %4525 = vmatpush1.bf16.xpose.msra.mxu0 0
      %4526 = vmatprep.subr.bf16.mxu0 0
      %4527 = vmatpush1.bf16.xpose.msra.mxu0 0
      %4528 = vmatprep.subr.bf16.mxu0 0
      %4529 = vmatpush1.bf16.xpose.msra.mxu0 0
      %4530 = vmatprep.subr.bf16.mxu0 0
      %4531 = vmatpush1.bf16.xpose.msra.mxu0 0
      %4532 = vmatprep.subr.bf16.mxu0 0
      %4533 = vmatpush1.bf16.xpose.msra.mxu0 0
      %4534 = vmatprep.subr.bf16.mxu0 0
      %4535 = vmatpush1.bf16.xpose.msra.mxu0 0
      %4536 = vmatprep.subr.bf16.mxu0 0
      %4537 = vmatpush1.bf16.xpose.msra.mxu0 0
      %4538 = vmatprep.subr.bf16.mxu0 0
      %4539 = vmatpush1.bf16.xpose.msra.mxu0 0
      %4540 = vmatprep.subr.bf16.mxu0 0
      %4541 = vmatpush1.bf16.xpose.msra.mxu0 0
      %4542 = vmatprep.mubr.bf16.mxu0 %v4020
      %4543 = vmatmul.mubr.bf16.gmra.mrb[0].mxu0 %v4019
      %v4544 = vpop.f32.mrb[0].mxu0
      %v4545 = vadd.f32 %v4496, %v4544
      %v4546 = vpop.f32.mrb[0].mxu0
      %v4547 = vpop.f32.mrb[0].mxu0
      %v4548 = vadd.f32 %v4499, %v4547
      %v4549 = vpop.f32.mrb[0].mxu0
      %4550 = vmatprep.mubr.bf16.mxu0 %v4052
      %4551 = vmatmul.mubr.bf16.gmra.mrb[0].mxu0 %v4051
      %v4552 = vpop.f32.mrb[0].mxu0
      %v4553 = vadd.f32 %v4504, %v4552
      %v4554 = vpop.f32.mrb[0].mxu0
      %v4555 = vpop.f32.mrb[0].mxu0
      %v4556 = vadd.f32 %v4507, %v4555
      %v4557 = vpop.f32.mrb[0].mxu0
      %4558 = vdwg.mxu0
      %4559 = vmatprep.subr.bf16.mxu0 %v4214
      %4560 = vmatpush1.bf16.xpose.msra.mxu0 %v4213
      %4561 = vmatprep.subr.bf16.mxu0 %v4246
      %4562 = vmatpush1.bf16.xpose.msra.mxu0 %v4245
      %4563 = vmatprep.subr.bf16.mxu0 0
      %4564 = vmatpush1.bf16.xpose.msra.mxu0 0
      %4565 = vmatprep.subr.bf16.mxu0 0
      %4566 = vmatpush1.bf16.xpose.msra.mxu0 0
      %4567 = vmatprep.subr.bf16.mxu0 0
      %4568 = vmatpush1.bf16.xpose.msra.mxu0 0
      %4569 = vmatprep.subr.bf16.mxu0 0
      %4570 = vmatpush1.bf16.xpose.msra.mxu0 0
      %4571 = vmatprep.subr.bf16.mxu0 0
      %4572 = vmatpush1.bf16.xpose.msra.mxu0 0
      %4573 = vmatprep.subr.bf16.mxu0 0
      %4574 = vmatpush1.bf16.xpose.msra.mxu0 0
      %4575 = vmatprep.subr.bf16.mxu0 0
      %4576 = vmatpush1.bf16.xpose.msra.mxu0 0
      %4577 = vmatprep.subr.bf16.mxu0 0
      %4578 = vmatpush1.bf16.xpose.msra.mxu0 0
      %4579 = vmatprep.subr.bf16.mxu0 0
      %4580 = vmatpush1.bf16.xpose.msra.mxu0 0
      %4581 = vmatprep.subr.bf16.mxu0 0
      %4582 = vmatpush1.bf16.xpose.msra.mxu0 0
      %4583 = vmatprep.subr.bf16.mxu0 0
      %4584 = vmatpush1.bf16.xpose.msra.mxu0 0
      %4585 = vmatprep.subr.bf16.mxu0 0
      %4586 = vmatpush1.bf16.xpose.msra.mxu0 0
      %4587 = vmatprep.subr.bf16.mxu0 0
      %4588 = vmatpush1.bf16.xpose.msra.mxu0 0
      %4589 = vmatprep.subr.bf16.mxu0 0
      %4590 = vmatpush1.bf16.xpose.msra.mxu0 0
      %4591 = vmatprep.mubr.bf16.mxu0 %v4022
      %4592 = vmatmul.mubr.bf16.gmra.mrb[0].mxu0 %v4021
      %v4593 = vpop.f32.mrb[0].mxu0
      %v4594 = vadd.f32 %v4545, %v4593
      %v4595 = vpop.f32.mrb[0].mxu0
      %v4596 = vpop.f32.mrb[0].mxu0
      %v4597 = vadd.f32 %v4548, %v4596
      %v4598 = vpop.f32.mrb[0].mxu0
      %4599 = vmatprep.mubr.bf16.mxu0 %v4054
      %4600 = vmatmul.mubr.bf16.gmra.mrb[0].mxu0 %v4053
      %v4601 = vpop.f32.mrb[0].mxu0
      %v4602 = vadd.f32 %v4553, %v4601
      %v4603 = vpop.f32.mrb[0].mxu0
      %v4604 = vpop.f32.mrb[0].mxu0
      %v4605 = vadd.f32 %v4556, %v4604
      %v4606 = vpop.f32.mrb[0].mxu0
      %4607 = vdwg.mxu0
      %4608 = vmatprep.subr.bf16.mxu0 %v4216
      %4609 = vmatpush1.bf16.xpose.msra.mxu0 %v4215
      %4610 = vmatprep.subr.bf16.mxu0 %v4248
      %4611 = vmatpush1.bf16.xpose.msra.mxu0 %v4247
      %4612 = vmatprep.subr.bf16.mxu0 0
      %4613 = vmatpush1.bf16.xpose.msra.mxu0 0
      %4614 = vmatprep.subr.bf16.mxu0 0
      %4615 = vmatpush1.bf16.xpose.msra.mxu0 0
      %4616 = vmatprep.subr.bf16.mxu0 0
      %4617 = vmatpush1.bf16.xpose.msra.mxu0 0
      %4618 = vmatprep.subr.bf16.mxu0 0
      %4619 = vmatpush1.bf16.xpose.msra.mxu0 0
      %4620 = vmatprep.subr.bf16.mxu0 0
      %4621 = vmatpush1.bf16.xpose.msra.mxu0 0
      %4622 = vmatprep.subr.bf16.mxu0 0
      %4623 = vmatpush1.bf16.xpose.msra.mxu0 0
      %4624 = vmatprep.subr.bf16.mxu0 0
      %4625 = vmatpush1.bf16.xpose.msra.mxu0 0
      %4626 = vmatprep.subr.bf16.mxu0 0
      %4627 = vmatpush1.bf16.xpose.msra.mxu0 0
      %4628 = vmatprep.subr.bf16.mxu0 0
      %4629 = vmatpush1.bf16.xpose.msra.mxu0 0
      %4630 = vmatprep.subr.bf16.mxu0 0
      %4631 = vmatpush1.bf16.xpose.msra.mxu0 0
      %4632 = vmatprep.subr.bf16.mxu0 0
      %4633 = vmatpush1.bf16.xpose.msra.mxu0 0
      %4634 = vmatprep.subr.bf16.mxu0 0
      %4635 = vmatpush1.bf16.xpose.msra.mxu0 0
      %4636 = vmatprep.subr.bf16.mxu0 0
      %4637 = vmatpush1.bf16.xpose.msra.mxu0 0
      %4638 = vmatprep.subr.bf16.mxu0 0
      %4639 = vmatpush1.bf16.xpose.msra.mxu0 0
      %4640 = vmatprep.mubr.bf16.mxu0 %v4024
      %4641 = vmatmul.mubr.bf16.gmra.mrb[0].mxu0 %v4023
      %v4642 = vpop.f32.mrb[0].mxu0
      %v4643 = vadd.f32 %v4594, %v4642
      %v4644 = vpop.f32.mrb[0].mxu0
      %v4645 = vpop.f32.mrb[0].mxu0
      %v4646 = vadd.f32 %v4597, %v4645
      %v4647 = vpop.f32.mrb[0].mxu0
      %4648 = vmatprep.mubr.bf16.mxu0 %v4056
      %4649 = vmatmul.mubr.bf16.gmra.mrb[0].mxu0 %v4055
      %v4650 = vpop.f32.mrb[0].mxu0
      %v4651 = vadd.f32 %v4602, %v4650
      %v4652 = vpop.f32.mrb[0].mxu0
      %v4653 = vpop.f32.mrb[0].mxu0
      %v4654 = vadd.f32 %v4605, %v4653
      %v4655 = vpop.f32.mrb[0].mxu0
      %4656 = vdwg.mxu0
      %4657 = vmatprep.subr.bf16.mxu0 %v4218
      %4658 = vmatpush1.bf16.xpose.msra.mxu0 %v4217
      %4659 = vmatprep.subr.bf16.mxu0 %v4250
      %4660 = vmatpush1.bf16.xpose.msra.mxu0 %v4249
      %4661 = vmatprep.subr.bf16.mxu0 0
      %4662 = vmatpush1.bf16.xpose.msra.mxu0 0
      %4663 = vmatprep.subr.bf16.mxu0 0
      %4664 = vmatpush1.bf16.xpose.msra.mxu0 0
      %4665 = vmatprep.subr.bf16.mxu0 0
      %4666 = vmatpush1.bf16.xpose.msra.mxu0 0
      %4667 = vmatprep.subr.bf16.mxu0 0
      %4668 = vmatpush1.bf16.xpose.msra.mxu0 0
      %4669 = vmatprep.subr.bf16.mxu0 0
      %4670 = vmatpush1.bf16.xpose.msra.mxu0 0
      %4671 = vmatprep.subr.bf16.mxu0 0
      %4672 = vmatpush1.bf16.xpose.msra.mxu0 0
      %4673 = vmatprep.subr.bf16.mxu0 0
      %4674 = vmatpush1.bf16.xpose.msra.mxu0 0
      %4675 = vmatprep.subr.bf16.mxu0 0
      %4676 = vmatpush1.bf16.xpose.msra.mxu0 0
      %4677 = vmatprep.subr.bf16.mxu0 0
      %4678 = vmatpush1.bf16.xpose.msra.mxu0 0
      %4679 = vmatprep.subr.bf16.mxu0 0
      %4680 = vmatpush1.bf16.xpose.msra.mxu0 0
      %4681 = vmatprep.subr.bf16.mxu0 0
      %4682 = vmatpush1.bf16.xpose.msra.mxu0 0
      %4683 = vmatprep.subr.bf16.mxu0 0
      %4684 = vmatpush1.bf16.xpose.msra.mxu0 0
      %4685 = vmatprep.subr.bf16.mxu0 0
      %4686 = vmatpush1.bf16.xpose.msra.mxu0 0
      %4687 = vmatprep.subr.bf16.mxu0 0
      %4688 = vmatpush1.bf16.xpose.msra.mxu0 0
      %4689 = vmatprep.mubr.bf16.mxu0 %v4026
      %4690 = vmatmul.mubr.bf16.gmra.mrb[0].mxu0 %v4025
      %v4691 = vpop.f32.mrb[0].mxu0
      %v4692 = vadd.f32 %v4643, %v4691
      %v4693 = vpop.f32.mrb[0].mxu0
      %v4694 = vpop.f32.mrb[0].mxu0
      %v4695 = vadd.f32 %v4646, %v4694
      %v4696 = vpop.f32.mrb[0].mxu0
      %4697 = vmatprep.mubr.bf16.mxu0 %v4058
      %4698 = vmatmul.mubr.bf16.gmra.mrb[0].mxu0 %v4057
      %v4699 = vpop.f32.mrb[0].mxu0
      %v4700 = vadd.f32 %v4651, %v4699
      %v4701 = vpop.f32.mrb[0].mxu0
      %v4702 = vpop.f32.mrb[0].mxu0
      %v4703 = vadd.f32 %v4654, %v4702
      %v4704 = vpop.f32.mrb[0].mxu0
      %4705 = vdwg.mxu0
      %4706 = vmatprep.subr.bf16.mxu0 %v4220
      %4707 = vmatpush1.bf16.xpose.msra.mxu0 %v4219
      %4708 = vmatprep.subr.bf16.mxu0 %v4252
      %4709 = vmatpush1.bf16.xpose.msra.mxu0 %v4251
      %4710 = vmatprep.subr.bf16.mxu0 0
      %4711 = vmatpush1.bf16.xpose.msra.mxu0 0
      %4712 = vmatprep.subr.bf16.mxu0 0
      %4713 = vmatpush1.bf16.xpose.msra.mxu0 0
      %4714 = vmatprep.subr.bf16.mxu0 0
      %4715 = vmatpush1.bf16.xpose.msra.mxu0 0
      %4716 = vmatprep.subr.bf16.mxu0 0
      %4717 = vmatpush1.bf16.xpose.msra.mxu0 0
      %4718 = vmatprep.subr.bf16.mxu0 0
      %4719 = vmatpush1.bf16.xpose.msra.mxu0 0
      %4720 = vmatprep.subr.bf16.mxu0 0
      %4721 = vmatpush1.bf16.xpose.msra.mxu0 0
      %4722 = vmatprep.subr.bf16.mxu0 0
      %4723 = vmatpush1.bf16.xpose.msra.mxu0 0
      %4724 = vmatprep.subr.bf16.mxu0 0
      %4725 = vmatpush1.bf16.xpose.msra.mxu0 0
      %4726 = vmatprep.subr.bf16.mxu0 0
      %4727 = vmatpush1.bf16.xpose.msra.mxu0 0
      %4728 = vmatprep.subr.bf16.mxu0 0
      %4729 = vmatpush1.bf16.xpose.msra.mxu0 0
      %4730 = vmatprep.subr.bf16.mxu0 0
      %4731 = vmatpush1.bf16.xpose.msra.mxu0 0
      %4732 = vmatprep.subr.bf16.mxu0 0
      %4733 = vmatpush1.bf16.xpose.msra.mxu0 0
      %4734 = vmatprep.subr.bf16.mxu0 0
      %4735 = vmatpush1.bf16.xpose.msra.mxu0 0
      %4736 = vmatprep.subr.bf16.mxu0 0
      %4737 = vmatpush1.bf16.xpose.msra.mxu0 0
      %4738 = vmatprep.mubr.bf16.mxu0 %v4028
      %4739 = vmatmul.mubr.bf16.gmra.mrb[0].mxu0 %v4027
      %v4740 = vpop.f32.mrb[0].mxu0
      %v4741 = vadd.f32 %v4692, %v4740
      %v4742 = vpop.f32.mrb[0].mxu0
      %v4743 = vpop.f32.mrb[0].mxu0
      %v4744 = vadd.f32 %v4695, %v4743
      %v4745 = vpop.f32.mrb[0].mxu0
      %4746 = vmatprep.mubr.bf16.mxu0 %v4060
      %4747 = vmatmul.mubr.bf16.gmra.mrb[0].mxu0 %v4059
      %v4748 = vpop.f32.mrb[0].mxu0
      %v4749 = vadd.f32 %v4700, %v4748
      %v4750 = vpop.f32.mrb[0].mxu0
      %v4751 = vpop.f32.mrb[0].mxu0
      %v4752 = vadd.f32 %v4703, %v4751
      %v4753 = vpop.f32.mrb[0].mxu0
      %4754 = vdwg.mxu0
      %4755 = vmatprep.subr.bf16.mxu0 %v4222
      %4756 = vmatpush1.bf16.xpose.msra.mxu0 %v4221
      %4757 = vmatprep.subr.bf16.mxu0 %v4254
      %4758 = vmatpush1.bf16.xpose.msra.mxu0 %v4253
      %4759 = vmatprep.subr.bf16.mxu0 0
      %4760 = vmatpush1.bf16.xpose.msra.mxu0 0
      %4761 = vmatprep.subr.bf16.mxu0 0
      %4762 = vmatpush1.bf16.xpose.msra.mxu0 0
      %4763 = vmatprep.subr.bf16.mxu0 0
      %4764 = vmatpush1.bf16.xpose.msra.mxu0 0
      %4765 = vmatprep.subr.bf16.mxu0 0
      %4766 = vmatpush1.bf16.xpose.msra.mxu0 0
      %4767 = vmatprep.subr.bf16.mxu0 0
      %4768 = vmatpush1.bf16.xpose.msra.mxu0 0
      %4769 = vmatprep.subr.bf16.mxu0 0
      %4770 = vmatpush1.bf16.xpose.msra.mxu0 0
      %4771 = vmatprep.subr.bf16.mxu0 0
      %4772 = vmatpush1.bf16.xpose.msra.mxu0 0
      %4773 = vmatprep.subr.bf16.mxu0 0
      %4774 = vmatpush1.bf16.xpose.msra.mxu0 0
      %4775 = vmatprep.subr.bf16.mxu0 0
      %4776 = vmatpush1.bf16.xpose.msra.mxu0 0
      %4777 = vmatprep.subr.bf16.mxu0 0
      %4778 = vmatpush1.bf16.xpose.msra.mxu0 0
      %4779 = vmatprep.subr.bf16.mxu0 0
      %4780 = vmatpush1.bf16.xpose.msra.mxu0 0
      %4781 = vmatprep.subr.bf16.mxu0 0
      %4782 = vmatpush1.bf16.xpose.msra.mxu0 0
      %4783 = vmatprep.subr.bf16.mxu0 0
      %4784 = vmatpush1.bf16.xpose.msra.mxu0 0
      %4785 = vmatprep.subr.bf16.mxu0 0
      %4786 = vmatpush1.bf16.xpose.msra.mxu0 0
      %4787 = vmatprep.mubr.bf16.mxu0 %v4030
      %4788 = vmatmul.mubr.bf16.gmra.mrb[0].mxu0 %v4029
      %v4789 = vpop.f32.mrb[0].mxu0
      %v4790 = vadd.f32 %v4741, %v4789
      %v4791 = vpop.f32.mrb[0].mxu0
      %v4792 = vpop.f32.mrb[0].mxu0
      %v4793 = vadd.f32 %v4744, %v4792
      %v4794 = vpop.f32.mrb[0].mxu0
      %4795 = vmatprep.mubr.bf16.mxu0 %v4062
      %4796 = vmatmul.mubr.bf16.gmra.mrb[0].mxu0 %v4061
      %v4797 = vpop.f32.mrb[0].mxu0
      %v4798 = vadd.f32 %v4749, %v4797
      %v4799 = vpop.f32.mrb[0].mxu0
      %v4800 = vpop.f32.mrb[0].mxu0
      %v4801 = vadd.f32 %v4752, %v4800
      %v4802 = vpop.f32.mrb[0].mxu0
      %4803 = vdwg.mxu0
      %4804 = vmatprep.subr.bf16.mxu0 %v4224
      %4805 = vmatpush1.bf16.xpose.msra.mxu0 %v4223
      %4806 = vmatprep.subr.bf16.mxu0 %v4256
      %4807 = vmatpush1.bf16.xpose.msra.mxu0 %v4255
      %4808 = vmatprep.subr.bf16.mxu0 0
      %4809 = vmatpush1.bf16.xpose.msra.mxu0 0
      %4810 = vmatprep.subr.bf16.mxu0 0
      %4811 = vmatpush1.bf16.xpose.msra.mxu0 0
      %4812 = vmatprep.subr.bf16.mxu0 0
      %4813 = vmatpush1.bf16.xpose.msra.mxu0 0
      %4814 = vmatprep.subr.bf16.mxu0 0
      %4815 = vmatpush1.bf16.xpose.msra.mxu0 0
      %4816 = vmatprep.subr.bf16.mxu0 0
      %4817 = vmatpush1.bf16.xpose.msra.mxu0 0
      %4818 = vmatprep.subr.bf16.mxu0 0
      %4819 = vmatpush1.bf16.xpose.msra.mxu0 0
      %4820 = vmatprep.subr.bf16.mxu0 0
      %4821 = vmatpush1.bf16.xpose.msra.mxu0 0
      %4822 = vmatprep.subr.bf16.mxu0 0
      %4823 = vmatpush1.bf16.xpose.msra.mxu0 0
      %4824 = vmatprep.subr.bf16.mxu0 0
      %4825 = vmatpush1.bf16.xpose.msra.mxu0 0
      %4826 = vmatprep.subr.bf16.mxu0 0
      %4827 = vmatpush1.bf16.xpose.msra.mxu0 0
      %4828 = vmatprep.subr.bf16.mxu0 0
      %4829 = vmatpush1.bf16.xpose.msra.mxu0 0
      %4830 = vmatprep.subr.bf16.mxu0 0
      %4831 = vmatpush1.bf16.xpose.msra.mxu0 0
      %4832 = vmatprep.subr.bf16.mxu0 0
      %4833 = vmatpush1.bf16.xpose.msra.mxu0 0
      %4834 = vmatprep.subr.bf16.mxu0 0
      %4835 = vmatpush1.bf16.xpose.msra.mxu0 0
      %4836 = vmatprep.mubr.bf16.mxu0 %v4032
      %4837 = vmatmul.mubr.bf16.gmra.mrb[0].mxu0 %v4031
      %v4838 = vpop.f32.mrb[0].mxu0
      %v4839 = vadd.f32 %v4790, %v4838
      %v4840 = vpop.f32.mrb[0].mxu0
      %v4841 = vpop.f32.mrb[0].mxu0
      %v4842 = vadd.f32 %v4793, %v4841
      %v4843 = vpop.f32.mrb[0].mxu0
      %4844 = vmatprep.mubr.bf16.mxu0 %v4064
      %4845 = vmatmul.mubr.bf16.gmra.mrb[0].mxu0 %v4063
      %v4846 = vpop.f32.mrb[0].mxu0
      %v4847 = vadd.f32 %v4798, %v4846
      %v4848 = vpop.f32.mrb[0].mxu0
      %v4849 = vpop.f32.mrb[0].mxu0
      %v4850 = vadd.f32 %v4801, %v4849
      %v4851 = vpop.f32.mrb[0].mxu0
      %4852 = vdwg.mxu0
      %4853 = vmatprep.subr.bf16.mxu0 %v4226
      %4854 = vmatpush1.bf16.xpose.msra.mxu0 %v4225
      %4855 = vmatprep.subr.bf16.mxu0 %v4258
      %4856 = vmatpush1.bf16.xpose.msra.mxu0 %v4257
      %4857 = vmatprep.subr.bf16.mxu0 0
      %4858 = vmatpush1.bf16.xpose.msra.mxu0 0
      %4859 = vmatprep.subr.bf16.mxu0 0
      %4860 = vmatpush1.bf16.xpose.msra.mxu0 0
      %4861 = vmatprep.subr.bf16.mxu0 0
      %4862 = vmatpush1.bf16.xpose.msra.mxu0 0
      %4863 = vmatprep.subr.bf16.mxu0 0
      %4864 = vmatpush1.bf16.xpose.msra.mxu0 0
      %4865 = vmatprep.subr.bf16.mxu0 0
      %4866 = vmatpush1.bf16.xpose.msra.mxu0 0
      %4867 = vmatprep.subr.bf16.mxu0 0
      %4868 = vmatpush1.bf16.xpose.msra.mxu0 0
      %4869 = vmatprep.subr.bf16.mxu0 0
      %4870 = vmatpush1.bf16.xpose.msra.mxu0 0
      %4871 = vmatprep.subr.bf16.mxu0 0
      %4872 = vmatpush1.bf16.xpose.msra.mxu0 0
      %4873 = vmatprep.subr.bf16.mxu0 0
      %4874 = vmatpush1.bf16.xpose.msra.mxu0 0
      %4875 = vmatprep.subr.bf16.mxu0 0
      %4876 = vmatpush1.bf16.xpose.msra.mxu0 0
      %4877 = vmatprep.subr.bf16.mxu0 0
      %4878 = vmatpush1.bf16.xpose.msra.mxu0 0
      %4879 = vmatprep.subr.bf16.mxu0 0
      %4880 = vmatpush1.bf16.xpose.msra.mxu0 0
      %4881 = vmatprep.subr.bf16.mxu0 0
      %4882 = vmatpush1.bf16.xpose.msra.mxu0 0
      %4883 = vmatprep.subr.bf16.mxu0 0
      %4884 = vmatpush1.bf16.xpose.msra.mxu0 0
      %4885 = vmatprep.mubr.bf16.mxu0 %v4034
      %4886 = vmatmul.mubr.bf16.gmra.mrb[0].mxu0 %v4033
      %v4887 = vpop.f32.mrb[0].mxu0
      %v4888 = vadd.f32 %v4839, %v4887
      %v4889 = vpop.f32.mrb[0].mxu0
      %v4890 = vpop.f32.mrb[0].mxu0
      %v4891 = vadd.f32 %v4842, %v4890
      %v4892 = vpop.f32.mrb[0].mxu0
      %4893 = vmatprep.mubr.bf16.mxu0 %v4066
      %4894 = vmatmul.mubr.bf16.gmra.mrb[0].mxu0 %v4065
      %v4895 = vpop.f32.mrb[0].mxu0
      %v4896 = vadd.f32 %v4847, %v4895
      %v4897 = vpop.f32.mrb[0].mxu0
      %v4898 = vpop.f32.mrb[0].mxu0
      %v4899 = vadd.f32 %v4850, %v4898
      %v4900 = vpop.f32.mrb[0].mxu0
      %4901 = vdwg.mxu0
      %4902 = vmatprep.subr.bf16.mxu0 %v4228
      %4903 = vmatpush1.bf16.xpose.msra.mxu0 %v4227
      %4904 = vmatprep.subr.bf16.mxu0 %v4260
      %4905 = vmatpush1.bf16.xpose.msra.mxu0 %v4259
      %4906 = vmatprep.subr.bf16.mxu0 0
      %4907 = vmatpush1.bf16.xpose.msra.mxu0 0
      %4908 = vmatprep.subr.bf16.mxu0 0
      %4909 = vmatpush1.bf16.xpose.msra.mxu0 0
      %4910 = vmatprep.subr.bf16.mxu0 0
      %4911 = vmatpush1.bf16.xpose.msra.mxu0 0
      %4912 = vmatprep.subr.bf16.mxu0 0
      %4913 = vmatpush1.bf16.xpose.msra.mxu0 0
      %4914 = vmatprep.subr.bf16.mxu0 0
      %4915 = vmatpush1.bf16.xpose.msra.mxu0 0
      %4916 = vmatprep.subr.bf16.mxu0 0
      %4917 = vmatpush1.bf16.xpose.msra.mxu0 0
      %4918 = vmatprep.subr.bf16.mxu0 0
      %4919 = vmatpush1.bf16.xpose.msra.mxu0 0
      %4920 = vmatprep.subr.bf16.mxu0 0
      %4921 = vmatpush1.bf16.xpose.msra.mxu0 0
      %4922 = vmatprep.subr.bf16.mxu0 0
      %4923 = vmatpush1.bf16.xpose.msra.mxu0 0
      %4924 = vmatprep.subr.bf16.mxu0 0
      %4925 = vmatpush1.bf16.xpose.msra.mxu0 0
      %4926 = vmatprep.subr.bf16.mxu0 0
      %4927 = vmatpush1.bf16.xpose.msra.mxu0 0
      %4928 = vmatprep.subr.bf16.mxu0 0
      %4929 = vmatpush1.bf16.xpose.msra.mxu0 0
      %4930 = vmatprep.subr.bf16.mxu0 0
      %4931 = vmatpush1.bf16.xpose.msra.mxu0 0
      %4932 = vmatprep.subr.bf16.mxu0 0
      %4933 = vmatpush1.bf16.xpose.msra.mxu0 0
      %4934 = vmatprep.mubr.bf16.mxu0 %v4036
      %4935 = vmatmul.mubr.bf16.gmra.mrb[0].mxu0 %v4035
      %v4936 = vpop.f32.mrb[0].mxu0
      %v4937 = vadd.f32 %v4888, %v4936
      %v4938 = vpop.f32.mrb[0].mxu0
      %v4939 = vpop.f32.mrb[0].mxu0
      %v4940 = vadd.f32 %v4891, %v4939
      %v4941 = vpop.f32.mrb[0].mxu0
      %4942 = vmatprep.mubr.bf16.mxu0 %v4068
      %4943 = vmatmul.mubr.bf16.gmra.mrb[0].mxu0 %v4067
      %v4944 = vpop.f32.mrb[0].mxu0
      %v4945 = vadd.f32 %v4896, %v4944
      %v4946 = vpop.f32.mrb[0].mxu0
      %v4947 = vpop.f32.mrb[0].mxu0
      %v4948 = vadd.f32 %v4899, %v4947
      %v4949 = vpop.f32.mrb[0].mxu0
      %4950 = vdwg.mxu0
      %4951 = vmatprep.subr.bf16.mxu0 %v4230
      %4952 = vmatpush1.bf16.xpose.msra.mxu0 %v4229
      %4953 = vmatprep.subr.bf16.mxu0 %v4262
      %4954 = vmatpush1.bf16.xpose.msra.mxu0 %v4261
      %4955 = vmatprep.subr.bf16.mxu0 0
      %4956 = vmatpush1.bf16.xpose.msra.mxu0 0
      %4957 = vmatprep.subr.bf16.mxu0 0
      %4958 = vmatpush1.bf16.xpose.msra.mxu0 0
      %4959 = vmatprep.subr.bf16.mxu0 0
      %4960 = vmatpush1.bf16.xpose.msra.mxu0 0
      %4961 = vmatprep.subr.bf16.mxu0 0
      %4962 = vmatpush1.bf16.xpose.msra.mxu0 0
      %4963 = vmatprep.subr.bf16.mxu0 0
      %4964 = vmatpush1.bf16.xpose.msra.mxu0 0
      %4965 = vmatprep.subr.bf16.mxu0 0
      %4966 = vmatpush1.bf16.xpose.msra.mxu0 0
      %4967 = vmatprep.subr.bf16.mxu0 0
      %4968 = vmatpush1.bf16.xpose.msra.mxu0 0
      %4969 = vmatprep.subr.bf16.mxu0 0
      %4970 = vmatpush1.bf16.xpose.msra.mxu0 0
      %4971 = vmatprep.subr.bf16.mxu0 0
      %4972 = vmatpush1.bf16.xpose.msra.mxu0 0
      %4973 = vmatprep.subr.bf16.mxu0 0
      %4974 = vmatpush1.bf16.xpose.msra.mxu0 0
      %4975 = vmatprep.subr.bf16.mxu0 0
      %4976 = vmatpush1.bf16.xpose.msra.mxu0 0
      %4977 = vmatprep.subr.bf16.mxu0 0
      %4978 = vmatpush1.bf16.xpose.msra.mxu0 0
      %4979 = vmatprep.subr.bf16.mxu0 0
      %4980 = vmatpush1.bf16.xpose.msra.mxu0 0
      %4981 = vmatprep.subr.bf16.mxu0 0
      %4982 = vmatpush1.bf16.xpose.msra.mxu0 0
      %4983 = vmatprep.mubr.bf16.mxu0 %v4038
      %4984 = vmatmul.mubr.bf16.gmra.mrb[0].mxu0 %v4037
      %v4985 = vpop.f32.mrb[0].mxu0
      %v4986 = vadd.f32 %v4937, %v4985
      %v4987 = vpop.f32.mrb[0].mxu0
      %v4988 = vpop.f32.mrb[0].mxu0
      %v4989 = vadd.f32 %v4940, %v4988
      %v4990 = vpop.f32.mrb[0].mxu0
      %4991 = vmatprep.mubr.bf16.mxu0 %v4070
      %4992 = vmatmul.mubr.bf16.gmra.mrb[0].mxu0 %v4069
      %v4993 = vpop.f32.mrb[0].mxu0
      %v4994 = vadd.f32 %v4945, %v4993
      %v4995 = vpop.f32.mrb[0].mxu0
      %v4996 = vpop.f32.mrb[0].mxu0
      %v4997 = vadd.f32 %v4948, %v4996
      %v4998 = vpop.f32.mrb[0].mxu0
      %4999 = vdwg.mxu0
      %5000 = vmatprep.subr.bf16.mxu0 %v4232
      %5001 = vmatpush1.bf16.xpose.msra.mxu0 %v4231
      %5002 = vmatprep.subr.bf16.mxu0 %v4264
      %5003 = vmatpush1.bf16.xpose.msra.mxu0 %v4263
      %5004 = vmatprep.subr.bf16.mxu0 0
      %5005 = vmatpush1.bf16.xpose.msra.mxu0 0
      %5006 = vmatprep.subr.bf16.mxu0 0
      %5007 = vmatpush1.bf16.xpose.msra.mxu0 0
      %5008 = vmatprep.subr.bf16.mxu0 0
      %5009 = vmatpush1.bf16.xpose.msra.mxu0 0
      %5010 = vmatprep.subr.bf16.mxu0 0
      %5011 = vmatpush1.bf16.xpose.msra.mxu0 0
      %5012 = vmatprep.subr.bf16.mxu0 0
      %5013 = vmatpush1.bf16.xpose.msra.mxu0 0
      %5014 = vmatprep.subr.bf16.mxu0 0
      %5015 = vmatpush1.bf16.xpose.msra.mxu0 0
      %5016 = vmatprep.subr.bf16.mxu0 0
      %5017 = vmatpush1.bf16.xpose.msra.mxu0 0
      %5018 = vmatprep.subr.bf16.mxu0 0
      %5019 = vmatpush1.bf16.xpose.msra.mxu0 0
      %5020 = vmatprep.subr.bf16.mxu0 0
      %5021 = vmatpush1.bf16.xpose.msra.mxu0 0
      %5022 = vmatprep.subr.bf16.mxu0 0
      %5023 = vmatpush1.bf16.xpose.msra.mxu0 0
      %5024 = vmatprep.subr.bf16.mxu0 0
      %5025 = vmatpush1.bf16.xpose.msra.mxu0 0
      %5026 = vmatprep.subr.bf16.mxu0 0
      %5027 = vmatpush1.bf16.xpose.msra.mxu0 0
      %5028 = vmatprep.subr.bf16.mxu0 0
      %5029 = vmatpush1.bf16.xpose.msra.mxu0 0
      %5030 = vmatprep.subr.bf16.mxu0 0
      %5031 = vmatpush1.bf16.xpose.msra.mxu0 0
      %5032 = vmatprep.mubr.bf16.mxu0 %v4040
      %5033 = vmatmul.mubr.bf16.gmra.mrb[0].mxu0 %v4039
      %v5034 = vpop.f32.mrb[0].mxu0
      %v5035 = vadd.f32 %v4986, %v5034
      %v5036 = vpop.f32.mrb[0].mxu0
      %v5037 = vpop.f32.mrb[0].mxu0
      %v5038 = vadd.f32 %v4989, %v5037
      %v5039 = vpop.f32.mrb[0].mxu0
      %5040 = vmatprep.mubr.bf16.mxu0 %v4072
      %5041 = vmatmul.mubr.bf16.gmra.mrb[0].mxu0 %v4071
      %v5042 = vpop.f32.mrb[0].mxu0
      %v5043 = vadd.f32 %v4994, %v5042
      %v5044 = vpop.f32.mrb[0].mxu0
      %v5045 = vpop.f32.mrb[0].mxu0
      %v5046 = vadd.f32 %v4997, %v5045
      %v5047 = vpop.f32.mrb[0].mxu0
      %5048 = vdwg.mxu0
      %v5049 = vld [vmem:[%s419] sm:$0xff]
      %v5050 = vld [vmem:[%s419 + $0x8] sm:$0xff]
      %v5051 = vld [vmem:[%s419 + $0x10] sm:$0xff]
      %v5052 = vld [vmem:[%s419 + $0x18] sm:$0xff]
      %5054 = vset.pattern.permute.xlu0 0
      %5055 = vperm.xlu0 %5054, %v5049
      %v5056 = vpop.permute.xlu0 %5055
      %5059 = vset.pattern.permute.xlu0 0
      %5060 = vperm.xlu0 %5059, %v5050
      %v5061 = vpop.permute.xlu0 %5060
      %5064 = vset.pattern.permute.xlu0 0
      %5065 = vperm.xlu0 %5064, %v5051
      %v5066 = vpop.permute.xlu0 %5065
      %5069 = vset.pattern.permute.xlu0 0
      %5070 = vperm.xlu0 %5069, %v5052
      %v5071 = vpop.permute.xlu0 %5070
      %v5073 = vmul.f32 %v5035, %v5056
      %v5074 = vmul.f32 %v5038, %v5061
      %v5075 = vmul.f32 %v5043, %v5066
      %v5076 = vmul.f32 %v5046, %v5071
      %5077 = vst.msk [vmem:[%s457] sm:$0xff] %vm4004, %v5073
      %5078 = vst.msk [vmem:[%s457 + $0x8] sm:$0xff] %vm4004, %v5074
      %5079 = vst.msk [vmem:[%s457 + $0x10] sm:$0xff] %vm4004, %v5075
      %5080 = vst.msk [vmem:[%s457 + $0x18] sm:$0xff] %vm4004, %v5076
      %p5081 = scmp.lt.s32.totalorder %s23, 1
      %s5082 = scalar_select %p5081, %s23, 1
      %p5083 = scmp.lt.s32.totalorder %s24, 0
      %s5084 = scalar_select %p5083, %s24, 0
      %s5085 = smul.addr %s5082, 4
      %s5086 = sadd.s32 %s5084, %s5085
      %s5087 = smul.addr %s5086, 8
      %s5088 = scalar_lea.vmem %s6, %s5087
      %p5089 = scmp.lt.s32.totalorder %s23, 1
      %s5090 = scalar_select %p5089, %s23, 1
      %p5091 = scmp.lt.s32.totalorder %s24, 0
      %s5092 = scalar_select %p5091, %s24, 0
      %s5093 = smul.addr %s5090, 4
      %s5094 = sadd.s32 %s5092, %s5093
      %s5095 = smul.addr %s5094, 8
      %s5096 = scalar_lea.vmem %s7, %s5095
      // Predicated region
      $region49: #{lossx_forward.1} parent=43 // pred_check
        %p5097 = pneg %p211
      $region50: #{lossx_forward.1} parent=43 // pred_check_branch
        %5099 = sbr.rel (%p5097) target = $region52
      $region51: #{lossx_forward.1} parent=43 // pred_region
        _
      $region52: #{lossx_forward.1} parent=43 // pred_fallthru
        _
      // Predicated region
      $region53: #{lossx_forward.1} parent=43 // pred_check
        %p5100 = pneg %p239
      $region54: #{lossx_forward.1} parent=43 // pred_check_branch
        %5102 = sbr.rel (%p5100) target = $region56
      $region55: #{lossx_forward.1} parent=43 // pred_region
        _
      $region56: #{lossx_forward.1} parent=43 // pred_fallthru
        _
    $region44: #{lossx_forward.1} parent=5 // pred_fallthru
      _
    %p5103 = scmp.le.s32.totalorder 2, %s14
    // Predicated region
    $region57: #{lossx_forward.1} parent=5 // pred_check
      %p5104 = pneg %p5103
    $region58: #{lossx_forward.1} parent=5 // pred_check_branch
      %5106 = sbr.rel (%p5104) target = $region60
    $region59: #{lossx_forward.1} parent=5 // pred_region
      %s5107 = ssub.s32 %s14, 2
      // Predicated region
      $region61: #{lossx_forward.1} parent=59 // pred_check
        %p5108 = pneg %p217
      $region62: #{lossx_forward.1} parent=59 // pred_check_branch
        %5110 = sbr.rel (%p5108) target = $region64
      $region63: #{lossx_forward.1} parent=59 // pred_region
        %p5111 = scmp.lt.s32.totalorder %s25, 1
        %s5112 = scalar_select %p5111, %s25, 1
        %p5113 = scmp.lt.s32.totalorder %s26, 0
        %s5114 = scalar_select %p5113, %s26, 0
        %s5115 = smul.addr %s5112, 4
        %s5116 = sadd.s32 %s5114, %s5115
        %s5117 = smul.addr %s5116, 8
        %s5118 = scalar_lea.vmem %s6, %s5117
      $region64: #{lossx_forward.1} parent=59 // pred_fallthru
        _
      // Predicated region
      $region65: #{lossx_forward.1} parent=59 // pred_check
        %p5119 = pneg %p245
      $region66: #{lossx_forward.1} parent=59 // pred_check_branch
        %5121 = sbr.rel (%p5119) target = $region68
      $region67: #{lossx_forward.1} parent=59 // pred_region
        %p5122 = scmp.lt.s32.totalorder %s25, 1
        %s5123 = scalar_select %p5122, %s25, 1
        %p5124 = scmp.lt.s32.totalorder %s26, 0
        %s5125 = scalar_select %p5124, %s26, 0
        %s5126 = smul.addr %s5123, 4
        %s5127 = sadd.s32 %s5125, %s5126
        %s5128 = smul.addr %s5127, 8
        %s5129 = scalar_lea.vmem %s7, %s5128
      $region68: #{lossx_forward.1} parent=59 // pred_fallthru
        _
    $region60: #{lossx_forward.1} parent=5 // pred_fallthru
      _
  $region6: #{lossx_forward.1} parent=0 // loop_footer
    %s18 = sadd.s32 1, %s14
  $region7: #{lossx_forward.1} parent=0 // loop_footer_branch
    %13 = sbr.rel target = $region3
  $region8: #{lossx_forward.1} parent=0 // loop_exit
    _

</llo_original>
